<compile_context>
chip_gen: v7x
topology: tpu7x:2x2x1
jax: 0.10.0
libtpu: 0.0.40
codegen_flags: <defaults>
</compile_context>

<pallas_src>
import functools

import jax
import jax.numpy as jnp
from jax.experimental import pallas as pl
from jax.experimental.pallas import tpu as pltpu


# ----------------------------- Pallas kernel --------------------------------
def sentiment_kernel(emb_ref,                 # (TB, B_TILE, E)   time-major embeds, this block/tile
                     h0_ref, c0_ref,          # (2, B_TILE, H)    initial hidden / cell
                     wih0_ref, b0_ref,        # (E, 4H), (1, 4H)  layer-0 input projection
                     whh0_ref,                # (H, 4H)           layer-0 recurrent
                     wih1_ref, whh1_ref,      # (H, 4H), (H, 4H)  layer-1 input / recurrent
                     b1_ref,                  # (1, 4H)
                     wfc_ref, bfc_ref,        # (H, 1), (1, 1)    fc restricted to the consumed column
                     out_ref,                 # (B_TILE, 1)       sigmoid(fc(h1 at t = T-1))[:, O-1]
                     hn_ref, cn_ref,          # (2, B_TILE, H)    final hidden / cell
                     h_scr, c_scr,            # (2, B_TILE, H)    state carried across time blocks
                     xproj_scr,               # (TB*B_TILE, 4H)   hoisted layer-0 input projection
                     *, seq_len, time_block, needs_mask, unroll):
    tb = pl.program_id(1)                     # time-block index (inner, sequential)
    n_tb = pl.num_programs(1)
    B_TILE = h_scr.shape[1]
    H = h_scr.shape[2]
    TB = time_block
    E = emb_ref.shape[2]

    @pl.when(tb == 0)
    def _init():
        h_scr[...] = h0_ref[...]
        c_scr[...] = c0_ref[...]

    # Hoisted layer-0 input projection for the whole time block: one well-shaped matmul
    # (M = TB*B_TILE rows) instead of TB tiny (B_TILE, E) x (E, 4H) matmuls in the loop.
    emb2d = emb_ref[...].reshape(TB * B_TILE, E)
    xproj_scr[...] = (jnp.dot(emb2d, wih0_ref[...],
                              preferred_element_type=jnp.float32) + b0_ref[...])

    def gates_to_hc(g, c_prev):
        # PyTorch gate order: input, forget, cell(g), output.  H = 128 -> lane-aligned slices.
        i = jax.nn.sigmoid(g[:, 0 * H:1 * H])
        f = jax.nn.sigmoid(g[:, 1 * H:2 * H])
        gg = jnp.tanh(g[:, 2 * H:3 * H])
        o = jax.nn.sigmoid(g[:, 3 * H:4 * H])
        c_new = f * c_prev + i * gg
        return o * jnp.tanh(c_new), c_new

    valid = seq_len - tb * TB                 # number of real timesteps in this block

    def step(t, carry):
        h0p, c0p, h1p, c1p = carry            # SSA carries: no per-step scratch traffic
        row = pl.multiple_of(t * B_TILE, 8)
        x0 = xproj_scr[pl.ds(row, B_TILE), :]                       # x_t @ W_ih0 + b0
        # layer 0: only the recurrent matmul remains in the serial chain
        g0 = x0 + jnp.dot(h0p, whh0_ref[...], preferred_element_type=jnp.float32)
        h0n, c0n = gates_to_hc(g0, c0p)
        # layer 1 (inter-layer dropout = identity in eval): two dots, no concat
        g1 = (jnp.dot(h0n, wih1_ref[...], preferred_element_type=jnp.float32)
              + jnp.dot(h1p, whh1_ref[...], preferred_element_type=jnp.float32)
              + b1_ref[...])
        h1n, c1n = gates_to_hc(g1, c1p)
        if needs_mask:                        # static; only compiled when T % TB != 0
            keep = t < valid
            h0n = jnp.where(keep, h0n, h0p)
            c0n = jnp.where(keep, c0n, c0p)
            h1n = jnp.where(keep, h1n, h1p)
            c1n = jnp.where(keep, c1n, c1p)
        return (h0n, c0n, h1n, c1n)

    carry0 = (h_scr[0], c_scr[0], h_scr[1], c_scr[1])
    h0f, c0f, h1f, c1f = jax.lax.fori_loop(0, TB, step, carry0, unroll=unroll)

    # Sync carried state back to scratch once per grid step (not per timestep).
    h_scr[0] = h0f
    c_scr[0] = c0f
    h_scr[1] = h1f
    c_scr[1] = c1f

    # fc + sigmoid only where it is consumed (last timestep); final states written once.
    @pl.when(tb == n_tb - 1)
    def _finalize():
        hn_ref[0] = h0f
        hn_ref[1] = h1f
        cn_ref[0] = c0f
        cn_ref[1] = c1f
        logits = (jnp.dot(h1f, wfc_ref[...], preferred_element_type=jnp.float32)
                  + bfc_ref[...])
        out_ref[...] = jax.nn.sigmoid(logits)


# ------------------------------ wrapper --------------------------------------
@jax.jit
def sentiment_forward(x_ids, hidden, params):
    """x_ids: (B, T) int32, hidden: (h0, c0) each (2, B, H).  Returns (out[:, -1], (h_n, c_n))."""
    h0, c0 = hidden
    emb_table = params["embedding"]                      # (V, E)
    B, T = x_ids.shape
    E = emb_table.shape[1]
    H = h0.shape[-1]
    O = params["w_fc"].shape[-1]

    # ---- batch padding / tiling (f32 sublane multiple; 2 tiles -> both v7x TCs) ----
    Bp = ((B + 7) // 8) * 8
    pad_b = Bp - B
    if Bp >= 16 and Bp % 16 == 0:
        B_TILE = Bp // 2
    else:
        B_TILE = Bp
    n_b = Bp // B_TILE

    # ---- time blocking (robust for any T: pad + in-kernel masking) ----
    TB = min(T, 32)
    T_pad = pl.cdiv(T, TB) * TB
    n_tb = T_pad // TB
    needs_mask = (T_pad != T)

    # glue kept in XLA: embedding gather, batch_first -> time-major, batch/time padding
    embeds = jnp.take(emb_table, x_ids, axis=0)          # (B, T, E)
    embeds_tm = jnp.transpose(embeds, (1, 0, 2))         # (T, B, E)
    embeds_tm = jnp.pad(embeds_tm, ((0, T_pad - T), (0, pad_b), (0, 0)))   # (T_pad, Bp, E)
    h0p = jnp.pad(h0, ((0, 0), (0, pad_b), (0, 0)))
    c0p = jnp.pad(c0, ((0, 0), (0, pad_b), (0, 0)))

    # Only fc column O-1 is consumed by the module (out.view(B, -1)[:, -1]).
    w_fc_last = params["w_fc"][:, O - 1:O]               # (H, 1)
    b_fc_last = params["b_fc"][:, O - 1:O]               # (1, 1)

    kernel = functools.partial(
        sentiment_kernel,
        seq_len=T, time_block=TB, needs_mask=needs_mask, unroll=min(TB, 8))

    wspec2 = lambda b, t: (0, 0)                          # invariant weights / biases

    out_sig, h_n, c_n = pl.pallas_call(
        kernel,
        out_shape=(
            jax.ShapeDtypeStruct((Bp, 1), jnp.float32),
            jax.ShapeDtypeStruct((2, Bp, H), jnp.float32),
            jax.ShapeDtypeStruct((2, Bp, H), jnp.float32),
        ),
        grid_spec=pltpu.PrefetchScalarGridSpec(
            num_scalar_prefetch=0,
            grid=(n_b, n_tb),                             # (batch tiles: parallel, time: serial)
            in_specs=[
                pl.BlockSpec((TB, B_TILE, E), lambda b, t: (t, b, 0)),   # embeddings block
                pl.BlockSpec((2, B_TILE, H), lambda b, t: (0, b, 0)),    # h0
                pl.BlockSpec((2, B_TILE, H), lambda b, t: (0, b, 0)),    # c0
                pl.BlockSpec((E, 4 * H), wspec2),                        # W_ih0
                pl.BlockSpec((1, 4 * H), wspec2),                        # b0 (b_ih0 + b_hh0)
                pl.BlockSpec((H, 4 * H), wspec2),                        # W_hh0
                pl.BlockSpec((H, 4 * H), wspec2),                        # W_ih1
                pl.BlockSpec((H, 4 * H), wspec2),                        # W_hh1
                pl.BlockSpec((1, 4 * H), wspec2),                        # b1 (b_ih1 + b_hh1)
                pl.BlockSpec((H, 1), wspec2),                            # fc weight (last column)
                pl.BlockSpec((1, 1), wspec2),                            # fc bias (last column)
            ],
            out_specs=[
                pl.BlockSpec((B_TILE, 1), lambda b, t: (b, 0)),          # sigmoid(fc(h1_{T-1}))[:, -1]
                pl.BlockSpec((2, B_TILE, H), lambda b, t: (0, b, 0)),    # h_n
                pl.BlockSpec((2, B_TILE, H), lambda b, t: (0, b, 0)),    # c_n
            ],
            scratch_shapes=[
                pltpu.VMEM((2, B_TILE, H), jnp.float32),                 # h state (carried over time)
                pltpu.VMEM((2, B_TILE, H), jnp.float32),                 # c state
                pltpu.VMEM((TB * B_TILE, 4 * H), jnp.float32),           # hoisted layer-0 projection
            ],
        ),
        compiler_params=pltpu.CompilerParams(
            dimension_semantics=("parallel", "arbitrary"),               # time MUST stay sequential
            vmem_limit_bytes=32 * 1024 * 1024,
        ),
    )(embeds_tm, h0p, c0p,
      params["w_ih0"], params["b0"], params["w_hh0"],
      params["w_ih1"], params["w_hh1"], params["b1"],
      w_fc_last, b_fc_last)

    # Module semantics: out.view(B, T*O)[:, -1] == sigmoid(fc(h1 at t=T-1))[:, O-1]
    out_last = out_sig[:B, 0]
    return out_last, (h_n[:, :B, :], c_n[:, :B, :])


# --------------------------- pure-JAX reference -------------------------------
def reference_forward(x_ids, hidden, params):
    h0, c0 = hidden
    emb = jnp.take(params["embedding"], x_ids, axis=0)   # (B, T, E)
    B, T, E = emb.shape
    H = h0.shape[-1]

    def cell(x_in, h_prev, c_prev, w_ih, w_hh, b):
        gates = x_in @ w_ih + h_prev @ w_hh + b
        i = jax.nn.sigmoid(gates[:, 0 * H:1 * H])
        f = jax.nn.sigmoid(gates[:, 1 * H:2 * H])
        g = jnp.tanh(gates[:, 2 * H:3 * H])
        o = jax.nn.sigmoid(gates[:, 3 * H:4 * H])
        c_new = f * c_prev + i * g
        return o * jnp.tanh(c_new), c_new

    def step(carry, x_t):
        (h0_p, c0_p, h1_p, c1_p) = carry
        h0_n, c0_n = cell(x_t, h0_p, c0_p, params["w_ih0"], params["w_hh0"], params["b0"])
        h1_n, c1_n = cell(h0_n, h1_p, c1_p, params["w_ih1"], params["w_hh1"], params["b1"])
        return (h0_n, c0_n, h1_n, c1_n), h1_n

    init = (h0[0], c0[0], h0[1], c0[1])
    (h0_f, c0_f, h1_f, c1_f), hs = jax.lax.scan(step, init, jnp.transpose(emb, (1, 0, 2)))
    out = jax.nn.sigmoid(hs @ params["w_fc"] + params["b_fc"])     # (T, B, O)
    out_full = jnp.transpose(out, (1, 0, 2)).reshape(B, -1)
    return out_full[:, -1], (jnp.stack([h0_f, h1_f]), jnp.stack([c0_f, c1_f]))


# ------------------------------- main -----------------------------------------
if __name__ == "__main__":
    # small, forward-consistent shapes (hidden_dim = 128 exactly as in the module)
    B, T = 2, 8            # batch, sequence length
    V = 16                 # vocab_size
    O = V                  # output_size = len(word2ind) = vocab_size
    E = 10                 # embedding_dim
    H = 128                # hidden_dim (module value; also lane-aligns the gate slices)
    N_LAYERS = 2

    key = jax.random.PRNGKey(0)
    keys = jax.random.split(key, 12)
    s = 1.0 / jnp.sqrt(H)

    params = {
        "embedding": jax.random.normal(keys[0], (V, E), jnp.float32),
        # layer 0 (input size E), PyTorch gate order i,f,g,o packed along 4H
        "w_ih0": jax.random.uniform(keys[1], (E, 4 * H), jnp.float32, -s, s),
        "w_hh0": jax.random.uniform(keys[2], (H, 4 * H), jnp.float32, -s, s),
        "b0":    jax.random.uniform(keys[3], (1, 4 * H), jnp.float32, -s, s),  # b_ih + b_hh combined
        # layer 1 (input size H)
        "w_ih1": jax.random.uniform(keys[4], (H, 4 * H), jnp.float32, -s, s),
        "w_hh1": jax.random.uniform(keys[5], (H, 4 * H), jnp.float32, -s, s),
        "b1":    jax.random.uniform(keys[6], (1, 4 * H), jnp.float32, -s, s),
        # fc
        "w_fc":  jax.random.uniform(keys[7], (H, O), jnp.float32, -s, s),
        "b_fc":  jax.random.uniform(keys[8], (1, O), jnp.float32, -s, s),
    }

    x = jax.random.randint(keys[9], (B, T), 0, V, jnp.int32)
    # init_hidden: zeros of shape (n_layers, B, H)
    hidden = (jnp.zeros((N_LAYERS, B, H), jnp.float32),
              jnp.zeros((N_LAYERS, B, H), jnp.float32))

    out, (h_n, c_n) = sentiment_forward(x, hidden, params)
    jax.block_until_ready((out, h_n, c_n))

    out_ref, (h_ref, c_ref) = reference_forward(x, hidden, params)
    assert jnp.allclose(out, out_ref, atol=1e-4), "output mismatch"
    assert jnp.allclose(h_n, h_ref, atol=1e-4), "h_n mismatch"
    assert jnp.allclose(c_n, c_ref, atol=1e-4), "c_n mismatch"

    print("KERNEL_OK")
</pallas_src>

<mosaic_0001>
module attributes {stable_mosaic.version = 11 : i64} {
  func.func @sentiment_kernel(%arg0: i32, %arg1: i32, %arg2: memref<8x8x10xf32, #tpu.memory_space<vmem>>, %arg3: memref<2x8x128xf32, #tpu.memory_space<vmem>>, %arg4: memref<2x8x128xf32, #tpu.memory_space<vmem>>, %arg5: memref<10x512xf32, #tpu.memory_space<vmem>>, %arg6: memref<1x512xf32, #tpu.memory_space<vmem>>, %arg7: memref<128x512xf32, #tpu.memory_space<vmem>>, %arg8: memref<128x512xf32, #tpu.memory_space<vmem>>, %arg9: memref<128x512xf32, #tpu.memory_space<vmem>>, %arg10: memref<1x512xf32, #tpu.memory_space<vmem>>, %arg11: memref<128x1xf32, #tpu.memory_space<vmem>>, %arg12: memref<1x1xf32, #tpu.memory_space<vmem>>, %arg13: memref<8x1xf32, #tpu.memory_space<vmem>>, %arg14: memref<2x8x128xf32, #tpu.memory_space<vmem>>, %arg15: memref<2x8x128xf32, #tpu.memory_space<vmem>>, %arg16: memref<2x8x128xf32, #tpu.memory_space<vmem>>, %arg17: memref<2x8x128xf32, #tpu.memory_space<vmem>>, %arg18: memref<64x512xf32, #tpu.memory_space<vmem>>) attributes {dimension_semantics = [#tpu.dimension_semantics<parallel>, #tpu.dimension_semantics<arbitrary>], iteration_bounds = array<i64: 1, 1>, scalar_prefetch = 0 : i64, scratch_operands = 3 : i64, tpu.core_type = #tpu.core_type<tc>, window_params = [{transform_indices = @transform_0, window_bounds = array<i64: 8, 8, 10>}, {transform_indices = @transform_1, window_bounds = array<i64: 2, 8, 128>}, {transform_indices = @transform_2, window_bounds = array<i64: 2, 8, 128>}, {pipeline_mode = #tpu.pipeline_mode<synchronous>, transform_indices = @transform_3, window_bounds = array<i64: 10, 512>}, {pipeline_mode = #tpu.pipeline_mode<synchronous>, transform_indices = @transform_4, window_bounds = array<i64: 1, 512>}, {pipeline_mode = #tpu.pipeline_mode<synchronous>, transform_indices = @transform_5, window_bounds = array<i64: 128, 512>}, {pipeline_mode = #tpu.pipeline_mode<synchronous>, transform_indices = @transform_6, window_bounds = array<i64: 128, 512>}, {pipeline_mode = #tpu.pipeline_mode<synchronous>, transform_indices = @transform_7, window_bounds = array<i64: 128, 512>}, {pipeline_mode = #tpu.pipeline_mode<synchronous>, transform_indices = @transform_8, window_bounds = array<i64: 1, 512>}, {pipeline_mode = #tpu.pipeline_mode<synchronous>, transform_indices = @transform_9, window_bounds = array<i64: 128, 1>}, {pipeline_mode = #tpu.pipeline_mode<synchronous>, transform_indices = @transform_10, window_bounds = array<i64: 1, 1>}, {transform_indices = @transform_11, window_bounds = array<i64: 8, 1>}, {transform_indices = @transform_12, window_bounds = array<i64: 2, 8, 128>}, {transform_indices = @transform_13, window_bounds = array<i64: 2, 8, 128>}]} {
    %c0_i32 = arith.constant 0 : i32
    %0 = arith.cmpi eq, %arg1, %c0_i32 : i32
    %1 = arith.extui %0 : i1 to i32
    %c0_i32_0 = arith.constant 0 : i32
    %2 = arith.cmpi ne, %1, %c0_i32_0 : i32
    scf.if %2 {
      %c0_187 = arith.constant 0 : index
      %c0_188 = arith.constant 0 : index
      %c0_189 = arith.constant 0 : index
      %554 = vector.load %arg3[%c0_187, %c0_188, %c0_189] : memref<2x8x128xf32, #tpu.memory_space<vmem>>, vector<2x8x128xf32>
      %c0_190 = arith.constant 0 : index
      %c0_191 = arith.constant 0 : index
      %c0_192 = arith.constant 0 : index
      %555 = vector.load %arg16[%c0_190, %c0_191, %c0_192] : memref<2x8x128xf32, #tpu.memory_space<vmem>>, vector<2x8x128xf32>
      tpu.vector_store %arg16[%c0_190, %c0_191, %c0_192], %554 {strides = array<i32>} : memref<2x8x128xf32, #tpu.memory_space<vmem>>, vector<2x8x128xf32>,
      %c0_193 = arith.constant 0 : index
      %c0_194 = arith.constant 0 : index
      %c0_195 = arith.constant 0 : index
      %556 = vector.load %arg4[%c0_193, %c0_194, %c0_195] : memref<2x8x128xf32, #tpu.memory_space<vmem>>, vector<2x8x128xf32>
      %c0_196 = arith.constant 0 : index
      %c0_197 = arith.constant 0 : index
      %c0_198 = arith.constant 0 : index
      %557 = vector.load %arg17[%c0_196, %c0_197, %c0_198] : memref<2x8x128xf32, #tpu.memory_space<vmem>>, vector<2x8x128xf32>
      tpu.vector_store %arg17[%c0_196, %c0_197, %c0_198], %556 {strides = array<i32>} : memref<2x8x128xf32, #tpu.memory_space<vmem>>, vector<2x8x128xf32>,
    } else {
    }
    %c0 = arith.constant 0 : index
    %c0_1 = arith.constant 0 : index
    %c0_2 = arith.constant 0 : index
    %3 = vector.load %arg2[%c0, %c0_1, %c0_2] : memref<8x8x10xf32, #tpu.memory_space<vmem>>, vector<8x8x10xf32>
    %4 = vector.shape_cast %3 : vector<8x8x10xf32> to vector<64x10xf32>
    %c0_3 = arith.constant 0 : index
    %c0_4 = arith.constant 0 : index
    %5 = vector.load %arg5[%c0_3, %c0_4] : memref<10x512xf32, #tpu.memory_space<vmem>>, vector<10x512xf32>
    %cst = arith.constant dense<0.000000e+00> : vector<64x512xf32>
    %6 = tpu.matmul %4, %5, %cst {dimension_numbers = #tpu.dot_dimension_numbers<[1], [0], [0], [1], [0, 0, 1, 1], [], []>} : vector<64x10xf32>, vector<10x512xf32>, vector<64x512xf32> -> vector<64x512xf32>
    %c0_5 = arith.constant 0 : index
    %c0_6 = arith.constant 0 : index
    %7 = vector.load %arg6[%c0_5, %c0_6] : memref<1x512xf32, #tpu.memory_space<vmem>>, vector<1x512xf32>
    %8 = vector.broadcast %7 : vector<1x512xf32> to vector<64x512xf32>
    %9 = arith.addf %6, %8 : vector<64x512xf32>
    %c0_7 = arith.constant 0 : index
    %c0_8 = arith.constant 0 : index
    %10 = vector.load %arg18[%c0_7, %c0_8] : memref<64x512xf32, #tpu.memory_space<vmem>>, vector<64x512xf32>
    tpu.vector_store %arg18[%c0_7, %c0_8], %9 {strides = array<i32>} : memref<64x512xf32, #tpu.memory_space<vmem>>, vector<64x512xf32>,
    %c0_9 = arith.constant 0 : index
    %c0_10 = arith.constant 0 : index
    %c0_11 = arith.constant 0 : index
    %11 = vector.load %arg16[%c0_9, %c0_10, %c0_11] : memref<2x8x128xf32, #tpu.memory_space<vmem>>, vector<1x8x128xf32>
    %12 = vector.shape_cast %11 : vector<1x8x128xf32> to vector<8x128xf32>
    %c0_12 = arith.constant 0 : index
    %c0_13 = arith.constant 0 : index
    %c0_14 = arith.constant 0 : index
    %13 = vector.load %arg17[%c0_12, %c0_13, %c0_14] : memref<2x8x128xf32, #tpu.memory_space<vmem>>, vector<1x8x128xf32>
    %14 = vector.shape_cast %13 : vector<1x8x128xf32> to vector<8x128xf32>
    %c1 = arith.constant 1 : index
    %c0_15 = arith.constant 0 : index
    %c0_16 = arith.constant 0 : index
    %15 = vector.load %arg16[%c1, %c0_15, %c0_16] : memref<2x8x128xf32, #tpu.memory_space<vmem>>, vector<1x8x128xf32>
    %16 = vector.shape_cast %15 : vector<1x8x128xf32> to vector<8x128xf32>
    %c1_17 = arith.constant 1 : index
    %c0_18 = arith.constant 0 : index
    %c0_19 = arith.constant 0 : index
    %17 = vector.load %arg17[%c1_17, %c0_18, %c0_19] : memref<2x8x128xf32, #tpu.memory_space<vmem>>, vector<1x8x128xf32>
    %18 = vector.shape_cast %17 : vector<1x8x128xf32> to vector<8x128xf32>
    %c0_i32_20 = arith.constant 0 : i32
    %c8_i32 = arith.constant 8 : i32
    %19 = arith.muli %c0_i32_20, %c8_i32 : i32
    %20 = tpu.assume_multiple %19, 8 : i32
    %21 = arith.index_cast %20 : i32 to index
    %c0_21 = arith.constant 0 : index
    %22 = vector.load %arg18[%21, %c0_21] : memref<64x512xf32, #tpu.memory_space<vmem>>, vector<8x512xf32>
    %c0_22 = arith.constant 0 : index
    %c0_23 = arith.constant 0 : index
    %23 = vector.load %arg7[%c0_22, %c0_23] : memref<128x512xf32, #tpu.memory_space<vmem>>, vector<128x512xf32>
    %cst_24 = arith.constant dense<0.000000e+00> : vector<8x512xf32>
    %24 = tpu.matmul %12, %23, %cst_24 {dimension_numbers = #tpu.dot_dimension_numbers<[1], [0], [0], [1], [0, 0, 1, 1], [], []>} : vector<8x128xf32>, vector<128x512xf32>, vector<8x512xf32> -> vector<8x512xf32>
    %25 = arith.addf %22, %24 : vector<8x512xf32>
    %26 = vector.extract_strided_slice %25 {offsets = [0, 0], sizes = [8, 128], strides = [1, 1]} : vector<8x512xf32> to vector<8x128xf32>
    %27 = arith.negf %26 : vector<8x128xf32>
    %28 = math.exp %27 : vector<8x128xf32>
    %cst_25 = arith.constant 1.000000e+00 : f32
    %29 = vector.broadcast %cst_25 : f32 to vector<8x128xf32>
    %30 = arith.addf %29, %28 : vector<8x128xf32>
    %31 = arith.divf %29, %30 : vector<8x128xf32>
    %32 = vector.extract_strided_slice %25 {offsets = [0, 128], sizes = [8, 128], strides = [1, 1]} : vector<8x512xf32> to vector<8x128xf32>
    %33 = arith.negf %32 : vector<8x128xf32>
    %34 = math.exp %33 : vector<8x128xf32>
    %cst_26 = arith.constant 1.000000e+00 : f32
    %35 = vector.broadcast %cst_26 : f32 to vector<8x128xf32>
    %36 = arith.addf %35, %34 : vector<8x128xf32>
    %37 = arith.divf %35, %36 : vector<8x128xf32>
    %38 = vector.extract_strided_slice %25 {offsets = [0, 256], sizes = [8, 128], strides = [1, 1]} : vector<8x512xf32> to vector<8x128xf32>
    %39 = math.tanh %38 : vector<8x128xf32>
    %40 = vector.extract_strided_slice %25 {offsets = [0, 384], sizes = [8, 128], strides = [1, 1]} : vector<8x512xf32> to vector<8x128xf32>
    %41 = arith.negf %40 : vector<8x128xf32>
    %42 = math.exp %41 : vector<8x128xf32>
    %cst_27 = arith.constant 1.000000e+00 : f32
    %43 = vector.broadcast %cst_27 : f32 to vector<8x128xf32>
    %44 = arith.addf %43, %42 : vector<8x128xf32>
    %45 = arith.divf %43, %44 : vector<8x128xf32>
    %46 = arith.mulf %37, %14 : vector<8x128xf32>
    %47 = arith.mulf %31, %39 : vector<8x128xf32>
    %48 = arith.addf %46, %47 : vector<8x128xf32>
    %49 = math.tanh %48 : vector<8x128xf32>
    %50 = arith.mulf %45, %49 : vector<8x128xf32>
    %c0_28 = arith.constant 0 : index
    %c0_29 = arith.constant 0 : index
    %51 = vector.load %arg8[%c0_28, %c0_29] : memref<128x512xf32, #tpu.memory_space<vmem>>, vector<128x512xf32>
    %cst_30 = arith.constant dense<0.000000e+00> : vector<8x512xf32>
    %52 = tpu.matmul %50, %51, %cst_30 {dimension_numbers = #tpu.dot_dimension_numbers<[1], [0], [0], [1], [0, 0, 1, 1], [], []>} : vector<8x128xf32>, vector<128x512xf32>, vector<8x512xf32> -> vector<8x512xf32>
    %c0_31 = arith.constant 0 : index
    %c0_32 = arith.constant 0 : index
    %53 = vector.load %arg9[%c0_31, %c0_32] : memref<128x512xf32, #tpu.memory_space<vmem>>, vector<128x512xf32>
    %cst_33 = arith.constant dense<0.000000e+00> : vector<8x512xf32>
    %54 = tpu.matmul %16, %53, %cst_33 {dimension_numbers = #tpu.dot_dimension_numbers<[1], [0], [0], [1], [0, 0, 1, 1], [], []>} : vector<8x128xf32>, vector<128x512xf32>, vector<8x512xf32> -> vector<8x512xf32>
    %55 = arith.addf %52, %54 : vector<8x512xf32>
    %c0_34 = arith.constant 0 : index
    %c0_35 = arith.constant 0 : index
    %56 = vector.load %arg10[%c0_34, %c0_35] : memref<1x512xf32, #tpu.memory_space<vmem>>, vector<1x512xf32>
    %57 = vector.broadcast %56 : vector<1x512xf32> to vector<8x512xf32>
    %58 = arith.addf %55, %57 : vector<8x512xf32>
    %59 = vector.extract_strided_slice %58 {offsets = [0, 0], sizes = [8, 128], strides = [1, 1]} : vector<8x512xf32> to vector<8x128xf32>
    %60 = arith.negf %59 : vector<8x128xf32>
    %61 = math.exp %60 : vector<8x128xf32>
    %cst_36 = arith.constant 1.000000e+00 : f32
    %62 = vector.broadcast %cst_36 : f32 to vector<8x128xf32>
    %63 = arith.addf %62, %61 : vector<8x128xf32>
    %64 = arith.divf %62, %63 : vector<8x128xf32>
    %65 = vector.extract_strided_slice %58 {offsets = [0, 128], sizes = [8, 128], strides = [1, 1]} : vector<8x512xf32> to vector<8x128xf32>
    %66 = arith.negf %65 : vector<8x128xf32>
    %67 = math.exp %66 : vector<8x128xf32>
    %cst_37 = arith.constant 1.000000e+00 : f32
    %68 = vector.broadcast %cst_37 : f32 to vector<8x128xf32>
    %69 = arith.addf %68, %67 : vector<8x128xf32>
    %70 = arith.divf %68, %69 : vector<8x128xf32>
    %71 = vector.extract_strided_slice %58 {offsets = [0, 256], sizes = [8, 128], strides = [1, 1]} : vector<8x512xf32> to vector<8x128xf32>
    %72 = math.tanh %71 : vector<8x128xf32>
    %73 = vector.extract_strided_slice %58 {offsets = [0, 384], sizes = [8, 128], strides = [1, 1]} : vector<8x512xf32> to vector<8x128xf32>
    %74 = arith.negf %73 : vector<8x128xf32>
    %75 = math.exp %74 : vector<8x128xf32>
    %cst_38 = arith.constant 1.000000e+00 : f32
    %76 = vector.broadcast %cst_38 : f32 to vector<8x128xf32>
    %77 = arith.addf %76, %75 : vector<8x128xf32>
    %78 = arith.divf %76, %77 : vector<8x128xf32>
    %79 = arith.mulf %70, %18 : vector<8x128xf32>
    %80 = arith.mulf %64, %72 : vector<8x128xf32>
    %81 = arith.addf %79, %80 : vector<8x128xf32>
    %82 = math.tanh %81 : vector<8x128xf32>
    %83 = arith.mulf %78, %82 : vector<8x128xf32>
    %c1_i32 = arith.constant 1 : i32
    %c8_i32_39 = arith.constant 8 : i32
    %84 = arith.muli %c1_i32, %c8_i32_39 : i32
    %85 = tpu.assume_multiple %84, 8 : i32
    %86 = arith.index_cast %85 : i32 to index
    %c0_40 = arith.constant 0 : index
    %87 = vector.load %arg18[%86, %c0_40] : memref<64x512xf32, #tpu.memory_space<vmem>>, vector<8x512xf32>
    %c0_41 = arith.constant 0 : index
    %c0_42 = arith.constant 0 : index
    %88 = vector.load %arg7[%c0_41, %c0_42] : memref<128x512xf32, #tpu.memory_space<vmem>>, vector<128x512xf32>
    %cst_43 = arith.constant dense<0.000000e+00> : vector<8x512xf32>
    %89 = tpu.matmul %50, %88, %cst_43 {dimension_numbers = #tpu.dot_dimension_numbers<[1], [0], [0], [1], [0, 0, 1, 1], [], []>} : vector<8x128xf32>, vector<128x512xf32>, vector<8x512xf32> -> vector<8x512xf32>
    %90 = arith.addf %87, %89 : vector<8x512xf32>
    %91 = vector.extract_strided_slice %90 {offsets = [0, 0], sizes = [8, 128], strides = [1, 1]} : vector<8x512xf32> to vector<8x128xf32>
    %92 = arith.negf %91 : vector<8x128xf32>
    %93 = math.exp %92 : vector<8x128xf32>
    %cst_44 = arith.constant 1.000000e+00 : f32
    %94 = vector.broadcast %cst_44 : f32 to vector<8x128xf32>
    %95 = arith.addf %94, %93 : vector<8x128xf32>
    %96 = arith.divf %94, %95 : vector<8x128xf32>
    %97 = vector.extract_strided_slice %90 {offsets = [0, 128], sizes = [8, 128], strides = [1, 1]} : vector<8x512xf32> to vector<8x128xf32>
    %98 = arith.negf %97 : vector<8x128xf32>
    %99 = math.exp %98 : vector<8x128xf32>
    %cst_45 = arith.constant 1.000000e+00 : f32
    %100 = vector.broadcast %cst_45 : f32 to vector<8x128xf32>
    %101 = arith.addf %100, %99 : vector<8x128xf32>
    %102 = arith.divf %100, %101 : vector<8x128xf32>
    %103 = vector.extract_strided_slice %90 {offsets = [0, 256], sizes = [8, 128], strides = [1, 1]} : vector<8x512xf32> to vector<8x128xf32>
    %104 = math.tanh %103 : vector<8x128xf32>
    %105 = vector.extract_strided_slice %90 {offsets = [0, 384], sizes = [8, 128], strides = [1, 1]} : vector<8x512xf32> to vector<8x128xf32>
    %106 = arith.negf %105 : vector<8x128xf32>
    %107 = math.exp %106 : vector<8x128xf32>
    %cst_46 = arith.constant 1.000000e+00 : f32
    %108 = vector.broadcast %cst_46 : f32 to vector<8x128xf32>
    %109 = arith.addf %108, %107 : vector<8x128xf32>
    %110 = arith.divf %108, %109 : vector<8x128xf32>
    %111 = arith.mulf %102, %48 : vector<8x128xf32>
    %112 = arith.mulf %96, %104 : vector<8x128xf32>
    %113 = arith.addf %111, %112 : vector<8x128xf32>
    %114 = math.tanh %113 : vector<8x128xf32>
    %115 = arith.mulf %110, %114 : vector<8x128xf32>
    %c0_47 = arith.constant 0 : index
    %c0_48 = arith.constant 0 : index
    %116 = vector.load %arg8[%c0_47, %c0_48] : memref<128x512xf32, #tpu.memory_space<vmem>>, vector<128x512xf32>
    %cst_49 = arith.constant dense<0.000000e+00> : vector<8x512xf32>
    %117 = tpu.matmul %115, %116, %cst_49 {dimension_numbers = #tpu.dot_dimension_numbers<[1], [0], [0], [1], [0, 0, 1, 1], [], []>} : vector<8x128xf32>, vector<128x512xf32>, vector<8x512xf32> -> vector<8x512xf32>
    %c0_50 = arith.constant 0 : index
    %c0_51 = arith.constant 0 : index
    %118 = vector.load %arg9[%c0_50, %c0_51] : memref<128x512xf32, #tpu.memory_space<vmem>>, vector<128x512xf32>
    %cst_52 = arith.constant dense<0.000000e+00> : vector<8x512xf32>
    %119 = tpu.matmul %83, %118, %cst_52 {dimension_numbers = #tpu.dot_dimension_numbers<[1], [0], [0], [1], [0, 0, 1, 1], [], []>} : vector<8x128xf32>, vector<128x512xf32>, vector<8x512xf32> -> vector<8x512xf32>
    %120 = arith.addf %117, %119 : vector<8x512xf32>
    %c0_53 = arith.constant 0 : index
    %c0_54 = arith.constant 0 : index
    %121 = vector.load %arg10[%c0_53, %c0_54] : memref<1x512xf32, #tpu.memory_space<vmem>>, vector<1x512xf32>
    %122 = vector.broadcast %121 : vector<1x512xf32> to vector<8x512xf32>
    %123 = arith.addf %120, %122 : vector<8x512xf32>
    %124 = vector.extract_strided_slice %123 {offsets = [0, 0], sizes = [8, 128], strides = [1, 1]} : vector<8x512xf32> to vector<8x128xf32>
    %125 = arith.negf %124 : vector<8x128xf32>
    %126 = math.exp %125 : vector<8x128xf32>
    %cst_55 = arith.constant 1.000000e+00 : f32
    %127 = vector.broadcast %cst_55 : f32 to vector<8x128xf32>
    %128 = arith.addf %127, %126 : vector<8x128xf32>
    %129 = arith.divf %127, %128 : vector<8x128xf32>
    %130 = vector.extract_strided_slice %123 {offsets = [0, 128], sizes = [8, 128], strides = [1, 1]} : vector<8x512xf32> to vector<8x128xf32>
    %131 = arith.negf %130 : vector<8x128xf32>
    %132 = math.exp %131 : vector<8x128xf32>
    %cst_56 = arith.constant 1.000000e+00 : f32
    %133 = vector.broadcast %cst_56 : f32 to vector<8x128xf32>
    %134 = arith.addf %133, %132 : vector<8x128xf32>
    %135 = arith.divf %133, %134 : vector<8x128xf32>
    %136 = vector.extract_strided_slice %123 {offsets = [0, 256], sizes = [8, 128], strides = [1, 1]} : vector<8x512xf32> to vector<8x128xf32>
    %137 = math.tanh %136 : vector<8x128xf32>
    %138 = vector.extract_strided_slice %123 {offsets = [0, 384], sizes = [8, 128], strides = [1, 1]} : vector<8x512xf32> to vector<8x128xf32>
    %139 = arith.negf %138 : vector<8x128xf32>
    %140 = math.exp %139 : vector<8x128xf32>
    %cst_57 = arith.constant 1.000000e+00 : f32
    %141 = vector.broadcast %cst_57 : f32 to vector<8x128xf32>
    %142 = arith.addf %141, %140 : vector<8x128xf32>
    %143 = arith.divf %141, %142 : vector<8x128xf32>
    %144 = arith.mulf %135, %81 : vector<8x128xf32>
    %145 = arith.mulf %129, %137 : vector<8x128xf32>
    %146 = arith.addf %144, %145 : vector<8x128xf32>
    %147 = math.tanh %146 : vector<8x128xf32>
    %148 = arith.mulf %143, %147 : vector<8x128xf32>
    %c2_i32 = arith.constant 2 : i32
    %c8_i32_58 = arith.constant 8 : i32
    %149 = arith.muli %c2_i32, %c8_i32_58 : i32
    %150 = tpu.assume_multiple %149, 8 : i32
    %151 = arith.index_cast %150 : i32 to index
    %c0_59 = arith.constant 0 : index
    %152 = vector.load %arg18[%151, %c0_59] : memref<64x512xf32, #tpu.memory_space<vmem>>, vector<8x512xf32>
    %c0_60 = arith.constant 0 : index
    %c0_61 = arith.constant 0 : index
    %153 = vector.load %arg7[%c0_60, %c0_61] : memref<128x512xf32, #tpu.memory_space<vmem>>, vector<128x512xf32>
    %cst_62 = arith.constant dense<0.000000e+00> : vector<8x512xf32>
    %154 = tpu.matmul %115, %153, %cst_62 {dimension_numbers = #tpu.dot_dimension_numbers<[1], [0], [0], [1], [0, 0, 1, 1], [], []>} : vector<8x128xf32>, vector<128x512xf32>, vector<8x512xf32> -> vector<8x512xf32>
    %155 = arith.addf %152, %154 : vector<8x512xf32>
    %156 = vector.extract_strided_slice %155 {offsets = [0, 0], sizes = [8, 128], strides = [1, 1]} : vector<8x512xf32> to vector<8x128xf32>
    %157 = arith.negf %156 : vector<8x128xf32>
    %158 = math.exp %157 : vector<8x128xf32>
    %cst_63 = arith.constant 1.000000e+00 : f32
    %159 = vector.broadcast %cst_63 : f32 to vector<8x128xf32>
    %160 = arith.addf %159, %158 : vector<8x128xf32>
    %161 = arith.divf %159, %160 : vector<8x128xf32>
    %162 = vector.extract_strided_slice %155 {offsets = [0, 128], sizes = [8, 128], strides = [1, 1]} : vector<8x512xf32> to vector<8x128xf32>
    %163 = arith.negf %162 : vector<8x128xf32>
    %164 = math.exp %163 : vector<8x128xf32>
    %cst_64 = arith.constant 1.000000e+00 : f32
    %165 = vector.broadcast %cst_64 : f32 to vector<8x128xf32>
    %166 = arith.addf %165, %164 : vector<8x128xf32>
    %167 = arith.divf %165, %166 : vector<8x128xf32>
    %168 = vector.extract_strided_slice %155 {offsets = [0, 256], sizes = [8, 128], strides = [1, 1]} : vector<8x512xf32> to vector<8x128xf32>
    %169 = math.tanh %168 : vector<8x128xf32>
    %170 = vector.extract_strided_slice %155 {offsets = [0, 384], sizes = [8, 128], strides = [1, 1]} : vector<8x512xf32> to vector<8x128xf32>
    %171 = arith.negf %170 : vector<8x128xf32>
    %172 = math.exp %171 : vector<8x128xf32>
    %cst_65 = arith.constant 1.000000e+00 : f32
    %173 = vector.broadcast %cst_65 : f32 to vector<8x128xf32>
    %174 = arith.addf %173, %172 : vector<8x128xf32>
    %175 = arith.divf %173, %174 : vector<8x128xf32>
    %176 = arith.mulf %167, %113 : vector<8x128xf32>
    %177 = arith.mulf %161, %169 : vector<8x128xf32>
    %178 = arith.addf %176, %177 : vector<8x128xf32>
    %179 = math.tanh %178 : vector<8x128xf32>
    %180 = arith.mulf %175, %179 : vector<8x128xf32>
    %c0_66 = arith.constant 0 : index
    %c0_67 = arith.constant 0 : index
    %181 = vector.load %arg8[%c0_66, %c0_67] : memref<128x512xf32, #tpu.memory_space<vmem>>, vector<128x512xf32>
    %cst_68 = arith.constant dense<0.000000e+00> : vector<8x512xf32>
    %182 = tpu.matmul %180, %181, %cst_68 {dimension_numbers = #tpu.dot_dimension_numbers<[1], [0], [0], [1], [0, 0, 1, 1], [], []>} : vector<8x128xf32>, vector<128x512xf32>, vector<8x512xf32> -> vector<8x512xf32>
    %c0_69 = arith.constant 0 : index
    %c0_70 = arith.constant 0 : index
    %183 = vector.load %arg9[%c0_69, %c0_70] : memref<128x512xf32, #tpu.memory_space<vmem>>, vector<128x512xf32>
    %cst_71 = arith.constant dense<0.000000e+00> : vector<8x512xf32>
    %184 = tpu.matmul %148, %183, %cst_71 {dimension_numbers = #tpu.dot_dimension_numbers<[1], [0], [0], [1], [0, 0, 1, 1], [], []>} : vector<8x128xf32>, vector<128x512xf32>, vector<8x512xf32> -> vector<8x512xf32>
    %185 = arith.addf %182, %184 : vector<8x512xf32>
    %c0_72 = arith.constant 0 : index
    %c0_73 = arith.constant 0 : index
    %186 = vector.load %arg10[%c0_72, %c0_73] : memref<1x512xf32, #tpu.memory_space<vmem>>, vector<1x512xf32>
    %187 = vector.broadcast %186 : vector<1x512xf32> to vector<8x512xf32>
    %188 = arith.addf %185, %187 : vector<8x512xf32>
    %189 = vector.extract_strided_slice %188 {offsets = [0, 0], sizes = [8, 128], strides = [1, 1]} : vector<8x512xf32> to vector<8x128xf32>
    %190 = arith.negf %189 : vector<8x128xf32>
    %191 = math.exp %190 : vector<8x128xf32>
    %cst_74 = arith.constant 1.000000e+00 : f32
    %192 = vector.broadcast %cst_74 : f32 to vector<8x128xf32>
    %193 = arith.addf %192, %191 : vector<8x128xf32>
    %194 = arith.divf %192, %193 : vector<8x128xf32>
    %195 = vector.extract_strided_slice %188 {offsets = [0, 128], sizes = [8, 128], strides = [1, 1]} : vector<8x512xf32> to vector<8x128xf32>
    %196 = arith.negf %195 : vector<8x128xf32>
    %197 = math.exp %196 : vector<8x128xf32>
    %cst_75 = arith.constant 1.000000e+00 : f32
    %198 = vector.broadcast %cst_75 : f32 to vector<8x128xf32>
    %199 = arith.addf %198, %197 : vector<8x128xf32>
    %200 = arith.divf %198, %199 : vector<8x128xf32>
    %201 = vector.extract_strided_slice %188 {offsets = [0, 256], sizes = [8, 128], strides = [1, 1]} : vector<8x512xf32> to vector<8x128xf32>
    %202 = math.tanh %201 : vector<8x128xf32>
    %203 = vector.extract_strided_slice %188 {offsets = [0, 384], sizes = [8, 128], strides = [1, 1]} : vector<8x512xf32> to vector<8x128xf32>
    %204 = arith.negf %203 : vector<8x128xf32>
    %205 = math.exp %204 : vector<8x128xf32>
    %cst_76 = arith.constant 1.000000e+00 : f32
    %206 = vector.broadcast %cst_76 : f32 to vector<8x128xf32>
    %207 = arith.addf %206, %205 : vector<8x128xf32>
    %208 = arith.divf %206, %207 : vector<8x128xf32>
    %209 = arith.mulf %200, %146 : vector<8x128xf32>
    %210 = arith.mulf %194, %202 : vector<8x128xf32>
    %211 = arith.addf %209, %210 : vector<8x128xf32>
    %212 = math.tanh %211 : vector<8x128xf32>
    %213 = arith.mulf %208, %212 : vector<8x128xf32>
    %c3_i32 = arith.constant 3 : i32
    %c8_i32_77 = arith.constant 8 : i32
    %214 = arith.muli %c3_i32, %c8_i32_77 : i32
    %215 = tpu.assume_multiple %214, 8 : i32
    %216 = arith.index_cast %215 : i32 to index
    %c0_78 = arith.constant 0 : index
    %217 = vector.load %arg18[%216, %c0_78] : memref<64x512xf32, #tpu.memory_space<vmem>>, vector<8x512xf32>
    %c0_79 = arith.constant 0 : index
    %c0_80 = arith.constant 0 : index
    %218 = vector.load %arg7[%c0_79, %c0_80] : memref<128x512xf32, #tpu.memory_space<vmem>>, vector<128x512xf32>
    %cst_81 = arith.constant dense<0.000000e+00> : vector<8x512xf32>
    %219 = tpu.matmul %180, %218, %cst_81 {dimension_numbers = #tpu.dot_dimension_numbers<[1], [0], [0], [1], [0, 0, 1, 1], [], []>} : vector<8x128xf32>, vector<128x512xf32>, vector<8x512xf32> -> vector<8x512xf32>
    %220 = arith.addf %217, %219 : vector<8x512xf32>
    %221 = vector.extract_strided_slice %220 {offsets = [0, 0], sizes = [8, 128], strides = [1, 1]} : vector<8x512xf32> to vector<8x128xf32>
    %222 = arith.negf %221 : vector<8x128xf32>
    %223 = math.exp %222 : vector<8x128xf32>
    %cst_82 = arith.constant 1.000000e+00 : f32
    %224 = vector.broadcast %cst_82 : f32 to vector<8x128xf32>
    %225 = arith.addf %224, %223 : vector<8x128xf32>
    %226 = arith.divf %224, %225 : vector<8x128xf32>
    %227 = vector.extract_strided_slice %220 {offsets = [0, 128], sizes = [8, 128], strides = [1, 1]} : vector<8x512xf32> to vector<8x128xf32>
    %228 = arith.negf %227 : vector<8x128xf32>
    %229 = math.exp %228 : vector<8x128xf32>
    %cst_83 = arith.constant 1.000000e+00 : f32
    %230 = vector.broadcast %cst_83 : f32 to vector<8x128xf32>
    %231 = arith.addf %230, %229 : vector<8x128xf32>
    %232 = arith.divf %230, %231 : vector<8x128xf32>
    %233 = vector.extract_strided_slice %220 {offsets = [0, 256], sizes = [8, 128], strides = [1, 1]} : vector<8x512xf32> to vector<8x128xf32>
    %234 = math.tanh %233 : vector<8x128xf32>
    %235 = vector.extract_strided_slice %220 {offsets = [0, 384], sizes = [8, 128], strides = [1, 1]} : vector<8x512xf32> to vector<8x128xf32>
    %236 = arith.negf %235 : vector<8x128xf32>
    %237 = math.exp %236 : vector<8x128xf32>
    %cst_84 = arith.constant 1.000000e+00 : f32
    %238 = vector.broadcast %cst_84 : f32 to vector<8x128xf32>
    %239 = arith.addf %238, %237 : vector<8x128xf32>
    %240 = arith.divf %238, %239 : vector<8x128xf32>
    %241 = arith.mulf %232, %178 : vector<8x128xf32>
    %242 = arith.mulf %226, %234 : vector<8x128xf32>
    %243 = arith.addf %241, %242 : vector<8x128xf32>
    %244 = math.tanh %243 : vector<8x128xf32>
    %245 = arith.mulf %240, %244 : vector<8x128xf32>
    %c0_85 = arith.constant 0 : index
    %c0_86 = arith.constant 0 : index
    %246 = vector.load %arg8[%c0_85, %c0_86] : memref<128x512xf32, #tpu.memory_space<vmem>>, vector<128x512xf32>
    %cst_87 = arith.constant dense<0.000000e+00> : vector<8x512xf32>
    %247 = tpu.matmul %245, %246, %cst_87 {dimension_numbers = #tpu.dot_dimension_numbers<[1], [0], [0], [1], [0, 0, 1, 1], [], []>} : vector<8x128xf32>, vector<128x512xf32>, vector<8x512xf32> -> vector<8x512xf32>
    %c0_88 = arith.constant 0 : index
    %c0_89 = arith.constant 0 : index
    %248 = vector.load %arg9[%c0_88, %c0_89] : memref<128x512xf32, #tpu.memory_space<vmem>>, vector<128x512xf32>
    %cst_90 = arith.constant dense<0.000000e+00> : vector<8x512xf32>
    %249 = tpu.matmul %213, %248, %cst_90 {dimension_numbers = #tpu.dot_dimension_numbers<[1], [0], [0], [1], [0, 0, 1, 1], [], []>} : vector<8x128xf32>, vector<128x512xf32>, vector<8x512xf32> -> vector<8x512xf32>
    %250 = arith.addf %247, %249 : vector<8x512xf32>
    %c0_91 = arith.constant 0 : index
    %c0_92 = arith.constant 0 : index
    %251 = vector.load %arg10[%c0_91, %c0_92] : memref<1x512xf32, #tpu.memory_space<vmem>>, vector<1x512xf32>
    %252 = vector.broadcast %251 : vector<1x512xf32> to vector<8x512xf32>
    %253 = arith.addf %250, %252 : vector<8x512xf32>
    %254 = vector.extract_strided_slice %253 {offsets = [0, 0], sizes = [8, 128], strides = [1, 1]} : vector<8x512xf32> to vector<8x128xf32>
    %255 = arith.negf %254 : vector<8x128xf32>
    %256 = math.exp %255 : vector<8x128xf32>
    %cst_93 = arith.constant 1.000000e+00 : f32
    %257 = vector.broadcast %cst_93 : f32 to vector<8x128xf32>
    %258 = arith.addf %257, %256 : vector<8x128xf32>
    %259 = arith.divf %257, %258 : vector<8x128xf32>
    %260 = vector.extract_strided_slice %253 {offsets = [0, 128], sizes = [8, 128], strides = [1, 1]} : vector<8x512xf32> to vector<8x128xf32>
    %261 = arith.negf %260 : vector<8x128xf32>
    %262 = math.exp %261 : vector<8x128xf32>
    %cst_94 = arith.constant 1.000000e+00 : f32
    %263 = vector.broadcast %cst_94 : f32 to vector<8x128xf32>
    %264 = arith.addf %263, %262 : vector<8x128xf32>
    %265 = arith.divf %263, %264 : vector<8x128xf32>
    %266 = vector.extract_strided_slice %253 {offsets = [0, 256], sizes = [8, 128], strides = [1, 1]} : vector<8x512xf32> to vector<8x128xf32>
    %267 = math.tanh %266 : vector<8x128xf32>
    %268 = vector.extract_strided_slice %253 {offsets = [0, 384], sizes = [8, 128], strides = [1, 1]} : vector<8x512xf32> to vector<8x128xf32>
    %269 = arith.negf %268 : vector<8x128xf32>
    %270 = math.exp %269 : vector<8x128xf32>
    %cst_95 = arith.constant 1.000000e+00 : f32
    %271 = vector.broadcast %cst_95 : f32 to vector<8x128xf32>
    %272 = arith.addf %271, %270 : vector<8x128xf32>
    %273 = arith.divf %271, %272 : vector<8x128xf32>
    %274 = arith.mulf %265, %211 : vector<8x128xf32>
    %275 = arith.mulf %259, %267 : vector<8x128xf32>
    %276 = arith.addf %274, %275 : vector<8x128xf32>
    %277 = math.tanh %276 : vector<8x128xf32>
    %278 = arith.mulf %273, %277 : vector<8x128xf32>
    %c4_i32 = arith.constant 4 : i32
    %c8_i32_96 = arith.constant 8 : i32
    %279 = arith.muli %c4_i32, %c8_i32_96 : i32
    %280 = tpu.assume_multiple %279, 8 : i32
    %281 = arith.index_cast %280 : i32 to index
    %c0_97 = arith.constant 0 : index
    %282 = vector.load %arg18[%281, %c0_97] : memref<64x512xf32, #tpu.memory_space<vmem>>, vector<8x512xf32>
    %c0_98 = arith.constant 0 : index
    %c0_99 = arith.constant 0 : index
    %283 = vector.load %arg7[%c0_98, %c0_99] : memref<128x512xf32, #tpu.memory_space<vmem>>, vector<128x512xf32>
    %cst_100 = arith.constant dense<0.000000e+00> : vector<8x512xf32>
    %284 = tpu.matmul %245, %283, %cst_100 {dimension_numbers = #tpu.dot_dimension_numbers<[1], [0], [0], [1], [0, 0, 1, 1], [], []>} : vector<8x128xf32>, vector<128x512xf32>, vector<8x512xf32> -> vector<8x512xf32>
    %285 = arith.addf %282, %284 : vector<8x512xf32>
    %286 = vector.extract_strided_slice %285 {offsets = [0, 0], sizes = [8, 128], strides = [1, 1]} : vector<8x512xf32> to vector<8x128xf32>
    %287 = arith.negf %286 : vector<8x128xf32>
    %288 = math.exp %287 : vector<8x128xf32>
    %cst_101 = arith.constant 1.000000e+00 : f32
    %289 = vector.broadcast %cst_101 : f32 to vector<8x128xf32>
    %290 = arith.addf %289, %288 : vector<8x128xf32>
    %291 = arith.divf %289, %290 : vector<8x128xf32>
    %292 = vector.extract_strided_slice %285 {offsets = [0, 128], sizes = [8, 128], strides = [1, 1]} : vector<8x512xf32> to vector<8x128xf32>
    %293 = arith.negf %292 : vector<8x128xf32>
    %294 = math.exp %293 : vector<8x128xf32>
    %cst_102 = arith.constant 1.000000e+00 : f32
    %295 = vector.broadcast %cst_102 : f32 to vector<8x128xf32>
    %296 = arith.addf %295, %294 : vector<8x128xf32>
    %297 = arith.divf %295, %296 : vector<8x128xf32>
    %298 = vector.extract_strided_slice %285 {offsets = [0, 256], sizes = [8, 128], strides = [1, 1]} : vector<8x512xf32> to vector<8x128xf32>
    %299 = math.tanh %298 : vector<8x128xf32>
    %300 = vector.extract_strided_slice %285 {offsets = [0, 384], sizes = [8, 128], strides = [1, 1]} : vector<8x512xf32> to vector<8x128xf32>
    %301 = arith.negf %300 : vector<8x128xf32>
    %302 = math.exp %301 : vector<8x128xf32>
    %cst_103 = arith.constant 1.000000e+00 : f32
    %303 = vector.broadcast %cst_103 : f32 to vector<8x128xf32>
    %304 = arith.addf %303, %302 : vector<8x128xf32>
    %305 = arith.divf %303, %304 : vector<8x128xf32>
    %306 = arith.mulf %297, %243 : vector<8x128xf32>
    %307 = arith.mulf %291, %299 : vector<8x128xf32>
    %308 = arith.addf %306, %307 : vector<8x128xf32>
    %309 = math.tanh %308 : vector<8x128xf32>
    %310 = arith.mulf %305, %309 : vector<8x128xf32>
    %c0_104 = arith.constant 0 : index
    %c0_105 = arith.constant 0 : index
    %311 = vector.load %arg8[%c0_104, %c0_105] : memref<128x512xf32, #tpu.memory_space<vmem>>, vector<128x512xf32>
    %cst_106 = arith.constant dense<0.000000e+00> : vector<8x512xf32>
    %312 = tpu.matmul %310, %311, %cst_106 {dimension_numbers = #tpu.dot_dimension_numbers<[1], [0], [0], [1], [0, 0, 1, 1], [], []>} : vector<8x128xf32>, vector<128x512xf32>, vector<8x512xf32> -> vector<8x512xf32>
    %c0_107 = arith.constant 0 : index
    %c0_108 = arith.constant 0 : index
    %313 = vector.load %arg9[%c0_107, %c0_108] : memref<128x512xf32, #tpu.memory_space<vmem>>, vector<128x512xf32>
    %cst_109 = arith.constant dense<0.000000e+00> : vector<8x512xf32>
    %314 = tpu.matmul %278, %313, %cst_109 {dimension_numbers = #tpu.dot_dimension_numbers<[1], [0], [0], [1], [0, 0, 1, 1], [], []>} : vector<8x128xf32>, vector<128x512xf32>, vector<8x512xf32> -> vector<8x512xf32>
    %315 = arith.addf %312, %314 : vector<8x512xf32>
    %c0_110 = arith.constant 0 : index
    %c0_111 = arith.constant 0 : index
    %316 = vector.load %arg10[%c0_110, %c0_111] : memref<1x512xf32, #tpu.memory_space<vmem>>, vector<1x512xf32>
    %317 = vector.broadcast %316 : vector<1x512xf32> to vector<8x512xf32>
    %318 = arith.addf %315, %317 : vector<8x512xf32>
    %319 = vector.extract_strided_slice %318 {offsets = [0, 0], sizes = [8, 128], strides = [1, 1]} : vector<8x512xf32> to vector<8x128xf32>
    %320 = arith.negf %319 : vector<8x128xf32>
    %321 = math.exp %320 : vector<8x128xf32>
    %cst_112 = arith.constant 1.000000e+00 : f32
    %322 = vector.broadcast %cst_112 : f32 to vector<8x128xf32>
    %323 = arith.addf %322, %321 : vector<8x128xf32>
    %324 = arith.divf %322, %323 : vector<8x128xf32>
    %325 = vector.extract_strided_slice %318 {offsets = [0, 128], sizes = [8, 128], strides = [1, 1]} : vector<8x512xf32> to vector<8x128xf32>
    %326 = arith.negf %325 : vector<8x128xf32>
    %327 = math.exp %326 : vector<8x128xf32>
    %cst_113 = arith.constant 1.000000e+00 : f32
    %328 = vector.broadcast %cst_113 : f32 to vector<8x128xf32>
    %329 = arith.addf %328, %327 : vector<8x128xf32>
    %330 = arith.divf %328, %329 : vector<8x128xf32>
    %331 = vector.extract_strided_slice %318 {offsets = [0, 256], sizes = [8, 128], strides = [1, 1]} : vector<8x512xf32> to vector<8x128xf32>
    %332 = math.tanh %331 : vector<8x128xf32>
    %333 = vector.extract_strided_slice %318 {offsets = [0, 384], sizes = [8, 128], strides = [1, 1]} : vector<8x512xf32> to vector<8x128xf32>
    %334 = arith.negf %333 : vector<8x128xf32>
    %335 = math.exp %334 : vector<8x128xf32>
    %cst_114 = arith.constant 1.000000e+00 : f32
    %336 = vector.broadcast %cst_114 : f32 to vector<8x128xf32>
    %337 = arith.addf %336, %335 : vector<8x128xf32>
    %338 = arith.divf %336, %337 : vector<8x128xf32>
    %339 = arith.mulf %330, %276 : vector<8x128xf32>
    %340 = arith.mulf %324, %332 : vector<8x128xf32>
    %341 = arith.addf %339, %340 : vector<8x128xf32>
    %342 = math.tanh %341 : vector<8x128xf32>
    %343 = arith.mulf %338, %342 : vector<8x128xf32>
    %c5_i32 = arith.constant 5 : i32
    %c8_i32_115 = arith.constant 8 : i32
    %344 = arith.muli %c5_i32, %c8_i32_115 : i32
    %345 = tpu.assume_multiple %344, 8 : i32
    %346 = arith.index_cast %345 : i32 to index
    %c0_116 = arith.constant 0 : index
    %347 = vector.load %arg18[%346, %c0_116] : memref<64x512xf32, #tpu.memory_space<vmem>>, vector<8x512xf32>
    %c0_117 = arith.constant 0 : index
    %c0_118 = arith.constant 0 : index
    %348 = vector.load %arg7[%c0_117, %c0_118] : memref<128x512xf32, #tpu.memory_space<vmem>>, vector<128x512xf32>
    %cst_119 = arith.constant dense<0.000000e+00> : vector<8x512xf32>
    %349 = tpu.matmul %310, %348, %cst_119 {dimension_numbers = #tpu.dot_dimension_numbers<[1], [0], [0], [1], [0, 0, 1, 1], [], []>} : vector<8x128xf32>, vector<128x512xf32>, vector<8x512xf32> -> vector<8x512xf32>
    %350 = arith.addf %347, %349 : vector<8x512xf32>
    %351 = vector.extract_strided_slice %350 {offsets = [0, 0], sizes = [8, 128], strides = [1, 1]} : vector<8x512xf32> to vector<8x128xf32>
    %352 = arith.negf %351 : vector<8x128xf32>
    %353 = math.exp %352 : vector<8x128xf32>
    %cst_120 = arith.constant 1.000000e+00 : f32
    %354 = vector.broadcast %cst_120 : f32 to vector<8x128xf32>
    %355 = arith.addf %354, %353 : vector<8x128xf32>
    %356 = arith.divf %354, %355 : vector<8x128xf32>
    %357 = vector.extract_strided_slice %350 {offsets = [0, 128], sizes = [8, 128], strides = [1, 1]} : vector<8x512xf32> to vector<8x128xf32>
    %358 = arith.negf %357 : vector<8x128xf32>
    %359 = math.exp %358 : vector<8x128xf32>
    %cst_121 = arith.constant 1.000000e+00 : f32
    %360 = vector.broadcast %cst_121 : f32 to vector<8x128xf32>
    %361 = arith.addf %360, %359 : vector<8x128xf32>
    %362 = arith.divf %360, %361 : vector<8x128xf32>
    %363 = vector.extract_strided_slice %350 {offsets = [0, 256], sizes = [8, 128], strides = [1, 1]} : vector<8x512xf32> to vector<8x128xf32>
    %364 = math.tanh %363 : vector<8x128xf32>
    %365 = vector.extract_strided_slice %350 {offsets = [0, 384], sizes = [8, 128], strides = [1, 1]} : vector<8x512xf32> to vector<8x128xf32>
    %366 = arith.negf %365 : vector<8x128xf32>
    %367 = math.exp %366 : vector<8x128xf32>
    %cst_122 = arith.constant 1.000000e+00 : f32
    %368 = vector.broadcast %cst_122 : f32 to vector<8x128xf32>
    %369 = arith.addf %368, %367 : vector<8x128xf32>
    %370 = arith.divf %368, %369 : vector<8x128xf32>
    %371 = arith.mulf %362, %308 : vector<8x128xf32>
    %372 = arith.mulf %356, %364 : vector<8x128xf32>
    %373 = arith.addf %371, %372 : vector<8x128xf32>
    %374 = math.tanh %373 : vector<8x128xf32>
    %375 = arith.mulf %370, %374 : vector<8x128xf32>
    %c0_123 = arith.constant 0 : index
    %c0_124 = arith.constant 0 : index
    %376 = vector.load %arg8[%c0_123, %c0_124] : memref<128x512xf32, #tpu.memory_space<vmem>>, vector<128x512xf32>
    %cst_125 = arith.constant dense<0.000000e+00> : vector<8x512xf32>
    %377 = tpu.matmul %375, %376, %cst_125 {dimension_numbers = #tpu.dot_dimension_numbers<[1], [0], [0], [1], [0, 0, 1, 1], [], []>} : vector<8x128xf32>, vector<128x512xf32>, vector<8x512xf32> -> vector<8x512xf32>
    %c0_126 = arith.constant 0 : index
    %c0_127 = arith.constant 0 : index
    %378 = vector.load %arg9[%c0_126, %c0_127] : memref<128x512xf32, #tpu.memory_space<vmem>>, vector<128x512xf32>
    %cst_128 = arith.constant dense<0.000000e+00> : vector<8x512xf32>
    %379 = tpu.matmul %343, %378, %cst_128 {dimension_numbers = #tpu.dot_dimension_numbers<[1], [0], [0], [1], [0, 0, 1, 1], [], []>} : vector<8x128xf32>, vector<128x512xf32>, vector<8x512xf32> -> vector<8x512xf32>
    %380 = arith.addf %377, %379 : vector<8x512xf32>
    %c0_129 = arith.constant 0 : index
    %c0_130 = arith.constant 0 : index
    %381 = vector.load %arg10[%c0_129, %c0_130] : memref<1x512xf32, #tpu.memory_space<vmem>>, vector<1x512xf32>
    %382 = vector.broadcast %381 : vector<1x512xf32> to vector<8x512xf32>
    %383 = arith.addf %380, %382 : vector<8x512xf32>
    %384 = vector.extract_strided_slice %383 {offsets = [0, 0], sizes = [8, 128], strides = [1, 1]} : vector<8x512xf32> to vector<8x128xf32>
    %385 = arith.negf %384 : vector<8x128xf32>
    %386 = math.exp %385 : vector<8x128xf32>
    %cst_131 = arith.constant 1.000000e+00 : f32
    %387 = vector.broadcast %cst_131 : f32 to vector<8x128xf32>
    %388 = arith.addf %387, %386 : vector<8x128xf32>
    %389 = arith.divf %387, %388 : vector<8x128xf32>
    %390 = vector.extract_strided_slice %383 {offsets = [0, 128], sizes = [8, 128], strides = [1, 1]} : vector<8x512xf32> to vector<8x128xf32>
    %391 = arith.negf %390 : vector<8x128xf32>
    %392 = math.exp %391 : vector<8x128xf32>
    %cst_132 = arith.constant 1.000000e+00 : f32
    %393 = vector.broadcast %cst_132 : f32 to vector<8x128xf32>
    %394 = arith.addf %393, %392 : vector<8x128xf32>
    %395 = arith.divf %393, %394 : vector<8x128xf32>
    %396 = vector.extract_strided_slice %383 {offsets = [0, 256], sizes = [8, 128], strides = [1, 1]} : vector<8x512xf32> to vector<8x128xf32>
    %397 = math.tanh %396 : vector<8x128xf32>
    %398 = vector.extract_strided_slice %383 {offsets = [0, 384], sizes = [8, 128], strides = [1, 1]} : vector<8x512xf32> to vector<8x128xf32>
    %399 = arith.negf %398 : vector<8x128xf32>
    %400 = math.exp %399 : vector<8x128xf32>
    %cst_133 = arith.constant 1.000000e+00 : f32
    %401 = vector.broadcast %cst_133 : f32 to vector<8x128xf32>
    %402 = arith.addf %401, %400 : vector<8x128xf32>
    %403 = arith.divf %401, %402 : vector<8x128xf32>
    %404 = arith.mulf %395, %341 : vector<8x128xf32>
    %405 = arith.mulf %389, %397 : vector<8x128xf32>
    %406 = arith.addf %404, %405 : vector<8x128xf32>
    %407 = math.tanh %406 : vector<8x128xf32>
    %408 = arith.mulf %403, %407 : vector<8x128xf32>
    %c6_i32 = arith.constant 6 : i32
    %c8_i32_134 = arith.constant 8 : i32
    %409 = arith.muli %c6_i32, %c8_i32_134 : i32
    %410 = tpu.assume_multiple %409, 8 : i32
    %411 = arith.index_cast %410 : i32 to index
    %c0_135 = arith.constant 0 : index
    %412 = vector.load %arg18[%411, %c0_135] : memref<64x512xf32, #tpu.memory_space<vmem>>, vector<8x512xf32>
    %c0_136 = arith.constant 0 : index
    %c0_137 = arith.constant 0 : index
    %413 = vector.load %arg7[%c0_136, %c0_137] : memref<128x512xf32, #tpu.memory_space<vmem>>, vector<128x512xf32>
    %cst_138 = arith.constant dense<0.000000e+00> : vector<8x512xf32>
    %414 = tpu.matmul %375, %413, %cst_138 {dimension_numbers = #tpu.dot_dimension_numbers<[1], [0], [0], [1], [0, 0, 1, 1], [], []>} : vector<8x128xf32>, vector<128x512xf32>, vector<8x512xf32> -> vector<8x512xf32>
    %415 = arith.addf %412, %414 : vector<8x512xf32>
    %416 = vector.extract_strided_slice %415 {offsets = [0, 0], sizes = [8, 128], strides = [1, 1]} : vector<8x512xf32> to vector<8x128xf32>
    %417 = arith.negf %416 : vector<8x128xf32>
    %418 = math.exp %417 : vector<8x128xf32>
    %cst_139 = arith.constant 1.000000e+00 : f32
    %419 = vector.broadcast %cst_139 : f32 to vector<8x128xf32>
    %420 = arith.addf %419, %418 : vector<8x128xf32>
    %421 = arith.divf %419, %420 : vector<8x128xf32>
    %422 = vector.extract_strided_slice %415 {offsets = [0, 128], sizes = [8, 128], strides = [1, 1]} : vector<8x512xf32> to vector<8x128xf32>
    %423 = arith.negf %422 : vector<8x128xf32>
    %424 = math.exp %423 : vector<8x128xf32>
    %cst_140 = arith.constant 1.000000e+00 : f32
    %425 = vector.broadcast %cst_140 : f32 to vector<8x128xf32>
    %426 = arith.addf %425, %424 : vector<8x128xf32>
    %427 = arith.divf %425, %426 : vector<8x128xf32>
    %428 = vector.extract_strided_slice %415 {offsets = [0, 256], sizes = [8, 128], strides = [1, 1]} : vector<8x512xf32> to vector<8x128xf32>
    %429 = math.tanh %428 : vector<8x128xf32>
    %430 = vector.extract_strided_slice %415 {offsets = [0, 384], sizes = [8, 128], strides = [1, 1]} : vector<8x512xf32> to vector<8x128xf32>
    %431 = arith.negf %430 : vector<8x128xf32>
    %432 = math.exp %431 : vector<8x128xf32>
    %cst_141 = arith.constant 1.000000e+00 : f32
    %433 = vector.broadcast %cst_141 : f32 to vector<8x128xf32>
    %434 = arith.addf %433, %432 : vector<8x128xf32>
    %435 = arith.divf %433, %434 : vector<8x128xf32>
    %436 = arith.mulf %427, %373 : vector<8x128xf32>
    %437 = arith.mulf %421, %429 : vector<8x128xf32>
    %438 = arith.addf %436, %437 : vector<8x128xf32>
    %439 = math.tanh %438 : vector<8x128xf32>
    %440 = arith.mulf %435, %439 : vector<8x128xf32>
    %c0_142 = arith.constant 0 : index
    %c0_143 = arith.constant 0 : index
    %441 = vector.load %arg8[%c0_142, %c0_143] : memref<128x512xf32, #tpu.memory_space<vmem>>, vector<128x512xf32>
    %cst_144 = arith.constant dense<0.000000e+00> : vector<8x512xf32>
    %442 = tpu.matmul %440, %441, %cst_144 {dimension_numbers = #tpu.dot_dimension_numbers<[1], [0], [0], [1], [0, 0, 1, 1], [], []>} : vector<8x128xf32>, vector<128x512xf32>, vector<8x512xf32> -> vector<8x512xf32>
    %c0_145 = arith.constant 0 : index
    %c0_146 = arith.constant 0 : index
    %443 = vector.load %arg9[%c0_145, %c0_146] : memref<128x512xf32, #tpu.memory_space<vmem>>, vector<128x512xf32>
    %cst_147 = arith.constant dense<0.000000e+00> : vector<8x512xf32>
    %444 = tpu.matmul %408, %443, %cst_147 {dimension_numbers = #tpu.dot_dimension_numbers<[1], [0], [0], [1], [0, 0, 1, 1], [], []>} : vector<8x128xf32>, vector<128x512xf32>, vector<8x512xf32> -> vector<8x512xf32>
    %445 = arith.addf %442, %444 : vector<8x512xf32>
    %c0_148 = arith.constant 0 : index
    %c0_149 = arith.constant 0 : index
    %446 = vector.load %arg10[%c0_148, %c0_149] : memref<1x512xf32, #tpu.memory_space<vmem>>, vector<1x512xf32>
    %447 = vector.broadcast %446 : vector<1x512xf32> to vector<8x512xf32>
    %448 = arith.addf %445, %447 : vector<8x512xf32>
    %449 = vector.extract_strided_slice %448 {offsets = [0, 0], sizes = [8, 128], strides = [1, 1]} : vector<8x512xf32> to vector<8x128xf32>
    %450 = arith.negf %449 : vector<8x128xf32>
    %451 = math.exp %450 : vector<8x128xf32>
    %cst_150 = arith.constant 1.000000e+00 : f32
    %452 = vector.broadcast %cst_150 : f32 to vector<8x128xf32>
    %453 = arith.addf %452, %451 : vector<8x128xf32>
    %454 = arith.divf %452, %453 : vector<8x128xf32>
    %455 = vector.extract_strided_slice %448 {offsets = [0, 128], sizes = [8, 128], strides = [1, 1]} : vector<8x512xf32> to vector<8x128xf32>
    %456 = arith.negf %455 : vector<8x128xf32>
    %457 = math.exp %456 : vector<8x128xf32>
    %cst_151 = arith.constant 1.000000e+00 : f32
    %458 = vector.broadcast %cst_151 : f32 to vector<8x128xf32>
    %459 = arith.addf %458, %457 : vector<8x128xf32>
    %460 = arith.divf %458, %459 : vector<8x128xf32>
    %461 = vector.extract_strided_slice %448 {offsets = [0, 256], sizes = [8, 128], strides = [1, 1]} : vector<8x512xf32> to vector<8x128xf32>
    %462 = math.tanh %461 : vector<8x128xf32>
    %463 = vector.extract_strided_slice %448 {offsets = [0, 384], sizes = [8, 128], strides = [1, 1]} : vector<8x512xf32> to vector<8x128xf32>
    %464 = arith.negf %463 : vector<8x128xf32>
    %465 = math.exp %464 : vector<8x128xf32>
    %cst_152 = arith.constant 1.000000e+00 : f32
    %466 = vector.broadcast %cst_152 : f32 to vector<8x128xf32>
    %467 = arith.addf %466, %465 : vector<8x128xf32>
    %468 = arith.divf %466, %467 : vector<8x128xf32>
    %469 = arith.mulf %460, %406 : vector<8x128xf32>
    %470 = arith.mulf %454, %462 : vector<8x128xf32>
    %471 = arith.addf %469, %470 : vector<8x128xf32>
    %472 = math.tanh %471 : vector<8x128xf32>
    %473 = arith.mulf %468, %472 : vector<8x128xf32>
    %c7_i32 = arith.constant 7 : i32
    %c8_i32_153 = arith.constant 8 : i32
    %474 = arith.muli %c7_i32, %c8_i32_153 : i32
    %475 = tpu.assume_multiple %474, 8 : i32
    %476 = arith.index_cast %475 : i32 to index
    %c0_154 = arith.constant 0 : index
    %477 = vector.load %arg18[%476, %c0_154] : memref<64x512xf32, #tpu.memory_space<vmem>>, vector<8x512xf32>
    %c0_155 = arith.constant 0 : index
    %c0_156 = arith.constant 0 : index
    %478 = vector.load %arg7[%c0_155, %c0_156] : memref<128x512xf32, #tpu.memory_space<vmem>>, vector<128x512xf32>
    %cst_157 = arith.constant dense<0.000000e+00> : vector<8x512xf32>
    %479 = tpu.matmul %440, %478, %cst_157 {dimension_numbers = #tpu.dot_dimension_numbers<[1], [0], [0], [1], [0, 0, 1, 1], [], []>} : vector<8x128xf32>, vector<128x512xf32>, vector<8x512xf32> -> vector<8x512xf32>
    %480 = arith.addf %477, %479 : vector<8x512xf32>
    %481 = vector.extract_strided_slice %480 {offsets = [0, 0], sizes = [8, 128], strides = [1, 1]} : vector<8x512xf32> to vector<8x128xf32>
    %482 = arith.negf %481 : vector<8x128xf32>
    %483 = math.exp %482 : vector<8x128xf32>
    %cst_158 = arith.constant 1.000000e+00 : f32
    %484 = vector.broadcast %cst_158 : f32 to vector<8x128xf32>
    %485 = arith.addf %484, %483 : vector<8x128xf32>
    %486 = arith.divf %484, %485 : vector<8x128xf32>
    %487 = vector.extract_strided_slice %480 {offsets = [0, 128], sizes = [8, 128], strides = [1, 1]} : vector<8x512xf32> to vector<8x128xf32>
    %488 = arith.negf %487 : vector<8x128xf32>
    %489 = math.exp %488 : vector<8x128xf32>
    %cst_159 = arith.constant 1.000000e+00 : f32
    %490 = vector.broadcast %cst_159 : f32 to vector<8x128xf32>
    %491 = arith.addf %490, %489 : vector<8x128xf32>
    %492 = arith.divf %490, %491 : vector<8x128xf32>
    %493 = vector.extract_strided_slice %480 {offsets = [0, 256], sizes = [8, 128], strides = [1, 1]} : vector<8x512xf32> to vector<8x128xf32>
    %494 = math.tanh %493 : vector<8x128xf32>
    %495 = vector.extract_strided_slice %480 {offsets = [0, 384], sizes = [8, 128], strides = [1, 1]} : vector<8x512xf32> to vector<8x128xf32>
    %496 = arith.negf %495 : vector<8x128xf32>
    %497 = math.exp %496 : vector<8x128xf32>
    %cst_160 = arith.constant 1.000000e+00 : f32
    %498 = vector.broadcast %cst_160 : f32 to vector<8x128xf32>
    %499 = arith.addf %498, %497 : vector<8x128xf32>
    %500 = arith.divf %498, %499 : vector<8x128xf32>
    %501 = arith.mulf %492, %438 : vector<8x128xf32>
    %502 = arith.mulf %486, %494 : vector<8x128xf32>
    %503 = arith.addf %501, %502 : vector<8x128xf32>
    %504 = math.tanh %503 : vector<8x128xf32>
    %505 = arith.mulf %500, %504 : vector<8x128xf32>
    %c0_161 = arith.constant 0 : index
    %c0_162 = arith.constant 0 : index
    %506 = vector.load %arg8[%c0_161, %c0_162] : memref<128x512xf32, #tpu.memory_space<vmem>>, vector<128x512xf32>
    %cst_163 = arith.constant dense<0.000000e+00> : vector<8x512xf32>
    %507 = tpu.matmul %505, %506, %cst_163 {dimension_numbers = #tpu.dot_dimension_numbers<[1], [0], [0], [1], [0, 0, 1, 1], [], []>} : vector<8x128xf32>, vector<128x512xf32>, vector<8x512xf32> -> vector<8x512xf32>
    %c0_164 = arith.constant 0 : index
    %c0_165 = arith.constant 0 : index
    %508 = vector.load %arg9[%c0_164, %c0_165] : memref<128x512xf32, #tpu.memory_space<vmem>>, vector<128x512xf32>
    %cst_166 = arith.constant dense<0.000000e+00> : vector<8x512xf32>
    %509 = tpu.matmul %473, %508, %cst_166 {dimension_numbers = #tpu.dot_dimension_numbers<[1], [0], [0], [1], [0, 0, 1, 1], [], []>} : vector<8x128xf32>, vector<128x512xf32>, vector<8x512xf32> -> vector<8x512xf32>
    %510 = arith.addf %507, %509 : vector<8x512xf32>
    %c0_167 = arith.constant 0 : index
    %c0_168 = arith.constant 0 : index
    %511 = vector.load %arg10[%c0_167, %c0_168] : memref<1x512xf32, #tpu.memory_space<vmem>>, vector<1x512xf32>
    %512 = vector.broadcast %511 : vector<1x512xf32> to vector<8x512xf32>
    %513 = arith.addf %510, %512 : vector<8x512xf32>
    %514 = vector.extract_strided_slice %513 {offsets = [0, 0], sizes = [8, 128], strides = [1, 1]} : vector<8x512xf32> to vector<8x128xf32>
    %515 = arith.negf %514 : vector<8x128xf32>
    %516 = math.exp %515 : vector<8x128xf32>
    %cst_169 = arith.constant 1.000000e+00 : f32
    %517 = vector.broadcast %cst_169 : f32 to vector<8x128xf32>
    %518 = arith.addf %517, %516 : vector<8x128xf32>
    %519 = arith.divf %517, %518 : vector<8x128xf32>
    %520 = vector.extract_strided_slice %513 {offsets = [0, 128], sizes = [8, 128], strides = [1, 1]} : vector<8x512xf32> to vector<8x128xf32>
    %521 = arith.negf %520 : vector<8x128xf32>
    %522 = math.exp %521 : vector<8x128xf32>
    %cst_170 = arith.constant 1.000000e+00 : f32
    %523 = vector.broadcast %cst_170 : f32 to vector<8x128xf32>
    %524 = arith.addf %523, %522 : vector<8x128xf32>
    %525 = arith.divf %523, %524 : vector<8x128xf32>
    %526 = vector.extract_strided_slice %513 {offsets = [0, 256], sizes = [8, 128], strides = [1, 1]} : vector<8x512xf32> to vector<8x128xf32>
    %527 = math.tanh %526 : vector<8x128xf32>
    %528 = vector.extract_strided_slice %513 {offsets = [0, 384], sizes = [8, 128], strides = [1, 1]} : vector<8x512xf32> to vector<8x128xf32>
    %529 = arith.negf %528 : vector<8x128xf32>
    %530 = math.exp %529 : vector<8x128xf32>
    %cst_171 = arith.constant 1.000000e+00 : f32
    %531 = vector.broadcast %cst_171 : f32 to vector<8x128xf32>
    %532 = arith.addf %531, %530 : vector<8x128xf32>
    %533 = arith.divf %531, %532 : vector<8x128xf32>
    %534 = arith.mulf %525, %471 : vector<8x128xf32>
    %535 = arith.mulf %519, %527 : vector<8x128xf32>
    %536 = arith.addf %534, %535 : vector<8x128xf32>
    %537 = math.tanh %536 : vector<8x128xf32>
    %538 = arith.mulf %533, %537 : vector<8x128xf32>
    %c8_i32_172 = arith.constant 8 : i32
    %c0_173 = arith.constant 0 : index
    %c0_174 = arith.constant 0 : index
    %c0_175 = arith.constant 0 : index
    %539 = vector.load %arg16[%c0_173, %c0_174, %c0_175] : memref<2x8x128xf32, #tpu.memory_space<vmem>>, vector<1x8x128xf32>
    %540 = vector.shape_cast %539 : vector<1x8x128xf32> to vector<8x128xf32>
    %541 = vector.shape_cast %505 : vector<8x128xf32> to vector<1x8x128xf32>
    tpu.vector_store %arg16[%c0_173, %c0_174, %c0_175], %541 {strides = array<i32>} : memref<2x8x128xf32, #tpu.memory_space<vmem>>, vector<1x8x128xf32>,
    %c0_176 = arith.constant 0 : index
    %c0_177 = arith.constant 0 : index
    %c0_178 = arith.constant 0 : index
    %542 = vector.load %arg17[%c0_176, %c0_177, %c0_178] : memref<2x8x128xf32, #tpu.memory_space<vmem>>, vector<1x8x128xf32>
    %543 = vector.shape_cast %542 : vector<1x8x128xf32> to vector<8x128xf32>
    %544 = vector.shape_cast %503 : vector<8x128xf32> to vector<1x8x128xf32>
    tpu.vector_store %arg17[%c0_176, %c0_177, %c0_178], %544 {strides = array<i32>} : memref<2x8x128xf32, #tpu.memory_space<vmem>>, vector<1x8x128xf32>,
    %c1_179 = arith.constant 1 : index
    %c0_180 = arith.constant 0 : index
    %c0_181 = arith.constant 0 : index
    %545 = vector.load %arg16[%c1_179, %c0_180, %c0_181] : memref<2x8x128xf32, #tpu.memory_space<vmem>>, vector<1x8x128xf32>
    %546 = vector.shape_cast %545 : vector<1x8x128xf32> to vector<8x128xf32>
    %547 = vector.shape_cast %538 : vector<8x128xf32> to vector<1x8x128xf32>
    tpu.vector_store %arg16[%c1_179, %c0_180, %c0_181], %547 {strides = array<i32>} : memref<2x8x128xf32, #tpu.memory_space<vmem>>, vector<1x8x128xf32>,
    %c1_182 = arith.constant 1 : index
    %c0_183 = arith.constant 0 : index
    %c0_184 = arith.constant 0 : index
    %548 = vector.load %arg17[%c1_182, %c0_183, %c0_184] : memref<2x8x128xf32, #tpu.memory_space<vmem>>, vector<1x8x128xf32>
    %549 = vector.shape_cast %548 : vector<1x8x128xf32> to vector<8x128xf32>
    %550 = vector.shape_cast %536 : vector<8x128xf32> to vector<1x8x128xf32>
    tpu.vector_store %arg17[%c1_182, %c0_183, %c0_184], %550 {strides = array<i32>} : memref<2x8x128xf32, #tpu.memory_space<vmem>>, vector<1x8x128xf32>,
    %c0_i32_185 = arith.constant 0 : i32
    %551 = arith.cmpi eq, %arg1, %c0_i32_185 : i32
    %552 = arith.extui %551 : i1 to i32
    %c0_i32_186 = arith.constant 0 : i32
    %553 = arith.cmpi ne, %552, %c0_i32_186 : i32
    scf.if %553 {
      %c0_187 = arith.constant 0 : index
      %c0_188 = arith.constant 0 : index
      %c0_189 = arith.constant 0 : index
      %554 = vector.load %arg14[%c0_187, %c0_188, %c0_189] : memref<2x8x128xf32, #tpu.memory_space<vmem>>, vector<1x8x128xf32>
      %555 = vector.shape_cast %554 : vector<1x8x128xf32> to vector<8x128xf32>
      %556 = vector.shape_cast %505 : vector<8x128xf32> to vector<1x8x128xf32>
      tpu.vector_store %arg14[%c0_187, %c0_188, %c0_189], %556 {strides = array<i32>} : memref<2x8x128xf32, #tpu.memory_space<vmem>>, vector<1x8x128xf32>,
      %c1_190 = arith.constant 1 : index
      %c0_191 = arith.constant 0 : index
      %c0_192 = arith.constant 0 : index
      %557 = vector.load %arg14[%c1_190, %c0_191, %c0_192] : memref<2x8x128xf32, #tpu.memory_space<vmem>>, vector<1x8x128xf32>
      %558 = vector.shape_cast %557 : vector<1x8x128xf32> to vector<8x128xf32>
      %559 = vector.shape_cast %538 : vector<8x128xf32> to vector<1x8x128xf32>
      tpu.vector_store %arg14[%c1_190, %c0_191, %c0_192], %559 {strides = array<i32>} : memref<2x8x128xf32, #tpu.memory_space<vmem>>, vector<1x8x128xf32>,
      %c0_193 = arith.constant 0 : index
      %c0_194 = arith.constant 0 : index
      %c0_195 = arith.constant 0 : index
      %560 = vector.load %arg15[%c0_193, %c0_194, %c0_195] : memref<2x8x128xf32, #tpu.memory_space<vmem>>, vector<1x8x128xf32>
      %561 = vector.shape_cast %560 : vector<1x8x128xf32> to vector<8x128xf32>
      %562 = vector.shape_cast %503 : vector<8x128xf32> to vector<1x8x128xf32>
      tpu.vector_store %arg15[%c0_193, %c0_194, %c0_195], %562 {strides = array<i32>} : memref<2x8x128xf32, #tpu.memory_space<vmem>>, vector<1x8x128xf32>,
      %c1_196 = arith.constant 1 : index
      %c0_197 = arith.constant 0 : index
      %c0_198 = arith.constant 0 : index
      %563 = vector.load %arg15[%c1_196, %c0_197, %c0_198] : memref<2x8x128xf32, #tpu.memory_space<vmem>>, vector<1x8x128xf32>
      %564 = vector.shape_cast %563 : vector<1x8x128xf32> to vector<8x128xf32>
      %565 = vector.shape_cast %536 : vector<8x128xf32> to vector<1x8x128xf32>
      tpu.vector_store %arg15[%c1_196, %c0_197, %c0_198], %565 {strides = array<i32>} : memref<2x8x128xf32, #tpu.memory_space<vmem>>, vector<1x8x128xf32>,
      %c0_199 = arith.constant 0 : index
      %c0_200 = arith.constant 0 : index
      %566 = vector.load %arg11[%c0_199, %c0_200] : memref<128x1xf32, #tpu.memory_space<vmem>>, vector<128x1xf32>
      %cst_201 = arith.constant dense<0.000000e+00> : vector<8x1xf32>
      %567 = tpu.matmul %538, %566, %cst_201 {dimension_numbers = #tpu.dot_dimension_numbers<[1], [0], [0], [1], [0, 0, 1, 1], [], []>} : vector<8x128xf32>, vector<128x1xf32>, vector<8x1xf32> -> vector<8x1xf32>
      %c0_202 = arith.constant 0 : index
      %c0_203 = arith.constant 0 : index
      %568 = vector.load %arg12[%c0_202, %c0_203] : memref<1x1xf32, #tpu.memory_space<vmem>>, vector<1x1xf32>
      %569 = vector.broadcast %568 : vector<1x1xf32> to vector<8x1xf32>
      %570 = arith.addf %567, %569 : vector<8x1xf32>
      %571 = arith.negf %570 : vector<8x1xf32>
      %572 = math.exp %571 : vector<8x1xf32>
      %cst_204 = arith.constant 1.000000e+00 : f32
      %573 = vector.broadcast %cst_204 : f32 to vector<8x1xf32>
      %574 = arith.addf %573, %572 : vector<8x1xf32>
      %575 = arith.divf %573, %574 : vector<8x1xf32>
      %c0_205 = arith.constant 0 : index
      %c0_206 = arith.constant 0 : index
      %576 = vector.load %arg13[%c0_205, %c0_206] : memref<8x1xf32, #tpu.memory_space<vmem>>, vector<8x1xf32>
      tpu.vector_store %arg13[%c0_205, %c0_206], %575 {strides = array<i32>} : memref<8x1xf32, #tpu.memory_space<vmem>>, vector<8x1xf32>,
    } else {
    }
    return
  }
  func.func @transform_0(%arg0: i32, %arg1: i32) -> (i32, i32, i32) {
    %c0_i32 = arith.constant 0 : i32
    %c0_i32_0 = arith.constant 0 : i32
    return %arg1, %arg0, %c0_i32 : i32, i32, i32
  }
  func.func @transform_1(%arg0: i32, %arg1: i32) -> (i32, i32, i32) {
    %c0_i32 = arith.constant 0 : i32
    %c0_i32_0 = arith.constant 0 : i32
    %c0_i32_1 = arith.constant 0 : i32
    return %c0_i32, %arg0, %c0_i32_0 : i32, i32, i32
  }
  func.func @transform_2(%arg0: i32, %arg1: i32) -> (i32, i32, i32) {
    %c0_i32 = arith.constant 0 : i32
    %c0_i32_0 = arith.constant 0 : i32
    %c0_i32_1 = arith.constant 0 : i32
    return %c0_i32, %arg0, %c0_i32_0 : i32, i32, i32
  }
  func.func @transform_3(%arg0: i32, %arg1: i32) -> (i32, i32) {
    %c0_i32 = arith.constant 0 : i32
    %c0_i32_0 = arith.constant 0 : i32
    %c0_i32_1 = arith.constant 0 : i32
    return %c0_i32, %c0_i32_0 : i32, i32
  }
  func.func @transform_4(%arg0: i32, %arg1: i32) -> (i32, i32) {
    %c0_i32 = arith.constant 0 : i32
    %c0_i32_0 = arith.constant 0 : i32
    %c0_i32_1 = arith.constant 0 : i32
    return %c0_i32, %c0_i32_0 : i32, i32
  }
  func.func @transform_5(%arg0: i32, %arg1: i32) -> (i32, i32) {
    %c0_i32 = arith.constant 0 : i32
    %c0_i32_0 = arith.constant 0 : i32
    %c0_i32_1 = arith.constant 0 : i32
    return %c0_i32, %c0_i32_0 : i32, i32
  }
  func.func @transform_6(%arg0: i32, %arg1: i32) -> (i32, i32) {
    %c0_i32 = arith.constant 0 : i32
    %c0_i32_0 = arith.constant 0 : i32
    %c0_i32_1 = arith.constant 0 : i32
    return %c0_i32, %c0_i32_0 : i32, i32
  }
  func.func @transform_7(%arg0: i32, %arg1: i32) -> (i32, i32) {
    %c0_i32 = arith.constant 0 : i32
    %c0_i32_0 = arith.constant 0 : i32
    %c0_i32_1 = arith.constant 0 : i32
    return %c0_i32, %c0_i32_0 : i32, i32
  }
  func.func @transform_8(%arg0: i32, %arg1: i32) -> (i32, i32) {
    %c0_i32 = arith.constant 0 : i32
    %c0_i32_0 = arith.constant 0 : i32
    %c0_i32_1 = arith.constant 0 : i32
    return %c0_i32, %c0_i32_0 : i32, i32
  }
  func.func @transform_9(%arg0: i32, %arg1: i32) -> (i32, i32) {
    %c0_i32 = arith.constant 0 : i32
    %c0_i32_0 = arith.constant 0 : i32
    %c0_i32_1 = arith.constant 0 : i32
    return %c0_i32, %c0_i32_0 : i32, i32
  }
  func.func @transform_10(%arg0: i32, %arg1: i32) -> (i32, i32) {
    %c0_i32 = arith.constant 0 : i32
    %c0_i32_0 = arith.constant 0 : i32
    %c0_i32_1 = arith.constant 0 : i32
    return %c0_i32, %c0_i32_0 : i32, i32
  }
  func.func @transform_11(%arg0: i32, %arg1: i32) -> (i32, i32) {
    %c0_i32 = arith.constant 0 : i32
    %c0_i32_0 = arith.constant 0 : i32
    return %arg0, %c0_i32 : i32, i32
  }
  func.func @transform_12(%arg0: i32, %arg1: i32) -> (i32, i32, i32) {
    %c0_i32 = arith.constant 0 : i32
    %c0_i32_0 = arith.constant 0 : i32
    %c0_i32_1 = arith.constant 0 : i32
    return %c0_i32, %arg0, %c0_i32_0 : i32, i32, i32
  }
  func.func @transform_13(%arg0: i32, %arg1: i32) -> (i32, i32, i32) {
    %c0_i32 = arith.constant 0 : i32
    %c0_i32_0 = arith.constant 0 : i32
    %c0_i32_1 = arith.constant 0 : i32
    return %c0_i32, %arg0, %c0_i32_0 : i32, i32, i32
  }
}

</mosaic_0001>

<llo_original>
// kernel: sentiment_forward.1
$region0: #{sentiment_forward.1}
  #allocation0 [shape = 'u32[]', space=smem, size = 0x4, offset = 0x4, fixed_abs, tag = 'smem constant byte address 0x4 - core index']
  #allocation1 [shape = 'u32[144,128]{1,0:T(1,128)}', space=vmem, size = 0x12000, scoped, tag = 'internal scratch']
  #allocation2 [shape = 'f32[2,8,128]{2,1,0:T(8,128)}', space=vmem, size = 0x2000, scoped, tag = 'scratch operand']
  #allocation3 [shape = 'f32[2,8,128]{2,1,0:T(8,128)}', space=vmem, size = 0x2000, scoped, tag = 'scratch operand']
  #allocation4 [shape = 'f32[64,512]{1,0:T(8,128)}', space=vmem, size = 0x20000, scoped, tag = 'scratch operand']
  #allocation5 [shape = 'f32[1,1]{1,0:T(1,128)S(1)}', space=vmem, size = 0x200, scoped, tag = 'scoped memory for sentiment_forward.1']
  %s0 = inlined_call_operand.vmem [shape: f32[8,8,10], index: 0, kind: input, shape index: {}]
  %s1 = inlined_call_operand.vmem [shape: f32[2,8,128], index: 1, kind: input, shape index: {}]
  %s2 = inlined_call_operand.vmem [shape: f32[2,8,128], index: 2, kind: input, shape index: {}]
  %s3 = inlined_call_operand.vmem [shape: f32[10,512], index: 3, kind: input, shape index: {}]
  %s4 = inlined_call_operand.vmem [shape: f32[1,512], index: 4, kind: input, shape index: {}]
  %s5 = inlined_call_operand.hbm [shape: f32[128,512], index: 5, kind: input, shape index: {}]
  %s6 = inlined_call_operand.hbm [shape: f32[128,512], index: 6, kind: input, shape index: {}]
  %s7 = inlined_call_operand.hbm [shape: f32[128,512], index: 7, kind: input, shape index: {}]
  %s8 = inlined_call_operand.vmem [shape: f32[1,512], index: 8, kind: input, shape index: {}]
  %s9 = inlined_call_operand.vmem [shape: f32[128,1], index: 9, kind: input, shape index: {}]
  %s10 = inlined_call_operand.<no memory space> [shape: f32[1,1], index: 10, kind: input, shape index: {}]
  %s11 = inlined_call_operand.vmem [shape: f32[8,1], index: 11, kind: output, shape index: {0}]
  %s12 = inlined_call_operand.vmem [shape: f32[2,8,128], index: 12, kind: output, shape index: {1}]
  %s13 = inlined_call_operand.vmem [shape: f32[2,8,128], index: 13, kind: output, shape index: {2}]
  %14 = xla_tuple %s11, %s12, %s13
  %s15 = sld [smem:[#allocation0]]
  $region90: #{sentiment_forward.1} parent=0
    _
  %s17 = ssub.s32 1, %s15
  %s18 = scalar_select 0, %s17, %s15
  %v19 = vstv %s10
  %20 = vst [vmem:[#allocation5] sm:$0x1] %v19
  $region1: #{sentiment_forward.1} parent=0
    #allocation6 [shape = 'u8[262144]{0}', space=vmem, size = 0x40000, scoped, tag = 'input window, operand 5, single buffered']
    #allocation7 [shape = 's32[1]{0}', space=sflag, size = 0x4, scoped, tag = 'scoped memory for sentiment_forward.1']
    #allocation8 [shape = 'u8[262144]{0}', space=vmem, size = 0x40000, scoped, tag = 'input window, operand 6, single buffered']
    #allocation9 [shape = 's32[1]{0}', space=sflag, size = 0x4, scoped, tag = 'scoped memory for sentiment_forward.1']
    #allocation10 [shape = 'u8[262144]{0}', space=vmem, size = 0x40000, scoped, tag = 'input window, operand 7, single buffered']
    %21 = vsyncpa [#allocation7], 0
    %22 = vsyncpa [#allocation9], 0
    // Predicated region
    $region2: #{sentiment_forward.1} parent=1 // pred_check
      _
    $region3: #{sentiment_forward.1} parent=1 // pred_check_branch
      %24 = sbr.rel (0) target = $region5
    $region4: #{sentiment_forward.1} parent=1 // pred_region
      _
    $region5: #{sentiment_forward.1} parent=1 // pred_fallthru
      _
    // Predicated region
    $region6: #{sentiment_forward.1} parent=1 // pred_check
      _
    $region7: #{sentiment_forward.1} parent=1 // pred_check_branch
      %26 = sbr.rel (0) target = $region9
    $region8: #{sentiment_forward.1} parent=1 // pred_region
      _
    $region9: #{sentiment_forward.1} parent=1 // pred_fallthru
      _
    // Predicated region
    $region10: #{sentiment_forward.1} parent=1 // pred_check
      _
    $region11: #{sentiment_forward.1} parent=1 // pred_check_branch
      %28 = sbr.rel (0) target = $region13
    $region12: #{sentiment_forward.1} parent=1 // pred_region
      _
    $region13: #{sentiment_forward.1} parent=1 // pred_fallthru
      _
    // Predicated region
    $region14: #{sentiment_forward.1} parent=1 // pred_check
      _
    $region15: #{sentiment_forward.1} parent=1 // pred_check_branch
      %30 = sbr.rel (0) target = $region17
    $region16: #{sentiment_forward.1} parent=1 // pred_region
      _
    $region17: #{sentiment_forward.1} parent=1 // pred_fallthru
      _
    // Predicated region
    $region18: #{sentiment_forward.1} parent=1 // pred_check
      _
    $region19: #{sentiment_forward.1} parent=1 // pred_check_branch
      %32 = sbr.rel (0) target = $region21
    $region20: #{sentiment_forward.1} parent=1 // pred_region
      _
    $region21: #{sentiment_forward.1} parent=1 // pred_fallthru
      _
    // Predicated region
    $region22: #{sentiment_forward.1} parent=1 // pred_check
      _
    $region23: #{sentiment_forward.1} parent=1 // pred_check_branch
      %34 = sbr.rel (0) target = $region25
    $region24: #{sentiment_forward.1} parent=1 // pred_region
      %s36 = ssub.s32 8192, 8192
      %37 = vsyncadd [#allocation7], %s36
      %s38 = sshll.u32 [#allocation6], 4
      %s39 = int_to_ptr.vmem [resolvable:$true] %s38
      %44 = dma.hbm_to_vmem [thread:$0]  %s5, 8192, %s39, [#allocation7], 512, 512, 32
    $region25: #{sentiment_forward.1} parent=1 // pred_fallthru
      _
    // Predicated region
    $region26: #{sentiment_forward.1} parent=1 // pred_check
      _
    $region27: #{sentiment_forward.1} parent=1 // pred_check_branch
      %46 = sbr.rel (0) target = $region29
    $region28: #{sentiment_forward.1} parent=1 // pred_region
      %s48 = ssub.s32 8192, 8192
      %49 = vsyncadd [#allocation9], %s48
      %s50 = sshll.u32 [#allocation8], 4
      %s51 = int_to_ptr.vmem [resolvable:$true] %s50
      %56 = dma.hbm_to_vmem [thread:$0]  %s6, 8192, %s51, [#allocation9], 512, 512, 32
    $region29: #{sentiment_forward.1} parent=1 // pred_fallthru
      _
    // Predicated region
    $region30: #{sentiment_forward.1} parent=1 // pred_check
      _
    $region31: #{sentiment_forward.1} parent=1 // pred_check_branch
      %58 = sbr.rel (0) target = $region33
    $region32: #{sentiment_forward.1} parent=1 // pred_region
      %s60 = ssub.s32 8192, 8192
      %61 = vsyncadd [#allocation9], %s60
      %s62 = sshll.u32 [#allocation10], 4
      %s63 = int_to_ptr.vmem [resolvable:$true] %s62
      %68 = dma.hbm_to_vmem [thread:$0]  %s7, 8192, %s63, [#allocation9], 512, 512, 32
    $region33: #{sentiment_forward.1} parent=1 // pred_fallthru
      _
    // Predicated region
    $region34: #{sentiment_forward.1} parent=1 // pred_check
      _
    $region35: #{sentiment_forward.1} parent=1 // pred_check_branch
      %70 = sbr.rel (0) target = $region37
    $region36: #{sentiment_forward.1} parent=1 // pred_region
      _
    $region37: #{sentiment_forward.1} parent=1 // pred_fallthru
      _
    // Predicated region
    $region38: #{sentiment_forward.1} parent=1 // pred_check
      _
    $region39: #{sentiment_forward.1} parent=1 // pred_check_branch
      %72 = sbr.rel (0) target = $region41
    $region40: #{sentiment_forward.1} parent=1 // pred_region
      _
    $region41: #{sentiment_forward.1} parent=1 // pred_fallthru
      _
    // Predicated region
    $region42: #{sentiment_forward.1} parent=1 // pred_check
      _
    $region43: #{sentiment_forward.1} parent=1 // pred_check_branch
      %74 = sbr.rel (0) target = $region45
    $region44: #{sentiment_forward.1} parent=1 // pred_region
      _
    $region45: #{sentiment_forward.1} parent=1 // pred_fallthru
      _
    // Predicated region
    $region46: #{sentiment_forward.1} parent=1 // pred_check
      _
    $region47: #{sentiment_forward.1} parent=1 // pred_check_branch
      %76 = sbr.rel (0) target = $region49
    $region48: #{sentiment_forward.1} parent=1 // pred_region
      %77 = dma.done [#allocation7], 8192
    $region49: #{sentiment_forward.1} parent=1 // pred_fallthru
      _
    // Predicated region
    $region50: #{sentiment_forward.1} parent=1 // pred_check
      _
    $region51: #{sentiment_forward.1} parent=1 // pred_check_branch
      %79 = sbr.rel (0) target = $region53
    $region52: #{sentiment_forward.1} parent=1 // pred_region
      %80 = dma.done [#allocation9], 8192
    $region53: #{sentiment_forward.1} parent=1 // pred_fallthru
      _
    // Predicated region
    $region54: #{sentiment_forward.1} parent=1 // pred_check
      _
    $region55: #{sentiment_forward.1} parent=1 // pred_check_branch
      %82 = sbr.rel (0) target = $region57
    $region56: #{sentiment_forward.1} parent=1 // pred_region
      %83 = dma.done [#allocation9], 8192
    $region57: #{sentiment_forward.1} parent=1 // pred_fallthru
      _
    %p84 = scmp.eq.s32.totalorder 0, 0
    // Predicated region
    $region58: #{sentiment_forward.1} parent=1 // pred_check
      %p85 = pneg %p84
    $region59: #{sentiment_forward.1} parent=1 // pred_check_branch
      %87 = sbr.rel (%p85) target = $region61
    $region60: #{sentiment_forward.1} parent=1 // pred_region
      %v88 = vld [vmem:[%s1] sm:$0xff]
      %v89 = vld [vmem:[%s1 + $0x8] sm:$0xff]
      %90 = vst [vmem:[#allocation2] sm:$0xff] %v88
      %91 = vst [vmem:[#allocation2 + $0x8] sm:$0xff] %v89
      %v92 = vld [vmem:[%s2] sm:$0xff]
      %v93 = vld [vmem:[%s2 + $0x8] sm:$0xff]
      %94 = vst [vmem:[#allocation3] sm:$0xff] %v92
      %95 = vst [vmem:[#allocation3 + $0x8] sm:$0xff] %v93
    $region61: #{sentiment_forward.1} parent=1 // pred_fallthru
      _
    %v96 = vld [vmem:[%s0] sm:$0xff]
    %v97 = vld [vmem:[%s0 + $0x8] sm:$0xff]
    %v98 = vld [vmem:[%s0 + $0x10] sm:$0xff]
    %v99 = vld [vmem:[%s0 + $0x18] sm:$0xff]
    %v100 = vld [vmem:[%s0 + $0x20] sm:$0xff]
    %v101 = vld [vmem:[%s0 + $0x28] sm:$0xff]
    %v102 = vld [vmem:[%s0 + $0x30] sm:$0xff]
    %v103 = vld [vmem:[%s0 + $0x38] sm:$0xff]
    %v104 = vld [vmem:[%s3] sm:$0xff]
    %v105 = vld [vmem:[%s3 + $0x8] sm:$0xff]
    %v106 = vld [vmem:[%s3 + $0x10] sm:$0xff]
    %v107 = vld [vmem:[%s3 + $0x18] sm:$0xff]
    %v108 = vld [vmem:[%s3 + $0x20] sm:$0x3]
    %v109 = vld [vmem:[%s3 + $0x28] sm:$0x3]
    %v110 = vld [vmem:[%s3 + $0x30] sm:$0x3]
    %v111 = vld [vmem:[%s3 + $0x38] sm:$0x3]
    %v112 = vld [vmem:[%s4] sm:$0xf]
    %v114 = vlaneseq
    %v115 = vshrl.u32 %v114, 7
    %v116 = vsub.s32 0, %v115
    %v117 = vrot.slane %v112, %v116
    %v118 = vlaneseq
    %v119 = vshrl.u32 %v118, 7
    %v120 = vsub.s32 1, %v119
    %v121 = vrot.slane %v112, %v120
    %v122 = vlaneseq
    %v123 = vshrl.u32 %v122, 7
    %v124 = vsub.s32 2, %v123
    %v125 = vrot.slane %v112, %v124
    %v126 = vlaneseq
    %v127 = vshrl.u32 %v126, 7
    %v128 = vsub.s32 3, %v127
    %v129 = vrot.slane %v112, %v128
    %vm134 = vcmask 80896
    %v136 = vsel %vm134, %v96, 0
    %v139 = vsel %vm134, %v97, 0
    %v142 = vsel %vm134, %v98, 0
    %v145 = vsel %vm134, %v99, 0
    %v148 = vsel %vm134, %v100, 0
    %v151 = vsel %vm134, %v101, 0
    %v154 = vsel %vm134, %v102, 0
    %v157 = vsel %vm134, %v103, 0
    %vm159 = vcmask 1041408
    %v161 = vsel %vm159, %v108, 0
    %v164 = vsel %vm159, %v109, 0
    %v167 = vsel %vm159, %v110, 0
    %v170 = vsel %vm159, %v111, 0
    %172 = vmatprep.subr.mxu0 %v105
    %173 = vmatpush1.msra.mxu0 %v104
    %174 = vmatprep.subr.mxu0 %v164
    %175 = vmatpush1.msra.mxu0 %v161
    %176 = vmatprep.subr.mxu0 0.0
    %177 = vmatpush1.msra.mxu0 0.0
    %178 = vmatprep.subr.mxu0 0.0
    %179 = vmatpush1.msra.mxu0 0.0
    %180 = vmatprep.subr.mxu0 0.0
    %181 = vmatpush1.msra.mxu0 0.0
    %182 = vmatprep.subr.mxu0 0.0
    %183 = vmatpush1.msra.mxu0 0.0
    %184 = vmatprep.subr.mxu0 0.0
    %185 = vmatpush1.msra.mxu0 0.0
    %186 = vmatprep.subr.mxu0 0.0
    %187 = vmatpush1.msra.mxu0 0.0
    %188 = vmatprep.subr.mxu0 0.0
    %189 = vmatpush1.msra.mxu0 0.0
    %190 = vmatprep.subr.mxu0 0.0
    %191 = vmatpush1.msra.mxu0 0.0
    %192 = vmatprep.subr.mxu0 0.0
    %193 = vmatpush1.msra.mxu0 0.0
    %194 = vmatprep.subr.mxu0 0.0
    %195 = vmatpush1.msra.mxu0 0.0
    %196 = vmatprep.subr.mxu0 0.0
    %197 = vmatpush1.msra.mxu0 0.0
    %198 = vmatprep.subr.mxu0 0.0
    %199 = vmatpush1.msra.mxu0 0.0
    %200 = vmatprep.subr.mxu0 0.0
    %201 = vmatpush1.msra.mxu0 0.0
    %202 = vmatprep.subr.mxu0 0.0
    %203 = vmatpush1.msra.mxu0 0.0
    %204 = vmatprep.subr.mxu0 0.0
    %205 = vmatpush1.msra.mxu0 0.0
    %206 = vmatprep.subr.mxu0 0.0
    %207 = vmatpush1.msra.mxu0 0.0
    %208 = vmatprep.subr.mxu0 0.0
    %209 = vmatpush1.msra.mxu0 0.0
    %210 = vmatprep.subr.mxu0 0.0
    %211 = vmatpush1.msra.mxu0 0.0
    %212 = vmatprep.subr.mxu0 0.0
    %213 = vmatpush1.msra.mxu0 0.0
    %214 = vmatprep.subr.mxu0 0.0
    %215 = vmatpush1.msra.mxu0 0.0
    %216 = vmatprep.subr.mxu0 0.0
    %217 = vmatpush1.msra.mxu0 0.0
    %218 = vmatprep.subr.mxu0 0.0
    %219 = vmatpush1.msra.mxu0 0.0
    %220 = vmatprep.subr.mxu0 0.0
    %221 = vmatpush1.msra.mxu0 0.0
    %222 = vmatprep.subr.mxu0 0.0
    %223 = vmatpush1.msra.mxu0 0.0
    %224 = vmatprep.subr.mxu0 0.0
    %225 = vmatpush1.msra.mxu0 0.0
    %226 = vmatprep.subr.mxu0 0.0
    %227 = vmatpush1.msra.mxu0 0.0
    %228 = vmatprep.subr.mxu0 0.0
    %229 = vmatpush1.msra.mxu0 0.0
    %230 = vmatprep.subr.mxu0 0.0
    %231 = vmatpush1.msra.mxu0 0.0
    %232 = vmatprep.subr.mxu0 0.0
    %233 = vmatpush1.msra.mxu0 0.0
    %234 = vmatprep.subr.mxu0 0.0
    %235 = vmatpush1.msra.mxu0 0.0
    %236 = vmatprep.mubr.f32.mxu0 0.0
    %237 = vmatmul.mubr.f32.gmra.mrb[0].mxu0 %v136
    %v238 = vpop.f32.mrb[0].mxu0
    %v239 = vadd.f32 %v117, %v238
    %v240 = vpop.f32.mrb[0].mxu0
    %v241 = vadd.f32 %v121, %v240
    %242 = vmatprep.mubr.f32.mxu0 0.0
    %243 = vmatmul.mubr.f32.gmra.mrb[0].mxu0 %v139
    %v244 = vpop.f32.mrb[0].mxu0
    %v245 = vadd.f32 %v117, %v244
    %v246 = vpop.f32.mrb[0].mxu0
    %v247 = vadd.f32 %v121, %v246
    %248 = vmatprep.mubr.f32.mxu0 0.0
    %249 = vmatmul.mubr.f32.gmra.mrb[0].mxu0 %v142
    %v250 = vpop.f32.mrb[0].mxu0
    %v251 = vadd.f32 %v117, %v250
    %v252 = vpop.f32.mrb[0].mxu0
    %v253 = vadd.f32 %v121, %v252
    %254 = vmatprep.mubr.f32.mxu0 0.0
    %255 = vmatmul.mubr.f32.gmra.mrb[0].mxu0 %v145
    %v256 = vpop.f32.mrb[0].mxu0
    %v257 = vadd.f32 %v117, %v256
    %v258 = vpop.f32.mrb[0].mxu0
    %v259 = vadd.f32 %v121, %v258
    %260 = vmatprep.mubr.f32.mxu0 0.0
    %261 = vmatmul.mubr.f32.gmra.mrb[0].mxu0 %v148
    %v262 = vpop.f32.mrb[0].mxu0
    %v263 = vadd.f32 %v117, %v262
    %v264 = vpop.f32.mrb[0].mxu0
    %v265 = vadd.f32 %v121, %v264
    %266 = vmatprep.mubr.f32.mxu0 0.0
    %267 = vmatmul.mubr.f32.gmra.mrb[0].mxu0 %v151
    %v268 = vpop.f32.mrb[0].mxu0
    %v269 = vadd.f32 %v117, %v268
    %v270 = vpop.f32.mrb[0].mxu0
    %v271 = vadd.f32 %v121, %v270
    %272 = vmatprep.mubr.f32.mxu0 0.0
    %273 = vmatmul.mubr.f32.gmra.mrb[0].mxu0 %v154
    %v274 = vpop.f32.mrb[0].mxu0
    %v275 = vadd.f32 %v117, %v274
    %v276 = vpop.f32.mrb[0].mxu0
    %v277 = vadd.f32 %v121, %v276
    %278 = vmatprep.mubr.f32.mxu0 0.0
    %279 = vmatmul.mubr.f32.gmra.mrb[0].mxu0 %v157
    %v280 = vpop.f32.mrb[0].mxu0
    %v281 = vadd.f32 %v117, %v280
    %v282 = vpop.f32.mrb[0].mxu0
    %v283 = vadd.f32 %v121, %v282
    %284 = vdwg.mxu0
    %285 = vmatprep.subr.mxu0 %v107
    %286 = vmatpush1.msra.mxu0 %v106
    %287 = vmatprep.subr.mxu0 %v170
    %288 = vmatpush1.msra.mxu0 %v167
    %289 = vmatprep.subr.mxu0 0.0
    %290 = vmatpush1.msra.mxu0 0.0
    %291 = vmatprep.subr.mxu0 0.0
    %292 = vmatpush1.msra.mxu0 0.0
    %293 = vmatprep.subr.mxu0 0.0
    %294 = vmatpush1.msra.mxu0 0.0
    %295 = vmatprep.subr.mxu0 0.0
    %296 = vmatpush1.msra.mxu0 0.0
    %297 = vmatprep.subr.mxu0 0.0
    %298 = vmatpush1.msra.mxu0 0.0
    %299 = vmatprep.subr.mxu0 0.0
    %300 = vmatpush1.msra.mxu0 0.0
    %301 = vmatprep.subr.mxu0 0.0
    %302 = vmatpush1.msra.mxu0 0.0
    %303 = vmatprep.subr.mxu0 0.0
    %304 = vmatpush1.msra.mxu0 0.0
    %305 = vmatprep.subr.mxu0 0.0
    %306 = vmatpush1.msra.mxu0 0.0
    %307 = vmatprep.subr.mxu0 0.0
    %308 = vmatpush1.msra.mxu0 0.0
    %309 = vmatprep.subr.mxu0 0.0
    %310 = vmatpush1.msra.mxu0 0.0
    %311 = vmatprep.subr.mxu0 0.0
    %312 = vmatpush1.msra.mxu0 0.0
    %313 = vmatprep.subr.mxu0 0.0
    %314 = vmatpush1.msra.mxu0 0.0
    %315 = vmatprep.subr.mxu0 0.0
    %316 = vmatpush1.msra.mxu0 0.0
    %317 = vmatprep.subr.mxu0 0.0
    %318 = vmatpush1.msra.mxu0 0.0
    %319 = vmatprep.subr.mxu0 0.0
    %320 = vmatpush1.msra.mxu0 0.0
    %321 = vmatprep.subr.mxu0 0.0
    %322 = vmatpush1.msra.mxu0 0.0
    %323 = vmatprep.subr.mxu0 0.0
    %324 = vmatpush1.msra.mxu0 0.0
    %325 = vmatprep.subr.mxu0 0.0
    %326 = vmatpush1.msra.mxu0 0.0
    %327 = vmatprep.subr.mxu0 0.0
    %328 = vmatpush1.msra.mxu0 0.0
    %329 = vmatprep.subr.mxu0 0.0
    %330 = vmatpush1.msra.mxu0 0.0
    %331 = vmatprep.subr.mxu0 0.0
    %332 = vmatpush1.msra.mxu0 0.0
    %333 = vmatprep.subr.mxu0 0.0
    %334 = vmatpush1.msra.mxu0 0.0
    %335 = vmatprep.subr.mxu0 0.0
    %336 = vmatpush1.msra.mxu0 0.0
    %337 = vmatprep.subr.mxu0 0.0
    %338 = vmatpush1.msra.mxu0 0.0
    %339 = vmatprep.subr.mxu0 0.0
    %340 = vmatpush1.msra.mxu0 0.0
    %341 = vmatprep.subr.mxu0 0.0
    %342 = vmatpush1.msra.mxu0 0.0
    %343 = vmatprep.subr.mxu0 0.0
    %344 = vmatpush1.msra.mxu0 0.0
    %345 = vmatprep.subr.mxu0 0.0
    %346 = vmatpush1.msra.mxu0 0.0
    %347 = vmatprep.subr.mxu0 0.0
    %348 = vmatpush1.msra.mxu0 0.0
    %349 = vmatprep.mubr.f32.mxu0 0.0
    %350 = vmatmul.mubr.f32.gmra.mrb[0].mxu0 %v136
    %v351 = vpop.f32.mrb[0].mxu0
    %v352 = vadd.f32 %v125, %v351
    %v353 = vpop.f32.mrb[0].mxu0
    %v354 = vadd.f32 %v129, %v353
    %355 = vmatprep.mubr.f32.mxu0 0.0
    %356 = vmatmul.mubr.f32.gmra.mrb[0].mxu0 %v139
    %v357 = vpop.f32.mrb[0].mxu0
    %v358 = vadd.f32 %v125, %v357
    %v359 = vpop.f32.mrb[0].mxu0
    %v360 = vadd.f32 %v129, %v359
    %361 = vmatprep.mubr.f32.mxu0 0.0
    %362 = vmatmul.mubr.f32.gmra.mrb[0].mxu0 %v142
    %v363 = vpop.f32.mrb[0].mxu0
    %v364 = vadd.f32 %v125, %v363
    %v365 = vpop.f32.mrb[0].mxu0
    %v366 = vadd.f32 %v129, %v365
    %367 = vmatprep.mubr.f32.mxu0 0.0
    %368 = vmatmul.mubr.f32.gmra.mrb[0].mxu0 %v145
    %v369 = vpop.f32.mrb[0].mxu0
    %v370 = vadd.f32 %v125, %v369
    %v371 = vpop.f32.mrb[0].mxu0
    %v372 = vadd.f32 %v129, %v371
    %373 = vmatprep.mubr.f32.mxu0 0.0
    %374 = vmatmul.mubr.f32.gmra.mrb[0].mxu0 %v148
    %v375 = vpop.f32.mrb[0].mxu0
    %v376 = vadd.f32 %v125, %v375
    %v377 = vpop.f32.mrb[0].mxu0
    %v378 = vadd.f32 %v129, %v377
    %379 = vmatprep.mubr.f32.mxu0 0.0
    %380 = vmatmul.mubr.f32.gmra.mrb[0].mxu0 %v151
    %v381 = vpop.f32.mrb[0].mxu0
    %v382 = vadd.f32 %v125, %v381
    %v383 = vpop.f32.mrb[0].mxu0
    %v384 = vadd.f32 %v129, %v383
    %385 = vmatprep.mubr.f32.mxu0 0.0
    %386 = vmatmul.mubr.f32.gmra.mrb[0].mxu0 %v154
    %v387 = vpop.f32.mrb[0].mxu0
    %v388 = vadd.f32 %v125, %v387
    %v389 = vpop.f32.mrb[0].mxu0
    %v390 = vadd.f32 %v129, %v389
    %391 = vmatprep.mubr.f32.mxu0 0.0
    %392 = vmatmul.mubr.f32.gmra.mrb[0].mxu0 %v157
    %v393 = vpop.f32.mrb[0].mxu0
    %v394 = vadd.f32 %v125, %v393
    %v395 = vpop.f32.mrb[0].mxu0
    %v396 = vadd.f32 %v129, %v395
    %397 = vdwg.mxu0
    %398 = vst [vmem:[#allocation4] sm:$0xff] %v239
    %399 = vst [vmem:[#allocation4 + $0x8] sm:$0xff] %v241
    %400 = vst [vmem:[#allocation4 + $0x10] sm:$0xff] %v352
    %401 = vst [vmem:[#allocation4 + $0x18] sm:$0xff] %v354
    %402 = vst [vmem:[#allocation4 + $0x20] sm:$0xff] %v245
    %403 = vst [vmem:[#allocation4 + $0x28] sm:$0xff] %v247
    %404 = vst [vmem:[#allocation4 + $0x30] sm:$0xff] %v358
    %405 = vst [vmem:[#allocation4 + $0x38] sm:$0xff] %v360
    %406 = vst [vmem:[#allocation4 + $0x40] sm:$0xff] %v251
    %407 = vst [vmem:[#allocation4 + $0x48] sm:$0xff] %v253
    %408 = vst [vmem:[#allocation4 + $0x50] sm:$0xff] %v364
    %409 = vst [vmem:[#allocation4 + $0x58] sm:$0xff] %v366
    %410 = vst [vmem:[#allocation4 + $0x60] sm:$0xff] %v257
    %411 = vst [vmem:[#allocation4 + $0x68] sm:$0xff] %v259
    %412 = vst [vmem:[#allocation4 + $0x70] sm:$0xff] %v370
    %413 = vst [vmem:[#allocation4 + $0x78] sm:$0xff] %v372
    %414 = vst [vmem:[#allocation4 + $0x80] sm:$0xff] %v263
    %415 = vst [vmem:[#allocation4 + $0x88] sm:$0xff] %v265
    %416 = vst [vmem:[#allocation4 + $0x90] sm:$0xff] %v376
    %417 = vst [vmem:[#allocation4 + $0x98] sm:$0xff] %v378
    %418 = vst [vmem:[#allocation4 + $0xa0] sm:$0xff] %v269
    %419 = vst [vmem:[#allocation4 + $0xa8] sm:$0xff] %v271
    %420 = vst [vmem:[#allocation4 + $0xb0] sm:$0xff] %v382
    %421 = vst [vmem:[#allocation4 + $0xb8] sm:$0xff] %v384
    %422 = vst [vmem:[#allocation4 + $0xc0] sm:$0xff] %v275
    %423 = vst [vmem:[#allocation4 + $0xc8] sm:$0xff] %v277
    %424 = vst [vmem:[#allocation4 + $0xd0] sm:$0xff] %v388
    %425 = vst [vmem:[#allocation4 + $0xd8] sm:$0xff] %v390
    %426 = vst [vmem:[#allocation4 + $0xe0] sm:$0xff] %v281
    %427 = vst [vmem:[#allocation4 + $0xe8] sm:$0xff] %v283
    %428 = vst [vmem:[#allocation4 + $0xf0] sm:$0xff] %v394
    %429 = vst [vmem:[#allocation4 + $0xf8] sm:$0xff] %v396
    %v430 = vld [vmem:[#allocation2] sm:$0xff]
    %v431 = vld [vmem:[#allocation3] sm:$0xff]
    %s432 = scalar_lea.vmem [#allocation2], 8
    %v433 = vld [vmem:[%s432] sm:$0xff]
    %s434 = scalar_lea.vmem [#allocation3], 8
    %v435 = vld [vmem:[%s434] sm:$0xff]
    %s436 = smul.u32 0, 4
    %s437 = smul.addr %s436, 8
    %s438 = scalar_lea.vmem [#allocation4], %s437
    %v439 = vld [vmem:[%s438] sm:$0xff]
    %v440 = vld [vmem:[%s438 + $0x8] sm:$0xff]
    %v441 = vld [vmem:[%s438 + $0x10] sm:$0xff]
    %v442 = vld [vmem:[%s438 + $0x18] sm:$0xff]
    %v443 = vld [vmem:[#allocation6] sm:$0xff]
    %v444 = vld [vmem:[#allocation6 + $0x8] sm:$0xff]
    %v445 = vld [vmem:[#allocation6 + $0x10] sm:$0xff]
    %v446 = vld [vmem:[#allocation6 + $0x18] sm:$0xff]
    %v447 = vld [vmem:[#allocation6 + $0x20] sm:$0xff]
    %v448 = vld [vmem:[#allocation6 + $0x28] sm:$0xff]
    %v449 = vld [vmem:[#allocation6 + $0x30] sm:$0xff]
    %v450 = vld [vmem:[#allocation6 + $0x38] sm:$0xff]
    %v451 = vld [vmem:[#allocation6 + $0x40] sm:$0xff]
    %v452 = vld [vmem:[#allocation6 + $0x48] sm:$0xff]
    %v453 = vld [vmem:[#allocation6 + $0x50] sm:$0xff]
    %v454 = vld [vmem:[#allocation6 + $0x58] sm:$0xff]
    %v455 = vld [vmem:[#allocation6 + $0x60] sm:$0xff]
    %v456 = vld [vmem:[#allocation6 + $0x68] sm:$0xff]
    %v457 = vld [vmem:[#allocation6 + $0x70] sm:$0xff]
    %v458 = vld [vmem:[#allocation6 + $0x78] sm:$0xff]
    %v459 = vld [vmem:[#allocation6 + $0x80] sm:$0xff]
    %v460 = vld [vmem:[#allocation6 + $0x88] sm:$0xff]
    %v461 = vld [vmem:[#allocation6 + $0x90] sm:$0xff]
    %v462 = vld [vmem:[#allocation6 + $0x98] sm:$0xff]
    %v463 = vld [vmem:[#allocation6 + $0xa0] sm:$0xff]
    %v464 = vld [vmem:[#allocation6 + $0xa8] sm:$0xff]
    %v465 = vld [vmem:[#allocation6 + $0xb0] sm:$0xff]
    %v466 = vld [vmem:[#allocation6 + $0xb8] sm:$0xff]
    %v467 = vld [vmem:[#allocation6 + $0xc0] sm:$0xff]
    %v468 = vld [vmem:[#allocation6 + $0xc8] sm:$0xff]
    %v469 = vld [vmem:[#allocation6 + $0xd0] sm:$0xff]
    %v470 = vld [vmem:[#allocation6 + $0xd8] sm:$0xff]
    %v471 = vld [vmem:[#allocation6 + $0xe0] sm:$0xff]
    %v472 = vld [vmem:[#allocation6 + $0xe8] sm:$0xff]
    %v473 = vld [vmem:[#allocation6 + $0xf0] sm:$0xff]
    %v474 = vld [vmem:[#allocation6 + $0xf8] sm:$0xff]
    %v475 = vld [vmem:[#allocation6 + $0x100] sm:$0xff]
    %v476 = vld [vmem:[#allocation6 + $0x108] sm:$0xff]
    %v477 = vld [vmem:[#allocation6 + $0x110] sm:$0xff]
    %v478 = vld [vmem:[#allocation6 + $0x118] sm:$0xff]
    %v479 = vld [vmem:[#allocation6 + $0x120] sm:$0xff]
    %v480 = vld [vmem:[#allocation6 + $0x128] sm:$0xff]
    %v481 = vld [vmem:[#allocation6 + $0x130] sm:$0xff]
    %v482 = vld [vmem:[#allocation6 + $0x138] sm:$0xff]
    %v483 = vld [vmem:[#allocation6 + $0x140] sm:$0xff]
    %v484 = vld [vmem:[#allocation6 + $0x148] sm:$0xff]
    %v485 = vld [vmem:[#allocation6 + $0x150] sm:$0xff]
    %v486 = vld [vmem:[#allocation6 + $0x158] sm:$0xff]
    %v487 = vld [vmem:[#allocation6 + $0x160] sm:$0xff]
    %v488 = vld [vmem:[#allocation6 + $0x168] sm:$0xff]
    %v489 = vld [vmem:[#allocation6 + $0x170] sm:$0xff]
    %v490 = vld [vmem:[#allocation6 + $0x178] sm:$0xff]
    %v491 = vld [vmem:[#allocation6 + $0x180] sm:$0xff]
    %v492 = vld [vmem:[#allocation6 + $0x188] sm:$0xff]
    %v493 = vld [vmem:[#allocation6 + $0x190] sm:$0xff]
    %v494 = vld [vmem:[#allocation6 + $0x198] sm:$0xff]
    %v495 = vld [vmem:[#allocation6 + $0x1a0] sm:$0xff]
    %v496 = vld [vmem:[#allocation6 + $0x1a8] sm:$0xff]
    %v497 = vld [vmem:[#allocation6 + $0x1b0] sm:$0xff]
    %v498 = vld [vmem:[#allocation6 + $0x1b8] sm:$0xff]
    %v499 = vld [vmem:[#allocation6 + $0x1c0] sm:$0xff]
    %v500 = vld [vmem:[#allocation6 + $0x1c8] sm:$0xff]
    %v501 = vld [vmem:[#allocation6 + $0x1d0] sm:$0xff]
    %v502 = vld [vmem:[#allocation6 + $0x1d8] sm:$0xff]
    %v503 = vld [vmem:[#allocation6 + $0x1e0] sm:$0xff]
    %v504 = vld [vmem:[#allocation6 + $0x1e8] sm:$0xff]
    %v505 = vld [vmem:[#allocation6 + $0x1f0] sm:$0xff]
    %v506 = vld [vmem:[#allocation6 + $0x1f8] sm:$0xff]
    %507 = vmatprep.subr.mxu0 %v444
    %508 = vmatpush1.msra.mxu0 %v443
    %509 = vmatprep.subr.mxu0 %v448
    %510 = vmatpush1.msra.mxu0 %v447
    %511 = vmatprep.subr.mxu0 %v452
    %512 = vmatpush1.msra.mxu0 %v451
    %513 = vmatprep.subr.mxu0 %v456
    %514 = vmatpush1.msra.mxu0 %v455
    %515 = vmatprep.subr.mxu0 %v460
    %516 = vmatpush1.msra.mxu0 %v459
    %517 = vmatprep.subr.mxu0 %v464
    %518 = vmatpush1.msra.mxu0 %v463
    %519 = vmatprep.subr.mxu0 %v468
    %520 = vmatpush1.msra.mxu0 %v467
    %521 = vmatprep.subr.mxu0 %v472
    %522 = vmatpush1.msra.mxu0 %v471
    %523 = vmatprep.subr.mxu0 %v476
    %524 = vmatpush1.msra.mxu0 %v475
    %525 = vmatprep.subr.mxu0 %v480
    %526 = vmatpush1.msra.mxu0 %v479
    %527 = vmatprep.subr.mxu0 %v484
    %528 = vmatpush1.msra.mxu0 %v483
    %529 = vmatprep.subr.mxu0 %v488
    %530 = vmatpush1.msra.mxu0 %v487
    %531 = vmatprep.subr.mxu0 %v492
    %532 = vmatpush1.msra.mxu0 %v491
    %533 = vmatprep.subr.mxu0 %v496
    %534 = vmatpush1.msra.mxu0 %v495
    %535 = vmatprep.subr.mxu0 %v500
    %536 = vmatpush1.msra.mxu0 %v499
    %537 = vmatprep.subr.mxu0 %v504
    %538 = vmatpush1.msra.mxu0 %v503
    %539 = vmatprep.subr.mxu0 0.0
    %540 = vmatpush1.msra.mxu0 0.0
    %541 = vmatprep.subr.mxu0 0.0
    %542 = vmatpush1.msra.mxu0 0.0
    %543 = vmatprep.subr.mxu0 0.0
    %544 = vmatpush1.msra.mxu0 0.0
    %545 = vmatprep.subr.mxu0 0.0
    %546 = vmatpush1.msra.mxu0 0.0
    %547 = vmatprep.subr.mxu0 0.0
    %548 = vmatpush1.msra.mxu0 0.0
    %549 = vmatprep.subr.mxu0 0.0
    %550 = vmatpush1.msra.mxu0 0.0
    %551 = vmatprep.subr.mxu0 0.0
    %552 = vmatpush1.msra.mxu0 0.0
    %553 = vmatprep.subr.mxu0 0.0
    %554 = vmatpush1.msra.mxu0 0.0
    %555 = vmatprep.subr.mxu0 0.0
    %556 = vmatpush1.msra.mxu0 0.0
    %557 = vmatprep.subr.mxu0 0.0
    %558 = vmatpush1.msra.mxu0 0.0
    %559 = vmatprep.subr.mxu0 0.0
    %560 = vmatpush1.msra.mxu0 0.0
    %561 = vmatprep.subr.mxu0 0.0
    %562 = vmatpush1.msra.mxu0 0.0
    %563 = vmatprep.subr.mxu0 0.0
    %564 = vmatpush1.msra.mxu0 0.0
    %565 = vmatprep.subr.mxu0 0.0
    %566 = vmatpush1.msra.mxu0 0.0
    %567 = vmatprep.subr.mxu0 0.0
    %568 = vmatpush1.msra.mxu0 0.0
    %569 = vmatprep.subr.mxu0 0.0
    %570 = vmatpush1.msra.mxu0 0.0
    %571 = vmatprep.mubr.f32.mxu0 0.0
    %572 = vmatmul.mubr.f32.gmra.mrb[0].mxu0 %v430
    %v573 = vpop.f32.mrb[0].mxu0
    %v574 = vadd.f32 0.0, %v573
    %v575 = vpop.f32.mrb[0].mxu0
    %v576 = vadd.f32 0.0, %v575
    %577 = vdwg.mxu0
    %578 = vmatprep.subr.mxu0 %v446
    %579 = vmatpush1.msra.mxu0 %v445
    %580 = vmatprep.subr.mxu0 %v450
    %581 = vmatpush1.msra.mxu0 %v449
    %582 = vmatprep.subr.mxu0 %v454
    %583 = vmatpush1.msra.mxu0 %v453
    %584 = vmatprep.subr.mxu0 %v458
    %585 = vmatpush1.msra.mxu0 %v457
    %586 = vmatprep.subr.mxu0 %v462
    %587 = vmatpush1.msra.mxu0 %v461
    %588 = vmatprep.subr.mxu0 %v466
    %589 = vmatpush1.msra.mxu0 %v465
    %590 = vmatprep.subr.mxu0 %v470
    %591 = vmatpush1.msra.mxu0 %v469
    %592 = vmatprep.subr.mxu0 %v474
    %593 = vmatpush1.msra.mxu0 %v473
    %594 = vmatprep.subr.mxu0 %v478
    %595 = vmatpush1.msra.mxu0 %v477
    %596 = vmatprep.subr.mxu0 %v482
    %597 = vmatpush1.msra.mxu0 %v481
    %598 = vmatprep.subr.mxu0 %v486
    %599 = vmatpush1.msra.mxu0 %v485
    %600 = vmatprep.subr.mxu0 %v490
    %601 = vmatpush1.msra.mxu0 %v489
    %602 = vmatprep.subr.mxu0 %v494
    %603 = vmatpush1.msra.mxu0 %v493
    %604 = vmatprep.subr.mxu0 %v498
    %605 = vmatpush1.msra.mxu0 %v497
    %606 = vmatprep.subr.mxu0 %v502
    %607 = vmatpush1.msra.mxu0 %v501
    %608 = vmatprep.subr.mxu0 %v506
    %609 = vmatpush1.msra.mxu0 %v505
    %610 = vmatprep.subr.mxu0 0.0
    %611 = vmatpush1.msra.mxu0 0.0
    %612 = vmatprep.subr.mxu0 0.0
    %613 = vmatpush1.msra.mxu0 0.0
    %614 = vmatprep.subr.mxu0 0.0
    %615 = vmatpush1.msra.mxu0 0.0
    %616 = vmatprep.subr.mxu0 0.0
    %617 = vmatpush1.msra.mxu0 0.0
    %618 = vmatprep.subr.mxu0 0.0
    %619 = vmatpush1.msra.mxu0 0.0
    %620 = vmatprep.subr.mxu0 0.0
    %621 = vmatpush1.msra.mxu0 0.0
    %622 = vmatprep.subr.mxu0 0.0
    %623 = vmatpush1.msra.mxu0 0.0
    %624 = vmatprep.subr.mxu0 0.0
    %625 = vmatpush1.msra.mxu0 0.0
    %626 = vmatprep.subr.mxu0 0.0
    %627 = vmatpush1.msra.mxu0 0.0
    %628 = vmatprep.subr.mxu0 0.0
    %629 = vmatpush1.msra.mxu0 0.0
    %630 = vmatprep.subr.mxu0 0.0
    %631 = vmatpush1.msra.mxu0 0.0
    %632 = vmatprep.subr.mxu0 0.0
    %633 = vmatpush1.msra.mxu0 0.0
    %634 = vmatprep.subr.mxu0 0.0
    %635 = vmatpush1.msra.mxu0 0.0
    %636 = vmatprep.subr.mxu0 0.0
    %637 = vmatpush1.msra.mxu0 0.0
    %638 = vmatprep.subr.mxu0 0.0
    %639 = vmatpush1.msra.mxu0 0.0
    %640 = vmatprep.subr.mxu0 0.0
    %641 = vmatpush1.msra.mxu0 0.0
    %642 = vmatprep.mubr.f32.mxu0 0.0
    %643 = vmatmul.mubr.f32.gmra.mrb[0].mxu0 %v430
    %v644 = vpop.f32.mrb[0].mxu0
    %v645 = vadd.f32 0.0, %v644
    %v646 = vpop.f32.mrb[0].mxu0
    %v647 = vadd.f32 0.0, %v646
    %648 = vdwg.mxu0
    %v649 = vadd.f32 %v439, %v574
    %v650 = vadd.f32 %v440, %v576
    %v651 = vadd.f32 %v441, %v645
    %v652 = vadd.f32 %v442, %v647
    %v653 = vxor.u32 %v649, 2147483648
    %v654 = vmul.f32 %v653, 1.442695
    %v655 = vpow.pop %v654
    %v656 = vadd.f32 %v655, 1.0
    %v657 = vrcp.pop %v656
    %v658 = vmul.f32 1.0, %v657
    %v659 = vxor.u32 %v650, 2147483648
    %v660 = vmul.f32 %v659, 1.442695
    %v661 = vpow.pop %v660
    %v662 = vadd.f32 %v661, 1.0
    %v663 = vrcp.pop %v662
    %v664 = vmul.f32 1.0, %v663
    %v665 = vtanh.pop %v651
    %v666 = vxor.u32 %v652, 2147483648
    %v667 = vmul.f32 %v666, 1.442695
    %v668 = vpow.pop %v667
    %v669 = vadd.f32 %v668, 1.0
    %v670 = vrcp.pop %v669
    %v671 = vmul.f32 1.0, %v670
    %v672 = vmul.f32 %v664, %v431
    %v673 = vmul.f32 %v658, %v665
    %v674 = vadd.f32 %v672, %v673
    %v675 = vtanh.pop %v674
    %v676 = vmul.f32 %v671, %v675
    %v677 = vld [vmem:[#allocation8] sm:$0xff]
    %v678 = vld [vmem:[#allocation8 + $0x8] sm:$0xff]
    %v679 = vld [vmem:[#allocation8 + $0x10] sm:$0xff]
    %v680 = vld [vmem:[#allocation8 + $0x18] sm:$0xff]
    %v681 = vld [vmem:[#allocation8 + $0x20] sm:$0xff]
    %v682 = vld [vmem:[#allocation8 + $0x28] sm:$0xff]
    %v683 = vld [vmem:[#allocation8 + $0x30] sm:$0xff]
    %v684 = vld [vmem:[#allocation8 + $0x38] sm:$0xff]
    %v685 = vld [vmem:[#allocation8 + $0x40] sm:$0xff]
    %v686 = vld [vmem:[#allocation8 + $0x48] sm:$0xff]
    %v687 = vld [vmem:[#allocation8 + $0x50] sm:$0xff]
    %v688 = vld [vmem:[#allocation8 + $0x58] sm:$0xff]
    %v689 = vld [vmem:[#allocation8 + $0x60] sm:$0xff]
    %v690 = vld [vmem:[#allocation8 + $0x68] sm:$0xff]
    %v691 = vld [vmem:[#allocation8 + $0x70] sm:$0xff]
    %v692 = vld [vmem:[#allocation8 + $0x78] sm:$0xff]
    %v693 = vld [vmem:[#allocation8 + $0x80] sm:$0xff]
    %v694 = vld [vmem:[#allocation8 + $0x88] sm:$0xff]
    %v695 = vld [vmem:[#allocation8 + $0x90] sm:$0xff]
    %v696 = vld [vmem:[#allocation8 + $0x98] sm:$0xff]
    %v697 = vld [vmem:[#allocation8 + $0xa0] sm:$0xff]
    %v698 = vld [vmem:[#allocation8 + $0xa8] sm:$0xff]
    %v699 = vld [vmem:[#allocation8 + $0xb0] sm:$0xff]
    %v700 = vld [vmem:[#allocation8 + $0xb8] sm:$0xff]
    %v701 = vld [vmem:[#allocation8 + $0xc0] sm:$0xff]
    %v702 = vld [vmem:[#allocation8 + $0xc8] sm:$0xff]
    %v703 = vld [vmem:[#allocation8 + $0xd0] sm:$0xff]
    %v704 = vld [vmem:[#allocation8 + $0xd8] sm:$0xff]
    %v705 = vld [vmem:[#allocation8 + $0xe0] sm:$0xff]
    %v706 = vld [vmem:[#allocation8 + $0xe8] sm:$0xff]
    %v707 = vld [vmem:[#allocation8 + $0xf0] sm:$0xff]
    %v708 = vld [vmem:[#allocation8 + $0xf8] sm:$0xff]
    %v709 = vld [vmem:[#allocation8 + $0x100] sm:$0xff]
    %v710 = vld [vmem:[#allocation8 + $0x108] sm:$0xff]
    %v711 = vld [vmem:[#allocation8 + $0x110] sm:$0xff]
    %v712 = vld [vmem:[#allocation8 + $0x118] sm:$0xff]
    %v713 = vld [vmem:[#allocation8 + $0x120] sm:$0xff]
    %v714 = vld [vmem:[#allocation8 + $0x128] sm:$0xff]
    %v715 = vld [vmem:[#allocation8 + $0x130] sm:$0xff]
    %v716 = vld [vmem:[#allocation8 + $0x138] sm:$0xff]
    %v717 = vld [vmem:[#allocation8 + $0x140] sm:$0xff]
    %v718 = vld [vmem:[#allocation8 + $0x148] sm:$0xff]
    %v719 = vld [vmem:[#allocation8 + $0x150] sm:$0xff]
    %v720 = vld [vmem:[#allocation8 + $0x158] sm:$0xff]
    %v721 = vld [vmem:[#allocation8 + $0x160] sm:$0xff]
    %v722 = vld [vmem:[#allocation8 + $0x168] sm:$0xff]
    %v723 = vld [vmem:[#allocation8 + $0x170] sm:$0xff]
    %v724 = vld [vmem:[#allocation8 + $0x178] sm:$0xff]
    %v725 = vld [vmem:[#allocation8 + $0x180] sm:$0xff]
    %v726 = vld [vmem:[#allocation8 + $0x188] sm:$0xff]
    %v727 = vld [vmem:[#allocation8 + $0x190] sm:$0xff]
    %v728 = vld [vmem:[#allocation8 + $0x198] sm:$0xff]
    %v729 = vld [vmem:[#allocation8 + $0x1a0] sm:$0xff]
    %v730 = vld [vmem:[#allocation8 + $0x1a8] sm:$0xff]
    %v731 = vld [vmem:[#allocation8 + $0x1b0] sm:$0xff]
    %v732 = vld [vmem:[#allocation8 + $0x1b8] sm:$0xff]
    %v733 = vld [vmem:[#allocation8 + $0x1c0] sm:$0xff]
    %v734 = vld [vmem:[#allocation8 + $0x1c8] sm:$0xff]
    %v735 = vld [vmem:[#allocation8 + $0x1d0] sm:$0xff]
    %v736 = vld [vmem:[#allocation8 + $0x1d8] sm:$0xff]
    %v737 = vld [vmem:[#allocation8 + $0x1e0] sm:$0xff]
    %v738 = vld [vmem:[#allocation8 + $0x1e8] sm:$0xff]
    %v739 = vld [vmem:[#allocation8 + $0x1f0] sm:$0xff]
    %v740 = vld [vmem:[#allocation8 + $0x1f8] sm:$0xff]
    %v741 = vld [vmem:[#allocation10] sm:$0xff]
    %v742 = vld [vmem:[#allocation10 + $0x8] sm:$0xff]
    %v743 = vld [vmem:[#allocation10 + $0x10] sm:$0xff]
    %v744 = vld [vmem:[#allocation10 + $0x18] sm:$0xff]
    %v745 = vld [vmem:[#allocation10 + $0x20] sm:$0xff]
    %v746 = vld [vmem:[#allocation10 + $0x28] sm:$0xff]
    %v747 = vld [vmem:[#allocation10 + $0x30] sm:$0xff]
    %v748 = vld [vmem:[#allocation10 + $0x38] sm:$0xff]
    %v749 = vld [vmem:[#allocation10 + $0x40] sm:$0xff]
    %v750 = vld [vmem:[#allocation10 + $0x48] sm:$0xff]
    %v751 = vld [vmem:[#allocation10 + $0x50] sm:$0xff]
    %v752 = vld [vmem:[#allocation10 + $0x58] sm:$0xff]
    %v753 = vld [vmem:[#allocation10 + $0x60] sm:$0xff]
    %v754 = vld [vmem:[#allocation10 + $0x68] sm:$0xff]
    %v755 = vld [vmem:[#allocation10 + $0x70] sm:$0xff]
    %v756 = vld [vmem:[#allocation10 + $0x78] sm:$0xff]
    %v757 = vld [vmem:[#allocation10 + $0x80] sm:$0xff]
    %v758 = vld [vmem:[#allocation10 + $0x88] sm:$0xff]
    %v759 = vld [vmem:[#allocation10 + $0x90] sm:$0xff]
    %v760 = vld [vmem:[#allocation10 + $0x98] sm:$0xff]
    %v761 = vld [vmem:[#allocation10 + $0xa0] sm:$0xff]
    %v762 = vld [vmem:[#allocation10 + $0xa8] sm:$0xff]
    %v763 = vld [vmem:[#allocation10 + $0xb0] sm:$0xff]
    %v764 = vld [vmem:[#allocation10 + $0xb8] sm:$0xff]
    %v765 = vld [vmem:[#allocation10 + $0xc0] sm:$0xff]
    %v766 = vld [vmem:[#allocation10 + $0xc8] sm:$0xff]
    %v767 = vld [vmem:[#allocation10 + $0xd0] sm:$0xff]
    %v768 = vld [vmem:[#allocation10 + $0xd8] sm:$0xff]
    %v769 = vld [vmem:[#allocation10 + $0xe0] sm:$0xff]
    %v770 = vld [vmem:[#allocation10 + $0xe8] sm:$0xff]
    %v771 = vld [vmem:[#allocation10 + $0xf0] sm:$0xff]
    %v772 = vld [vmem:[#allocation10 + $0xf8] sm:$0xff]
    %v773 = vld [vmem:[#allocation10 + $0x100] sm:$0xff]
    %v774 = vld [vmem:[#allocation10 + $0x108] sm:$0xff]
    %v775 = vld [vmem:[#allocation10 + $0x110] sm:$0xff]
    %v776 = vld [vmem:[#allocation10 + $0x118] sm:$0xff]
    %v777 = vld [vmem:[#allocation10 + $0x120] sm:$0xff]
    %v778 = vld [vmem:[#allocation10 + $0x128] sm:$0xff]
    %v779 = vld [vmem:[#allocation10 + $0x130] sm:$0xff]
    %v780 = vld [vmem:[#allocation10 + $0x138] sm:$0xff]
    %v781 = vld [vmem:[#allocation10 + $0x140] sm:$0xff]
    %v782 = vld [vmem:[#allocation10 + $0x148] sm:$0xff]
    %v783 = vld [vmem:[#allocation10 + $0x150] sm:$0xff]
    %v784 = vld [vmem:[#allocation10 + $0x158] sm:$0xff]
    %v785 = vld [vmem:[#allocation10 + $0x160] sm:$0xff]
    %v786 = vld [vmem:[#allocation10 + $0x168] sm:$0xff]
    %v787 = vld [vmem:[#allocation10 + $0x170] sm:$0xff]
    %v788 = vld [vmem:[#allocation10 + $0x178] sm:$0xff]
    %v789 = vld [vmem:[#allocation10 + $0x180] sm:$0xff]
    %v790 = vld [vmem:[#allocation10 + $0x188] sm:$0xff]
    %v791 = vld [vmem:[#allocation10 + $0x190] sm:$0xff]
    %v792 = vld [vmem:[#allocation10 + $0x198] sm:$0xff]
    %v793 = vld [vmem:[#allocation10 + $0x1a0] sm:$0xff]
    %v794 = vld [vmem:[#allocation10 + $0x1a8] sm:$0xff]
    %v795 = vld [vmem:[#allocation10 + $0x1b0] sm:$0xff]
    %v796 = vld [vmem:[#allocation10 + $0x1b8] sm:$0xff]
    %v797 = vld [vmem:[#allocation10 + $0x1c0] sm:$0xff]
    %v798 = vld [vmem:[#allocation10 + $0x1c8] sm:$0xff]
    %v799 = vld [vmem:[#allocation10 + $0x1d0] sm:$0xff]
    %v800 = vld [vmem:[#allocation10 + $0x1d8] sm:$0xff]
    %v801 = vld [vmem:[#allocation10 + $0x1e0] sm:$0xff]
    %v802 = vld [vmem:[#allocation10 + $0x1e8] sm:$0xff]
    %v803 = vld [vmem:[#allocation10 + $0x1f0] sm:$0xff]
    %v804 = vld [vmem:[#allocation10 + $0x1f8] sm:$0xff]
    %805 = vmatprep.subr.mxu0 %v742
    %806 = vmatpush1.msra.mxu0 %v741
    %807 = vmatprep.subr.mxu0 %v746
    %808 = vmatpush1.msra.mxu0 %v745
    %809 = vmatprep.subr.mxu0 %v750
    %810 = vmatpush1.msra.mxu0 %v749
    %811 = vmatprep.subr.mxu0 %v754
    %812 = vmatpush1.msra.mxu0 %v753
    %813 = vmatprep.subr.mxu0 %v758
    %814 = vmatpush1.msra.mxu0 %v757
    %815 = vmatprep.subr.mxu0 %v762
    %816 = vmatpush1.msra.mxu0 %v761
    %817 = vmatprep.subr.mxu0 %v766
    %818 = vmatpush1.msra.mxu0 %v765
    %819 = vmatprep.subr.mxu0 %v770
    %820 = vmatpush1.msra.mxu0 %v769
    %821 = vmatprep.subr.mxu0 %v774
    %822 = vmatpush1.msra.mxu0 %v773
    %823 = vmatprep.subr.mxu0 %v778
    %824 = vmatpush1.msra.mxu0 %v777
    %825 = vmatprep.subr.mxu0 %v782
    %826 = vmatpush1.msra.mxu0 %v781
    %827 = vmatprep.subr.mxu0 %v786
    %828 = vmatpush1.msra.mxu0 %v785
    %829 = vmatprep.subr.mxu0 %v790
    %830 = vmatpush1.msra.mxu0 %v789
    %831 = vmatprep.subr.mxu0 %v794
    %832 = vmatpush1.msra.mxu0 %v793
    %833 = vmatprep.subr.mxu0 %v798
    %834 = vmatpush1.msra.mxu0 %v797
    %835 = vmatprep.subr.mxu0 %v802
    %836 = vmatpush1.msra.mxu0 %v801
    %837 = vmatprep.subr.mxu0 0.0
    %838 = vmatpush1.msra.mxu0 0.0
    %839 = vmatprep.subr.mxu0 0.0
    %840 = vmatpush1.msra.mxu0 0.0
    %841 = vmatprep.subr.mxu0 0.0
    %842 = vmatpush1.msra.mxu0 0.0
    %843 = vmatprep.subr.mxu0 0.0
    %844 = vmatpush1.msra.mxu0 0.0
    %845 = vmatprep.subr.mxu0 0.0
    %846 = vmatpush1.msra.mxu0 0.0
    %847 = vmatprep.subr.mxu0 0.0
    %848 = vmatpush1.msra.mxu0 0.0
    %849 = vmatprep.subr.mxu0 0.0
    %850 = vmatpush1.msra.mxu0 0.0
    %851 = vmatprep.subr.mxu0 0.0
    %852 = vmatpush1.msra.mxu0 0.0
    %853 = vmatprep.subr.mxu0 0.0
    %854 = vmatpush1.msra.mxu0 0.0
    %855 = vmatprep.subr.mxu0 0.0
    %856 = vmatpush1.msra.mxu0 0.0
    %857 = vmatprep.subr.mxu0 0.0
    %858 = vmatpush1.msra.mxu0 0.0
    %859 = vmatprep.subr.mxu0 0.0
    %860 = vmatpush1.msra.mxu0 0.0
    %861 = vmatprep.subr.mxu0 0.0
    %862 = vmatpush1.msra.mxu0 0.0
    %863 = vmatprep.subr.mxu0 0.0
    %864 = vmatpush1.msra.mxu0 0.0
    %865 = vmatprep.subr.mxu0 0.0
    %866 = vmatpush1.msra.mxu0 0.0
    %867 = vmatprep.subr.mxu0 0.0
    %868 = vmatpush1.msra.mxu0 0.0
    %869 = vmatprep.mubr.f32.mxu0 0.0
    %870 = vmatmul.mubr.f32.gmra.mrb[0].mxu0 %v433
    %v871 = vpop.f32.mrb[0].mxu0
    %v872 = vadd.f32 0.0, %v871
    %v873 = vpop.f32.mrb[0].mxu0
    %v874 = vadd.f32 0.0, %v873
    %875 = vdwg.mxu0
    %876 = vmatprep.subr.mxu0 %v744
    %877 = vmatpush1.msra.mxu0 %v743
    %878 = vmatprep.subr.mxu0 %v748
    %879 = vmatpush1.msra.mxu0 %v747
    %880 = vmatprep.subr.mxu0 %v752
    %881 = vmatpush1.msra.mxu0 %v751
    %882 = vmatprep.subr.mxu0 %v756
    %883 = vmatpush1.msra.mxu0 %v755
    %884 = vmatprep.subr.mxu0 %v760
    %885 = vmatpush1.msra.mxu0 %v759
    %886 = vmatprep.subr.mxu0 %v764
    %887 = vmatpush1.msra.mxu0 %v763
    %888 = vmatprep.subr.mxu0 %v768
    %889 = vmatpush1.msra.mxu0 %v767
    %890 = vmatprep.subr.mxu0 %v772
    %891 = vmatpush1.msra.mxu0 %v771
    %892 = vmatprep.subr.mxu0 %v776
    %893 = vmatpush1.msra.mxu0 %v775
    %894 = vmatprep.subr.mxu0 %v780
    %895 = vmatpush1.msra.mxu0 %v779
    %896 = vmatprep.subr.mxu0 %v784
    %897 = vmatpush1.msra.mxu0 %v783
    %898 = vmatprep.subr.mxu0 %v788
    %899 = vmatpush1.msra.mxu0 %v787
    %900 = vmatprep.subr.mxu0 %v792
    %901 = vmatpush1.msra.mxu0 %v791
    %902 = vmatprep.subr.mxu0 %v796
    %903 = vmatpush1.msra.mxu0 %v795
    %904 = vmatprep.subr.mxu0 %v800
    %905 = vmatpush1.msra.mxu0 %v799
    %906 = vmatprep.subr.mxu0 %v804
    %907 = vmatpush1.msra.mxu0 %v803
    %908 = vmatprep.subr.mxu0 0.0
    %909 = vmatpush1.msra.mxu0 0.0
    %910 = vmatprep.subr.mxu0 0.0
    %911 = vmatpush1.msra.mxu0 0.0
    %912 = vmatprep.subr.mxu0 0.0
    %913 = vmatpush1.msra.mxu0 0.0
    %914 = vmatprep.subr.mxu0 0.0
    %915 = vmatpush1.msra.mxu0 0.0
    %916 = vmatprep.subr.mxu0 0.0
    %917 = vmatpush1.msra.mxu0 0.0
    %918 = vmatprep.subr.mxu0 0.0
    %919 = vmatpush1.msra.mxu0 0.0
    %920 = vmatprep.subr.mxu0 0.0
    %921 = vmatpush1.msra.mxu0 0.0
    %922 = vmatprep.subr.mxu0 0.0
    %923 = vmatpush1.msra.mxu0 0.0
    %924 = vmatprep.subr.mxu0 0.0
    %925 = vmatpush1.msra.mxu0 0.0
    %926 = vmatprep.subr.mxu0 0.0
    %927 = vmatpush1.msra.mxu0 0.0
    %928 = vmatprep.subr.mxu0 0.0
    %929 = vmatpush1.msra.mxu0 0.0
    %930 = vmatprep.subr.mxu0 0.0
    %931 = vmatpush1.msra.mxu0 0.0
    %932 = vmatprep.subr.mxu0 0.0
    %933 = vmatpush1.msra.mxu0 0.0
    %934 = vmatprep.subr.mxu0 0.0
    %935 = vmatpush1.msra.mxu0 0.0
    %936 = vmatprep.subr.mxu0 0.0
    %937 = vmatpush1.msra.mxu0 0.0
    %938 = vmatprep.subr.mxu0 0.0
    %939 = vmatpush1.msra.mxu0 0.0
    %940 = vmatprep.mubr.f32.mxu0 0.0
    %941 = vmatmul.mubr.f32.gmra.mrb[0].mxu0 %v433
    %v942 = vpop.f32.mrb[0].mxu0
    %v943 = vadd.f32 0.0, %v942
    %v944 = vpop.f32.mrb[0].mxu0
    %v945 = vadd.f32 0.0, %v944
    %946 = vdwg.mxu0
    %947 = vmatprep.subr.mxu0 %v678
    %948 = vmatpush1.msra.mxu0 %v677
    %949 = vmatprep.subr.mxu0 %v682
    %950 = vmatpush1.msra.mxu0 %v681
    %951 = vmatprep.subr.mxu0 %v686
    %952 = vmatpush1.msra.mxu0 %v685
    %953 = vmatprep.subr.mxu0 %v690
    %954 = vmatpush1.msra.mxu0 %v689
    %955 = vmatprep.subr.mxu0 %v694
    %956 = vmatpush1.msra.mxu0 %v693
    %957 = vmatprep.subr.mxu0 %v698
    %958 = vmatpush1.msra.mxu0 %v697
    %959 = vmatprep.subr.mxu0 %v702
    %960 = vmatpush1.msra.mxu0 %v701
    %961 = vmatprep.subr.mxu0 %v706
    %962 = vmatpush1.msra.mxu0 %v705
    %963 = vmatprep.subr.mxu0 %v710
    %964 = vmatpush1.msra.mxu0 %v709
    %965 = vmatprep.subr.mxu0 %v714
    %966 = vmatpush1.msra.mxu0 %v713
    %967 = vmatprep.subr.mxu0 %v718
    %968 = vmatpush1.msra.mxu0 %v717
    %969 = vmatprep.subr.mxu0 %v722
    %970 = vmatpush1.msra.mxu0 %v721
    %971 = vmatprep.subr.mxu0 %v726
    %972 = vmatpush1.msra.mxu0 %v725
    %973 = vmatprep.subr.mxu0 %v730
    %974 = vmatpush1.msra.mxu0 %v729
    %975 = vmatprep.subr.mxu0 %v734
    %976 = vmatpush1.msra.mxu0 %v733
    %977 = vmatprep.subr.mxu0 %v738
    %978 = vmatpush1.msra.mxu0 %v737
    %979 = vmatprep.subr.mxu0 0.0
    %980 = vmatpush1.msra.mxu0 0.0
    %981 = vmatprep.subr.mxu0 0.0
    %982 = vmatpush1.msra.mxu0 0.0
    %983 = vmatprep.subr.mxu0 0.0
    %984 = vmatpush1.msra.mxu0 0.0
    %985 = vmatprep.subr.mxu0 0.0
    %986 = vmatpush1.msra.mxu0 0.0
    %987 = vmatprep.subr.mxu0 0.0
    %988 = vmatpush1.msra.mxu0 0.0
    %989 = vmatprep.subr.mxu0 0.0
    %990 = vmatpush1.msra.mxu0 0.0
    %991 = vmatprep.subr.mxu0 0.0
    %992 = vmatpush1.msra.mxu0 0.0
    %993 = vmatprep.subr.mxu0 0.0
    %994 = vmatpush1.msra.mxu0 0.0
    %995 = vmatprep.subr.mxu0 0.0
    %996 = vmatpush1.msra.mxu0 0.0
    %997 = vmatprep.subr.mxu0 0.0
    %998 = vmatpush1.msra.mxu0 0.0
    %999 = vmatprep.subr.mxu0 0.0
    %1000 = vmatpush1.msra.mxu0 0.0
    %1001 = vmatprep.subr.mxu0 0.0
    %1002 = vmatpush1.msra.mxu0 0.0
    %1003 = vmatprep.subr.mxu0 0.0
    %1004 = vmatpush1.msra.mxu0 0.0
    %1005 = vmatprep.subr.mxu0 0.0
    %1006 = vmatpush1.msra.mxu0 0.0
    %1007 = vmatprep.subr.mxu0 0.0
    %1008 = vmatpush1.msra.mxu0 0.0
    %1009 = vmatprep.subr.mxu0 0.0
    %1010 = vmatpush1.msra.mxu0 0.0
    %1011 = vmatprep.mubr.f32.mxu0 0.0
    %1012 = vmatmul.mubr.f32.gmra.mrb[0].mxu0 %v676
    %v1013 = vpop.f32.mrb[0].mxu0
    %v1014 = vadd.f32 %v872, %v1013
    %v1015 = vpop.f32.mrb[0].mxu0
    %v1016 = vadd.f32 %v874, %v1015
    %1017 = vdwg.mxu0
    %1018 = vmatprep.subr.mxu0 %v680
    %1019 = vmatpush1.msra.mxu0 %v679
    %1020 = vmatprep.subr.mxu0 %v684
    %1021 = vmatpush1.msra.mxu0 %v683
    %1022 = vmatprep.subr.mxu0 %v688
    %1023 = vmatpush1.msra.mxu0 %v687
    %1024 = vmatprep.subr.mxu0 %v692
    %1025 = vmatpush1.msra.mxu0 %v691
    %1026 = vmatprep.subr.mxu0 %v696
    %1027 = vmatpush1.msra.mxu0 %v695
    %1028 = vmatprep.subr.mxu0 %v700
    %1029 = vmatpush1.msra.mxu0 %v699
    %1030 = vmatprep.subr.mxu0 %v704
    %1031 = vmatpush1.msra.mxu0 %v703
    %1032 = vmatprep.subr.mxu0 %v708
    %1033 = vmatpush1.msra.mxu0 %v707
    %1034 = vmatprep.subr.mxu0 %v712
    %1035 = vmatpush1.msra.mxu0 %v711
    %1036 = vmatprep.subr.mxu0 %v716
    %1037 = vmatpush1.msra.mxu0 %v715
    %1038 = vmatprep.subr.mxu0 %v720
    %1039 = vmatpush1.msra.mxu0 %v719
    %1040 = vmatprep.subr.mxu0 %v724
    %1041 = vmatpush1.msra.mxu0 %v723
    %1042 = vmatprep.subr.mxu0 %v728
    %1043 = vmatpush1.msra.mxu0 %v727
    %1044 = vmatprep.subr.mxu0 %v732
    %1045 = vmatpush1.msra.mxu0 %v731
    %1046 = vmatprep.subr.mxu0 %v736
    %1047 = vmatpush1.msra.mxu0 %v735
    %1048 = vmatprep.subr.mxu0 %v740
    %1049 = vmatpush1.msra.mxu0 %v739
    %1050 = vmatprep.subr.mxu0 0.0
    %1051 = vmatpush1.msra.mxu0 0.0
    %1052 = vmatprep.subr.mxu0 0.0
    %1053 = vmatpush1.msra.mxu0 0.0
    %1054 = vmatprep.subr.mxu0 0.0
    %1055 = vmatpush1.msra.mxu0 0.0
    %1056 = vmatprep.subr.mxu0 0.0
    %1057 = vmatpush1.msra.mxu0 0.0
    %1058 = vmatprep.subr.mxu0 0.0
    %1059 = vmatpush1.msra.mxu0 0.0
    %1060 = vmatprep.subr.mxu0 0.0
    %1061 = vmatpush1.msra.mxu0 0.0
    %1062 = vmatprep.subr.mxu0 0.0
    %1063 = vmatpush1.msra.mxu0 0.0
    %1064 = vmatprep.subr.mxu0 0.0
    %1065 = vmatpush1.msra.mxu0 0.0
    %1066 = vmatprep.subr.mxu0 0.0
    %1067 = vmatpush1.msra.mxu0 0.0
    %1068 = vmatprep.subr.mxu0 0.0
    %1069 = vmatpush1.msra.mxu0 0.0
    %1070 = vmatprep.subr.mxu0 0.0
    %1071 = vmatpush1.msra.mxu0 0.0
    %1072 = vmatprep.subr.mxu0 0.0
    %1073 = vmatpush1.msra.mxu0 0.0
    %1074 = vmatprep.subr.mxu0 0.0
    %1075 = vmatpush1.msra.mxu0 0.0
    %1076 = vmatprep.subr.mxu0 0.0
    %1077 = vmatpush1.msra.mxu0 0.0
    %1078 = vmatprep.subr.mxu0 0.0
    %1079 = vmatpush1.msra.mxu0 0.0
    %1080 = vmatprep.subr.mxu0 0.0
    %1081 = vmatpush1.msra.mxu0 0.0
    %1082 = vmatprep.mubr.f32.mxu0 0.0
    %1083 = vmatmul.mubr.f32.gmra.mrb[0].mxu0 %v676
    %v1084 = vpop.f32.mrb[0].mxu0
    %v1085 = vadd.f32 %v943, %v1084
    %v1086 = vpop.f32.mrb[0].mxu0
    %v1087 = vadd.f32 %v945, %v1086
    %1088 = vdwg.mxu0
    %v1089 = vld [vmem:[%s8] sm:$0xf]
    %v1091 = vlaneseq
    %v1092 = vshrl.u32 %v1091, 7
    %v1093 = vsub.s32 0, %v1092
    %v1094 = vrot.slane %v1089, %v1093
    %v1095 = vlaneseq
    %v1096 = vshrl.u32 %v1095, 7
    %v1097 = vsub.s32 1, %v1096
    %v1098 = vrot.slane %v1089, %v1097
    %v1099 = vlaneseq
    %v1100 = vshrl.u32 %v1099, 7
    %v1101 = vsub.s32 2, %v1100
    %v1102 = vrot.slane %v1089, %v1101
    %v1103 = vlaneseq
    %v1104 = vshrl.u32 %v1103, 7
    %v1105 = vsub.s32 3, %v1104
    %v1106 = vrot.slane %v1089, %v1105
    %v1111 = vadd.f32 %v1014, %v1094
    %v1112 = vadd.f32 %v1016, %v1098
    %v1113 = vadd.f32 %v1085, %v1102
    %v1114 = vadd.f32 %v1087, %v1106
    %v1115 = vxor.u32 %v1111, 2147483648
    %v1116 = vmul.f32 %v1115, 1.442695
    %v1117 = vpow.pop %v1116
    %v1118 = vadd.f32 %v1117, 1.0
    %v1119 = vrcp.pop %v1118
    %v1120 = vmul.f32 1.0, %v1119
    %v1121 = vxor.u32 %v1112, 2147483648
    %v1122 = vmul.f32 %v1121, 1.442695
    %v1123 = vpow.pop %v1122
    %v1124 = vadd.f32 %v1123, 1.0
    %v1125 = vrcp.pop %v1124
    %v1126 = vmul.f32 1.0, %v1125
    %v1127 = vtanh.pop %v1113
    %v1128 = vxor.u32 %v1114, 2147483648
    %v1129 = vmul.f32 %v1128, 1.442695
    %v1130 = vpow.pop %v1129
    %v1131 = vadd.f32 %v1130, 1.0
    %v1132 = vrcp.pop %v1131
    %v1133 = vmul.f32 1.0, %v1132
    %v1134 = vmul.f32 %v1126, %v435
    %v1135 = vmul.f32 %v1120, %v1127
    %v1136 = vadd.f32 %v1134, %v1135
    %v1137 = vtanh.pop %v1136
    %v1138 = vmul.f32 %v1133, %v1137
    %s1139 = smul.u32 1, 4
    %s1140 = smul.addr %s1139, 8
    %s1141 = scalar_lea.vmem [#allocation4], %s1140
    %v1142 = vld [vmem:[%s1141] sm:$0xff]
    %v1143 = vld [vmem:[%s1141 + $0x8] sm:$0xff]
    %v1144 = vld [vmem:[%s1141 + $0x10] sm:$0xff]
    %v1145 = vld [vmem:[%s1141 + $0x18] sm:$0xff]
    %1146 = vmatprep.subr.mxu0 %v444
    %1147 = vmatpush1.msra.mxu0 %v443
    %1148 = vmatprep.subr.mxu0 %v448
    %1149 = vmatpush1.msra.mxu0 %v447
    %1150 = vmatprep.subr.mxu0 %v452
    %1151 = vmatpush1.msra.mxu0 %v451
    %1152 = vmatprep.subr.mxu0 %v456
    %1153 = vmatpush1.msra.mxu0 %v455
    %1154 = vmatprep.subr.mxu0 %v460
    %1155 = vmatpush1.msra.mxu0 %v459
    %1156 = vmatprep.subr.mxu0 %v464
    %1157 = vmatpush1.msra.mxu0 %v463
    %1158 = vmatprep.subr.mxu0 %v468
    %1159 = vmatpush1.msra.mxu0 %v467
    %1160 = vmatprep.subr.mxu0 %v472
    %1161 = vmatpush1.msra.mxu0 %v471
    %1162 = vmatprep.subr.mxu0 %v476
    %1163 = vmatpush1.msra.mxu0 %v475
    %1164 = vmatprep.subr.mxu0 %v480
    %1165 = vmatpush1.msra.mxu0 %v479
    %1166 = vmatprep.subr.mxu0 %v484
    %1167 = vmatpush1.msra.mxu0 %v483
    %1168 = vmatprep.subr.mxu0 %v488
    %1169 = vmatpush1.msra.mxu0 %v487
    %1170 = vmatprep.subr.mxu0 %v492
    %1171 = vmatpush1.msra.mxu0 %v491
    %1172 = vmatprep.subr.mxu0 %v496
    %1173 = vmatpush1.msra.mxu0 %v495
    %1174 = vmatprep.subr.mxu0 %v500
    %1175 = vmatpush1.msra.mxu0 %v499
    %1176 = vmatprep.subr.mxu0 %v504
    %1177 = vmatpush1.msra.mxu0 %v503
    %1178 = vmatprep.subr.mxu0 0.0
    %1179 = vmatpush1.msra.mxu0 0.0
    %1180 = vmatprep.subr.mxu0 0.0
    %1181 = vmatpush1.msra.mxu0 0.0
    %1182 = vmatprep.subr.mxu0 0.0
    %1183 = vmatpush1.msra.mxu0 0.0
    %1184 = vmatprep.subr.mxu0 0.0
    %1185 = vmatpush1.msra.mxu0 0.0
    %1186 = vmatprep.subr.mxu0 0.0
    %1187 = vmatpush1.msra.mxu0 0.0
    %1188 = vmatprep.subr.mxu0 0.0
    %1189 = vmatpush1.msra.mxu0 0.0
    %1190 = vmatprep.subr.mxu0 0.0
    %1191 = vmatpush1.msra.mxu0 0.0
    %1192 = vmatprep.subr.mxu0 0.0
    %1193 = vmatpush1.msra.mxu0 0.0
    %1194 = vmatprep.subr.mxu0 0.0
    %1195 = vmatpush1.msra.mxu0 0.0
    %1196 = vmatprep.subr.mxu0 0.0
    %1197 = vmatpush1.msra.mxu0 0.0
    %1198 = vmatprep.subr.mxu0 0.0
    %1199 = vmatpush1.msra.mxu0 0.0
    %1200 = vmatprep.subr.mxu0 0.0
    %1201 = vmatpush1.msra.mxu0 0.0
    %1202 = vmatprep.subr.mxu0 0.0
    %1203 = vmatpush1.msra.mxu0 0.0
    %1204 = vmatprep.subr.mxu0 0.0
    %1205 = vmatpush1.msra.mxu0 0.0
    %1206 = vmatprep.subr.mxu0 0.0
    %1207 = vmatpush1.msra.mxu0 0.0
    %1208 = vmatprep.subr.mxu0 0.0
    %1209 = vmatpush1.msra.mxu0 0.0
    %1210 = vmatprep.mubr.f32.mxu0 0.0
    %1211 = vmatmul.mubr.f32.gmra.mrb[0].mxu0 %v676
    %v1212 = vpop.f32.mrb[0].mxu0
    %v1213 = vadd.f32 0.0, %v1212
    %v1214 = vpop.f32.mrb[0].mxu0
    %v1215 = vadd.f32 0.0, %v1214
    %1216 = vdwg.mxu0
    %1217 = vmatprep.subr.mxu0 %v446
    %1218 = vmatpush1.msra.mxu0 %v445
    %1219 = vmatprep.subr.mxu0 %v450
    %1220 = vmatpush1.msra.mxu0 %v449
    %1221 = vmatprep.subr.mxu0 %v454
    %1222 = vmatpush1.msra.mxu0 %v453
    %1223 = vmatprep.subr.mxu0 %v458
    %1224 = vmatpush1.msra.mxu0 %v457
    %1225 = vmatprep.subr.mxu0 %v462
    %1226 = vmatpush1.msra.mxu0 %v461
    %1227 = vmatprep.subr.mxu0 %v466
    %1228 = vmatpush1.msra.mxu0 %v465
    %1229 = vmatprep.subr.mxu0 %v470
    %1230 = vmatpush1.msra.mxu0 %v469
    %1231 = vmatprep.subr.mxu0 %v474
    %1232 = vmatpush1.msra.mxu0 %v473
    %1233 = vmatprep.subr.mxu0 %v478
    %1234 = vmatpush1.msra.mxu0 %v477
    %1235 = vmatprep.subr.mxu0 %v482
    %1236 = vmatpush1.msra.mxu0 %v481
    %1237 = vmatprep.subr.mxu0 %v486
    %1238 = vmatpush1.msra.mxu0 %v485
    %1239 = vmatprep.subr.mxu0 %v490
    %1240 = vmatpush1.msra.mxu0 %v489
    %1241 = vmatprep.subr.mxu0 %v494
    %1242 = vmatpush1.msra.mxu0 %v493
    %1243 = vmatprep.subr.mxu0 %v498
    %1244 = vmatpush1.msra.mxu0 %v497
    %1245 = vmatprep.subr.mxu0 %v502
    %1246 = vmatpush1.msra.mxu0 %v501
    %1247 = vmatprep.subr.mxu0 %v506
    %1248 = vmatpush1.msra.mxu0 %v505
    %1249 = vmatprep.subr.mxu0 0.0
    %1250 = vmatpush1.msra.mxu0 0.0
    %1251 = vmatprep.subr.mxu0 0.0
    %1252 = vmatpush1.msra.mxu0 0.0
    %1253 = vmatprep.subr.mxu0 0.0
    %1254 = vmatpush1.msra.mxu0 0.0
    %1255 = vmatprep.subr.mxu0 0.0
    %1256 = vmatpush1.msra.mxu0 0.0
    %1257 = vmatprep.subr.mxu0 0.0
    %1258 = vmatpush1.msra.mxu0 0.0
    %1259 = vmatprep.subr.mxu0 0.0
    %1260 = vmatpush1.msra.mxu0 0.0
    %1261 = vmatprep.subr.mxu0 0.0
    %1262 = vmatpush1.msra.mxu0 0.0
    %1263 = vmatprep.subr.mxu0 0.0
    %1264 = vmatpush1.msra.mxu0 0.0
    %1265 = vmatprep.subr.mxu0 0.0
    %1266 = vmatpush1.msra.mxu0 0.0
    %1267 = vmatprep.subr.mxu0 0.0
    %1268 = vmatpush1.msra.mxu0 0.0
    %1269 = vmatprep.subr.mxu0 0.0
    %1270 = vmatpush1.msra.mxu0 0.0
    %1271 = vmatprep.subr.mxu0 0.0
    %1272 = vmatpush1.msra.mxu0 0.0
    %1273 = vmatprep.subr.mxu0 0.0
    %1274 = vmatpush1.msra.mxu0 0.0
    %1275 = vmatprep.subr.mxu0 0.0
    %1276 = vmatpush1.msra.mxu0 0.0
    %1277 = vmatprep.subr.mxu0 0.0
    %1278 = vmatpush1.msra.mxu0 0.0
    %1279 = vmatprep.subr.mxu0 0.0
    %1280 = vmatpush1.msra.mxu0 0.0
    %1281 = vmatprep.mubr.f32.mxu0 0.0
    %1282 = vmatmul.mubr.f32.gmra.mrb[0].mxu0 %v676
    %v1283 = vpop.f32.mrb[0].mxu0
    %v1284 = vadd.f32 0.0, %v1283
    %v1285 = vpop.f32.mrb[0].mxu0
    %v1286 = vadd.f32 0.0, %v1285
    %1287 = vdwg.mxu0
    %v1288 = vadd.f32 %v1142, %v1213
    %v1289 = vadd.f32 %v1143, %v1215
    %v1290 = vadd.f32 %v1144, %v1284
    %v1291 = vadd.f32 %v1145, %v1286
    %v1292 = vxor.u32 %v1288, 2147483648
    %v1293 = vmul.f32 %v1292, 1.442695
    %v1294 = vpow.pop %v1293
    %v1295 = vadd.f32 %v1294, 1.0
    %v1296 = vrcp.pop %v1295
    %v1297 = vmul.f32 1.0, %v1296
    %v1298 = vxor.u32 %v1289, 2147483648
    %v1299 = vmul.f32 %v1298, 1.442695
    %v1300 = vpow.pop %v1299
    %v1301 = vadd.f32 %v1300, 1.0
    %v1302 = vrcp.pop %v1301
    %v1303 = vmul.f32 1.0, %v1302
    %v1304 = vtanh.pop %v1290
    %v1305 = vxor.u32 %v1291, 2147483648
    %v1306 = vmul.f32 %v1305, 1.442695
    %v1307 = vpow.pop %v1306
    %v1308 = vadd.f32 %v1307, 1.0
    %v1309 = vrcp.pop %v1308
    %v1310 = vmul.f32 1.0, %v1309
    %v1311 = vmul.f32 %v1303, %v674
    %v1312 = vmul.f32 %v1297, %v1304
    %v1313 = vadd.f32 %v1311, %v1312
    %v1314 = vtanh.pop %v1313
    %v1315 = vmul.f32 %v1310, %v1314
    %1316 = vmatprep.subr.mxu0 %v742
    %1317 = vmatpush1.msra.mxu0 %v741
    %1318 = vmatprep.subr.mxu0 %v746
    %1319 = vmatpush1.msra.mxu0 %v745
    %1320 = vmatprep.subr.mxu0 %v750
    %1321 = vmatpush1.msra.mxu0 %v749
    %1322 = vmatprep.subr.mxu0 %v754
    %1323 = vmatpush1.msra.mxu0 %v753
    %1324 = vmatprep.subr.mxu0 %v758
    %1325 = vmatpush1.msra.mxu0 %v757
    %1326 = vmatprep.subr.mxu0 %v762
    %1327 = vmatpush1.msra.mxu0 %v761
    %1328 = vmatprep.subr.mxu0 %v766
    %1329 = vmatpush1.msra.mxu0 %v765
    %1330 = vmatprep.subr.mxu0 %v770
    %1331 = vmatpush1.msra.mxu0 %v769
    %1332 = vmatprep.subr.mxu0 %v774
    %1333 = vmatpush1.msra.mxu0 %v773
    %1334 = vmatprep.subr.mxu0 %v778
    %1335 = vmatpush1.msra.mxu0 %v777
    %1336 = vmatprep.subr.mxu0 %v782
    %1337 = vmatpush1.msra.mxu0 %v781
    %1338 = vmatprep.subr.mxu0 %v786
    %1339 = vmatpush1.msra.mxu0 %v785
    %1340 = vmatprep.subr.mxu0 %v790
    %1341 = vmatpush1.msra.mxu0 %v789
    %1342 = vmatprep.subr.mxu0 %v794
    %1343 = vmatpush1.msra.mxu0 %v793
    %1344 = vmatprep.subr.mxu0 %v798
    %1345 = vmatpush1.msra.mxu0 %v797
    %1346 = vmatprep.subr.mxu0 %v802
    %1347 = vmatpush1.msra.mxu0 %v801
    %1348 = vmatprep.subr.mxu0 0.0
    %1349 = vmatpush1.msra.mxu0 0.0
    %1350 = vmatprep.subr.mxu0 0.0
    %1351 = vmatpush1.msra.mxu0 0.0
    %1352 = vmatprep.subr.mxu0 0.0
    %1353 = vmatpush1.msra.mxu0 0.0
    %1354 = vmatprep.subr.mxu0 0.0
    %1355 = vmatpush1.msra.mxu0 0.0
    %1356 = vmatprep.subr.mxu0 0.0
    %1357 = vmatpush1.msra.mxu0 0.0
    %1358 = vmatprep.subr.mxu0 0.0
    %1359 = vmatpush1.msra.mxu0 0.0
    %1360 = vmatprep.subr.mxu0 0.0
    %1361 = vmatpush1.msra.mxu0 0.0
    %1362 = vmatprep.subr.mxu0 0.0
    %1363 = vmatpush1.msra.mxu0 0.0
    %1364 = vmatprep.subr.mxu0 0.0
    %1365 = vmatpush1.msra.mxu0 0.0
    %1366 = vmatprep.subr.mxu0 0.0
    %1367 = vmatpush1.msra.mxu0 0.0
    %1368 = vmatprep.subr.mxu0 0.0
    %1369 = vmatpush1.msra.mxu0 0.0
    %1370 = vmatprep.subr.mxu0 0.0
    %1371 = vmatpush1.msra.mxu0 0.0
    %1372 = vmatprep.subr.mxu0 0.0
    %1373 = vmatpush1.msra.mxu0 0.0
    %1374 = vmatprep.subr.mxu0 0.0
    %1375 = vmatpush1.msra.mxu0 0.0
    %1376 = vmatprep.subr.mxu0 0.0
    %1377 = vmatpush1.msra.mxu0 0.0
    %1378 = vmatprep.subr.mxu0 0.0
    %1379 = vmatpush1.msra.mxu0 0.0
    %1380 = vmatprep.mubr.f32.mxu0 0.0
    %1381 = vmatmul.mubr.f32.gmra.mrb[0].mxu0 %v1138
    %v1382 = vpop.f32.mrb[0].mxu0
    %v1383 = vadd.f32 0.0, %v1382
    %v1384 = vpop.f32.mrb[0].mxu0
    %v1385 = vadd.f32 0.0, %v1384
    %1386 = vdwg.mxu0
    %1387 = vmatprep.subr.mxu0 %v744
    %1388 = vmatpush1.msra.mxu0 %v743
    %1389 = vmatprep.subr.mxu0 %v748
    %1390 = vmatpush1.msra.mxu0 %v747
    %1391 = vmatprep.subr.mxu0 %v752
    %1392 = vmatpush1.msra.mxu0 %v751
    %1393 = vmatprep.subr.mxu0 %v756
    %1394 = vmatpush1.msra.mxu0 %v755
    %1395 = vmatprep.subr.mxu0 %v760
    %1396 = vmatpush1.msra.mxu0 %v759
    %1397 = vmatprep.subr.mxu0 %v764
    %1398 = vmatpush1.msra.mxu0 %v763
    %1399 = vmatprep.subr.mxu0 %v768
    %1400 = vmatpush1.msra.mxu0 %v767
    %1401 = vmatprep.subr.mxu0 %v772
    %1402 = vmatpush1.msra.mxu0 %v771
    %1403 = vmatprep.subr.mxu0 %v776
    %1404 = vmatpush1.msra.mxu0 %v775
    %1405 = vmatprep.subr.mxu0 %v780
    %1406 = vmatpush1.msra.mxu0 %v779
    %1407 = vmatprep.subr.mxu0 %v784
    %1408 = vmatpush1.msra.mxu0 %v783
    %1409 = vmatprep.subr.mxu0 %v788
    %1410 = vmatpush1.msra.mxu0 %v787
    %1411 = vmatprep.subr.mxu0 %v792
    %1412 = vmatpush1.msra.mxu0 %v791
    %1413 = vmatprep.subr.mxu0 %v796
    %1414 = vmatpush1.msra.mxu0 %v795
    %1415 = vmatprep.subr.mxu0 %v800
    %1416 = vmatpush1.msra.mxu0 %v799
    %1417 = vmatprep.subr.mxu0 %v804
    %1418 = vmatpush1.msra.mxu0 %v803
    %1419 = vmatprep.subr.mxu0 0.0
    %1420 = vmatpush1.msra.mxu0 0.0
    %1421 = vmatprep.subr.mxu0 0.0
    %1422 = vmatpush1.msra.mxu0 0.0
    %1423 = vmatprep.subr.mxu0 0.0
    %1424 = vmatpush1.msra.mxu0 0.0
    %1425 = vmatprep.subr.mxu0 0.0
    %1426 = vmatpush1.msra.mxu0 0.0
    %1427 = vmatprep.subr.mxu0 0.0
    %1428 = vmatpush1.msra.mxu0 0.0
    %1429 = vmatprep.subr.mxu0 0.0
    %1430 = vmatpush1.msra.mxu0 0.0
    %1431 = vmatprep.subr.mxu0 0.0
    %1432 = vmatpush1.msra.mxu0 0.0
    %1433 = vmatprep.subr.mxu0 0.0
    %1434 = vmatpush1.msra.mxu0 0.0
    %1435 = vmatprep.subr.mxu0 0.0
    %1436 = vmatpush1.msra.mxu0 0.0
    %1437 = vmatprep.subr.mxu0 0.0
    %1438 = vmatpush1.msra.mxu0 0.0
    %1439 = vmatprep.subr.mxu0 0.0
    %1440 = vmatpush1.msra.mxu0 0.0
    %1441 = vmatprep.subr.mxu0 0.0
    %1442 = vmatpush1.msra.mxu0 0.0
    %1443 = vmatprep.subr.mxu0 0.0
    %1444 = vmatpush1.msra.mxu0 0.0
    %1445 = vmatprep.subr.mxu0 0.0
    %1446 = vmatpush1.msra.mxu0 0.0
    %1447 = vmatprep.subr.mxu0 0.0
    %1448 = vmatpush1.msra.mxu0 0.0
    %1449 = vmatprep.subr.mxu0 0.0
    %1450 = vmatpush1.msra.mxu0 0.0
    %1451 = vmatprep.mubr.f32.mxu0 0.0
    %1452 = vmatmul.mubr.f32.gmra.mrb[0].mxu0 %v1138
    %v1453 = vpop.f32.mrb[0].mxu0
    %v1454 = vadd.f32 0.0, %v1453
    %v1455 = vpop.f32.mrb[0].mxu0
    %v1456 = vadd.f32 0.0, %v1455
    %1457 = vdwg.mxu0
    %1458 = vmatprep.subr.mxu0 %v678
    %1459 = vmatpush1.msra.mxu0 %v677
    %1460 = vmatprep.subr.mxu0 %v682
    %1461 = vmatpush1.msra.mxu0 %v681
    %1462 = vmatprep.subr.mxu0 %v686
    %1463 = vmatpush1.msra.mxu0 %v685
    %1464 = vmatprep.subr.mxu0 %v690
    %1465 = vmatpush1.msra.mxu0 %v689
    %1466 = vmatprep.subr.mxu0 %v694
    %1467 = vmatpush1.msra.mxu0 %v693
    %1468 = vmatprep.subr.mxu0 %v698
    %1469 = vmatpush1.msra.mxu0 %v697
    %1470 = vmatprep.subr.mxu0 %v702
    %1471 = vmatpush1.msra.mxu0 %v701
    %1472 = vmatprep.subr.mxu0 %v706
    %1473 = vmatpush1.msra.mxu0 %v705
    %1474 = vmatprep.subr.mxu0 %v710
    %1475 = vmatpush1.msra.mxu0 %v709
    %1476 = vmatprep.subr.mxu0 %v714
    %1477 = vmatpush1.msra.mxu0 %v713
    %1478 = vmatprep.subr.mxu0 %v718
    %1479 = vmatpush1.msra.mxu0 %v717
    %1480 = vmatprep.subr.mxu0 %v722
    %1481 = vmatpush1.msra.mxu0 %v721
    %1482 = vmatprep.subr.mxu0 %v726
    %1483 = vmatpush1.msra.mxu0 %v725
    %1484 = vmatprep.subr.mxu0 %v730
    %1485 = vmatpush1.msra.mxu0 %v729
    %1486 = vmatprep.subr.mxu0 %v734
    %1487 = vmatpush1.msra.mxu0 %v733
    %1488 = vmatprep.subr.mxu0 %v738
    %1489 = vmatpush1.msra.mxu0 %v737
    %1490 = vmatprep.subr.mxu0 0.0
    %1491 = vmatpush1.msra.mxu0 0.0
    %1492 = vmatprep.subr.mxu0 0.0
    %1493 = vmatpush1.msra.mxu0 0.0
    %1494 = vmatprep.subr.mxu0 0.0
    %1495 = vmatpush1.msra.mxu0 0.0
    %1496 = vmatprep.subr.mxu0 0.0
    %1497 = vmatpush1.msra.mxu0 0.0
    %1498 = vmatprep.subr.mxu0 0.0
    %1499 = vmatpush1.msra.mxu0 0.0
    %1500 = vmatprep.subr.mxu0 0.0
    %1501 = vmatpush1.msra.mxu0 0.0
    %1502 = vmatprep.subr.mxu0 0.0
    %1503 = vmatpush1.msra.mxu0 0.0
    %1504 = vmatprep.subr.mxu0 0.0
    %1505 = vmatpush1.msra.mxu0 0.0
    %1506 = vmatprep.subr.mxu0 0.0
    %1507 = vmatpush1.msra.mxu0 0.0
    %1508 = vmatprep.subr.mxu0 0.0
    %1509 = vmatpush1.msra.mxu0 0.0
    %1510 = vmatprep.subr.mxu0 0.0
    %1511 = vmatpush1.msra.mxu0 0.0
    %1512 = vmatprep.subr.mxu0 0.0
    %1513 = vmatpush1.msra.mxu0 0.0
    %1514 = vmatprep.subr.mxu0 0.0
    %1515 = vmatpush1.msra.mxu0 0.0
    %1516 = vmatprep.subr.mxu0 0.0
    %1517 = vmatpush1.msra.mxu0 0.0
    %1518 = vmatprep.subr.mxu0 0.0
    %1519 = vmatpush1.msra.mxu0 0.0
    %1520 = vmatprep.subr.mxu0 0.0
    %1521 = vmatpush1.msra.mxu0 0.0
    %1522 = vmatprep.mubr.f32.mxu0 0.0
    %1523 = vmatmul.mubr.f32.gmra.mrb[0].mxu0 %v1315
    %v1524 = vpop.f32.mrb[0].mxu0
    %v1525 = vadd.f32 %v1383, %v1524
    %v1526 = vpop.f32.mrb[0].mxu0
    %v1527 = vadd.f32 %v1385, %v1526
    %1528 = vdwg.mxu0
    %1529 = vmatprep.subr.mxu0 %v680
    %1530 = vmatpush1.msra.mxu0 %v679
    %1531 = vmatprep.subr.mxu0 %v684
    %1532 = vmatpush1.msra.mxu0 %v683
    %1533 = vmatprep.subr.mxu0 %v688
    %1534 = vmatpush1.msra.mxu0 %v687
    %1535 = vmatprep.subr.mxu0 %v692
    %1536 = vmatpush1.msra.mxu0 %v691
    %1537 = vmatprep.subr.mxu0 %v696
    %1538 = vmatpush1.msra.mxu0 %v695
    %1539 = vmatprep.subr.mxu0 %v700
    %1540 = vmatpush1.msra.mxu0 %v699
    %1541 = vmatprep.subr.mxu0 %v704
    %1542 = vmatpush1.msra.mxu0 %v703
    %1543 = vmatprep.subr.mxu0 %v708
    %1544 = vmatpush1.msra.mxu0 %v707
    %1545 = vmatprep.subr.mxu0 %v712
    %1546 = vmatpush1.msra.mxu0 %v711
    %1547 = vmatprep.subr.mxu0 %v716
    %1548 = vmatpush1.msra.mxu0 %v715
    %1549 = vmatprep.subr.mxu0 %v720
    %1550 = vmatpush1.msra.mxu0 %v719
    %1551 = vmatprep.subr.mxu0 %v724
    %1552 = vmatpush1.msra.mxu0 %v723
    %1553 = vmatprep.subr.mxu0 %v728
    %1554 = vmatpush1.msra.mxu0 %v727
    %1555 = vmatprep.subr.mxu0 %v732
    %1556 = vmatpush1.msra.mxu0 %v731
    %1557 = vmatprep.subr.mxu0 %v736
    %1558 = vmatpush1.msra.mxu0 %v735
    %1559 = vmatprep.subr.mxu0 %v740
    %1560 = vmatpush1.msra.mxu0 %v739
    %1561 = vmatprep.subr.mxu0 0.0
    %1562 = vmatpush1.msra.mxu0 0.0
    %1563 = vmatprep.subr.mxu0 0.0
    %1564 = vmatpush1.msra.mxu0 0.0
    %1565 = vmatprep.subr.mxu0 0.0
    %1566 = vmatpush1.msra.mxu0 0.0
    %1567 = vmatprep.subr.mxu0 0.0
    %1568 = vmatpush1.msra.mxu0 0.0
    %1569 = vmatprep.subr.mxu0 0.0
    %1570 = vmatpush1.msra.mxu0 0.0
    %1571 = vmatprep.subr.mxu0 0.0
    %1572 = vmatpush1.msra.mxu0 0.0
    %1573 = vmatprep.subr.mxu0 0.0
    %1574 = vmatpush1.msra.mxu0 0.0
    %1575 = vmatprep.subr.mxu0 0.0
    %1576 = vmatpush1.msra.mxu0 0.0
    %1577 = vmatprep.subr.mxu0 0.0
    %1578 = vmatpush1.msra.mxu0 0.0
    %1579 = vmatprep.subr.mxu0 0.0
    %1580 = vmatpush1.msra.mxu0 0.0
    %1581 = vmatprep.subr.mxu0 0.0
    %1582 = vmatpush1.msra.mxu0 0.0
    %1583 = vmatprep.subr.mxu0 0.0
    %1584 = vmatpush1.msra.mxu0 0.0
    %1585 = vmatprep.subr.mxu0 0.0
    %1586 = vmatpush1.msra.mxu0 0.0
    %1587 = vmatprep.subr.mxu0 0.0
    %1588 = vmatpush1.msra.mxu0 0.0
    %1589 = vmatprep.subr.mxu0 0.0
    %1590 = vmatpush1.msra.mxu0 0.0
    %1591 = vmatprep.subr.mxu0 0.0
    %1592 = vmatpush1.msra.mxu0 0.0
    %1593 = vmatprep.mubr.f32.mxu0 0.0
    %1594 = vmatmul.mubr.f32.gmra.mrb[0].mxu0 %v1315
    %v1595 = vpop.f32.mrb[0].mxu0
    %v1596 = vadd.f32 %v1454, %v1595
    %v1597 = vpop.f32.mrb[0].mxu0
    %v1598 = vadd.f32 %v1456, %v1597
    %1599 = vdwg.mxu0
    %v1600 = vadd.f32 %v1525, %v1094
    %v1601 = vadd.f32 %v1527, %v1098
    %v1602 = vadd.f32 %v1596, %v1102
    %v1603 = vadd.f32 %v1598, %v1106
    %v1604 = vxor.u32 %v1600, 2147483648
    %v1605 = vmul.f32 %v1604, 1.442695
    %v1606 = vpow.pop %v1605
    %v1607 = vadd.f32 %v1606, 1.0
    %v1608 = vrcp.pop %v1607
    %v1609 = vmul.f32 1.0, %v1608
    %v1610 = vxor.u32 %v1601, 2147483648
    %v1611 = vmul.f32 %v1610, 1.442695
    %v1612 = vpow.pop %v1611
    %v1613 = vadd.f32 %v1612, 1.0
    %v1614 = vrcp.pop %v1613
    %v1615 = vmul.f32 1.0, %v1614
    %v1616 = vtanh.pop %v1602
    %v1617 = vxor.u32 %v1603, 2147483648
    %v1618 = vmul.f32 %v1617, 1.442695
    %v1619 = vpow.pop %v1618
    %v1620 = vadd.f32 %v1619, 1.0
    %v1621 = vrcp.pop %v1620
    %v1622 = vmul.f32 1.0, %v1621
    %v1623 = vmul.f32 %v1615, %v1136
    %v1624 = vmul.f32 %v1609, %v1616
    %v1625 = vadd.f32 %v1623, %v1624
    %v1626 = vtanh.pop %v1625
    %v1627 = vmul.f32 %v1622, %v1626
    %s1628 = smul.u32 2, 4
    %s1629 = smul.addr %s1628, 8
    %s1630 = scalar_lea.vmem [#allocation4], %s1629
    %v1631 = vld [vmem:[%s1630] sm:$0xff]
    %v1632 = vld [vmem:[%s1630 + $0x8] sm:$0xff]
    %v1633 = vld [vmem:[%s1630 + $0x10] sm:$0xff]
    %v1634 = vld [vmem:[%s1630 + $0x18] sm:$0xff]
    %1635 = vmatprep.subr.mxu0 %v444
    %1636 = vmatpush1.msra.mxu0 %v443
    %1637 = vmatprep.subr.mxu0 %v448
    %1638 = vmatpush1.msra.mxu0 %v447
    %1639 = vmatprep.subr.mxu0 %v452
    %1640 = vmatpush1.msra.mxu0 %v451
    %1641 = vmatprep.subr.mxu0 %v456
    %1642 = vmatpush1.msra.mxu0 %v455
    %1643 = vmatprep.subr.mxu0 %v460
    %1644 = vmatpush1.msra.mxu0 %v459
    %1645 = vmatprep.subr.mxu0 %v464
    %1646 = vmatpush1.msra.mxu0 %v463
    %1647 = vmatprep.subr.mxu0 %v468
    %1648 = vmatpush1.msra.mxu0 %v467
    %1649 = vmatprep.subr.mxu0 %v472
    %1650 = vmatpush1.msra.mxu0 %v471
    %1651 = vmatprep.subr.mxu0 %v476
    %1652 = vmatpush1.msra.mxu0 %v475
    %1653 = vmatprep.subr.mxu0 %v480
    %1654 = vmatpush1.msra.mxu0 %v479
    %1655 = vmatprep.subr.mxu0 %v484
    %1656 = vmatpush1.msra.mxu0 %v483
    %1657 = vmatprep.subr.mxu0 %v488
    %1658 = vmatpush1.msra.mxu0 %v487
    %1659 = vmatprep.subr.mxu0 %v492
    %1660 = vmatpush1.msra.mxu0 %v491
    %1661 = vmatprep.subr.mxu0 %v496
    %1662 = vmatpush1.msra.mxu0 %v495
    %1663 = vmatprep.subr.mxu0 %v500
    %1664 = vmatpush1.msra.mxu0 %v499
    %1665 = vmatprep.subr.mxu0 %v504
    %1666 = vmatpush1.msra.mxu0 %v503
    %1667 = vmatprep.subr.mxu0 0.0
    %1668 = vmatpush1.msra.mxu0 0.0
    %1669 = vmatprep.subr.mxu0 0.0
    %1670 = vmatpush1.msra.mxu0 0.0
    %1671 = vmatprep.subr.mxu0 0.0
    %1672 = vmatpush1.msra.mxu0 0.0
    %1673 = vmatprep.subr.mxu0 0.0
    %1674 = vmatpush1.msra.mxu0 0.0
    %1675 = vmatprep.subr.mxu0 0.0
    %1676 = vmatpush1.msra.mxu0 0.0
    %1677 = vmatprep.subr.mxu0 0.0
    %1678 = vmatpush1.msra.mxu0 0.0
    %1679 = vmatprep.subr.mxu0 0.0
    %1680 = vmatpush1.msra.mxu0 0.0
    %1681 = vmatprep.subr.mxu0 0.0
    %1682 = vmatpush1.msra.mxu0 0.0
    %1683 = vmatprep.subr.mxu0 0.0
    %1684 = vmatpush1.msra.mxu0 0.0
    %1685 = vmatprep.subr.mxu0 0.0
    %1686 = vmatpush1.msra.mxu0 0.0
    %1687 = vmatprep.subr.mxu0 0.0
    %1688 = vmatpush1.msra.mxu0 0.0
    %1689 = vmatprep.subr.mxu0 0.0
    %1690 = vmatpush1.msra.mxu0 0.0
    %1691 = vmatprep.subr.mxu0 0.0
    %1692 = vmatpush1.msra.mxu0 0.0
    %1693 = vmatprep.subr.mxu0 0.0
    %1694 = vmatpush1.msra.mxu0 0.0
    %1695 = vmatprep.subr.mxu0 0.0
    %1696 = vmatpush1.msra.mxu0 0.0
    %1697 = vmatprep.subr.mxu0 0.0
    %1698 = vmatpush1.msra.mxu0 0.0
    %1699 = vmatprep.mubr.f32.mxu0 0.0
    %1700 = vmatmul.mubr.f32.gmra.mrb[0].mxu0 %v1315
    %v1701 = vpop.f32.mrb[0].mxu0
    %v1702 = vadd.f32 0.0, %v1701
    %v1703 = vpop.f32.mrb[0].mxu0
    %v1704 = vadd.f32 0.0, %v1703
    %1705 = vdwg.mxu0
    %1706 = vmatprep.subr.mxu0 %v446
    %1707 = vmatpush1.msra.mxu0 %v445
    %1708 = vmatprep.subr.mxu0 %v450
    %1709 = vmatpush1.msra.mxu0 %v449
    %1710 = vmatprep.subr.mxu0 %v454
    %1711 = vmatpush1.msra.mxu0 %v453
    %1712 = vmatprep.subr.mxu0 %v458
    %1713 = vmatpush1.msra.mxu0 %v457
    %1714 = vmatprep.subr.mxu0 %v462
    %1715 = vmatpush1.msra.mxu0 %v461
    %1716 = vmatprep.subr.mxu0 %v466
    %1717 = vmatpush1.msra.mxu0 %v465
    %1718 = vmatprep.subr.mxu0 %v470
    %1719 = vmatpush1.msra.mxu0 %v469
    %1720 = vmatprep.subr.mxu0 %v474
    %1721 = vmatpush1.msra.mxu0 %v473
    %1722 = vmatprep.subr.mxu0 %v478
    %1723 = vmatpush1.msra.mxu0 %v477
    %1724 = vmatprep.subr.mxu0 %v482
    %1725 = vmatpush1.msra.mxu0 %v481
    %1726 = vmatprep.subr.mxu0 %v486
    %1727 = vmatpush1.msra.mxu0 %v485
    %1728 = vmatprep.subr.mxu0 %v490
    %1729 = vmatpush1.msra.mxu0 %v489
    %1730 = vmatprep.subr.mxu0 %v494
    %1731 = vmatpush1.msra.mxu0 %v493
    %1732 = vmatprep.subr.mxu0 %v498
    %1733 = vmatpush1.msra.mxu0 %v497
    %1734 = vmatprep.subr.mxu0 %v502
    %1735 = vmatpush1.msra.mxu0 %v501
    %1736 = vmatprep.subr.mxu0 %v506
    %1737 = vmatpush1.msra.mxu0 %v505
    %1738 = vmatprep.subr.mxu0 0.0
    %1739 = vmatpush1.msra.mxu0 0.0
    %1740 = vmatprep.subr.mxu0 0.0
    %1741 = vmatpush1.msra.mxu0 0.0
    %1742 = vmatprep.subr.mxu0 0.0
    %1743 = vmatpush1.msra.mxu0 0.0
    %1744 = vmatprep.subr.mxu0 0.0
    %1745 = vmatpush1.msra.mxu0 0.0
    %1746 = vmatprep.subr.mxu0 0.0
    %1747 = vmatpush1.msra.mxu0 0.0
    %1748 = vmatprep.subr.mxu0 0.0
    %1749 = vmatpush1.msra.mxu0 0.0
    %1750 = vmatprep.subr.mxu0 0.0
    %1751 = vmatpush1.msra.mxu0 0.0
    %1752 = vmatprep.subr.mxu0 0.0
    %1753 = vmatpush1.msra.mxu0 0.0
    %1754 = vmatprep.subr.mxu0 0.0
    %1755 = vmatpush1.msra.mxu0 0.0
    %1756 = vmatprep.subr.mxu0 0.0
    %1757 = vmatpush1.msra.mxu0 0.0
    %1758 = vmatprep.subr.mxu0 0.0
    %1759 = vmatpush1.msra.mxu0 0.0
    %1760 = vmatprep.subr.mxu0 0.0
    %1761 = vmatpush1.msra.mxu0 0.0
    %1762 = vmatprep.subr.mxu0 0.0
    %1763 = vmatpush1.msra.mxu0 0.0
    %1764 = vmatprep.subr.mxu0 0.0
    %1765 = vmatpush1.msra.mxu0 0.0
    %1766 = vmatprep.subr.mxu0 0.0
    %1767 = vmatpush1.msra.mxu0 0.0
    %1768 = vmatprep.subr.mxu0 0.0
    %1769 = vmatpush1.msra.mxu0 0.0
    %1770 = vmatprep.mubr.f32.mxu0 0.0
    %1771 = vmatmul.mubr.f32.gmra.mrb[0].mxu0 %v1315
    %v1772 = vpop.f32.mrb[0].mxu0
    %v1773 = vadd.f32 0.0, %v1772
    %v1774 = vpop.f32.mrb[0].mxu0
    %v1775 = vadd.f32 0.0, %v1774
    %1776 = vdwg.mxu0
    %v1777 = vadd.f32 %v1631, %v1702
    %v1778 = vadd.f32 %v1632, %v1704
    %v1779 = vadd.f32 %v1633, %v1773
    %v1780 = vadd.f32 %v1634, %v1775
    %v1781 = vxor.u32 %v1777, 2147483648
    %v1782 = vmul.f32 %v1781, 1.442695
    %v1783 = vpow.pop %v1782
    %v1784 = vadd.f32 %v1783, 1.0
    %v1785 = vrcp.pop %v1784
    %v1786 = vmul.f32 1.0, %v1785
    %v1787 = vxor.u32 %v1778, 2147483648
    %v1788 = vmul.f32 %v1787, 1.442695
    %v1789 = vpow.pop %v1788
    %v1790 = vadd.f32 %v1789, 1.0
    %v1791 = vrcp.pop %v1790
    %v1792 = vmul.f32 1.0, %v1791
    %v1793 = vtanh.pop %v1779
    %v1794 = vxor.u32 %v1780, 2147483648
    %v1795 = vmul.f32 %v1794, 1.442695
    %v1796 = vpow.pop %v1795
    %v1797 = vadd.f32 %v1796, 1.0
    %v1798 = vrcp.pop %v1797
    %v1799 = vmul.f32 1.0, %v1798
    %v1800 = vmul.f32 %v1792, %v1313
    %v1801 = vmul.f32 %v1786, %v1793
    %v1802 = vadd.f32 %v1800, %v1801
    %v1803 = vtanh.pop %v1802
    %v1804 = vmul.f32 %v1799, %v1803
    %1805 = vmatprep.subr.mxu0 %v742
    %1806 = vmatpush1.msra.mxu0 %v741
    %1807 = vmatprep.subr.mxu0 %v746
    %1808 = vmatpush1.msra.mxu0 %v745
    %1809 = vmatprep.subr.mxu0 %v750
    %1810 = vmatpush1.msra.mxu0 %v749
    %1811 = vmatprep.subr.mxu0 %v754
    %1812 = vmatpush1.msra.mxu0 %v753
    %1813 = vmatprep.subr.mxu0 %v758
    %1814 = vmatpush1.msra.mxu0 %v757
    %1815 = vmatprep.subr.mxu0 %v762
    %1816 = vmatpush1.msra.mxu0 %v761
    %1817 = vmatprep.subr.mxu0 %v766
    %1818 = vmatpush1.msra.mxu0 %v765
    %1819 = vmatprep.subr.mxu0 %v770
    %1820 = vmatpush1.msra.mxu0 %v769
    %1821 = vmatprep.subr.mxu0 %v774
    %1822 = vmatpush1.msra.mxu0 %v773
    %1823 = vmatprep.subr.mxu0 %v778
    %1824 = vmatpush1.msra.mxu0 %v777
    %1825 = vmatprep.subr.mxu0 %v782
    %1826 = vmatpush1.msra.mxu0 %v781
    %1827 = vmatprep.subr.mxu0 %v786
    %1828 = vmatpush1.msra.mxu0 %v785
    %1829 = vmatprep.subr.mxu0 %v790
    %1830 = vmatpush1.msra.mxu0 %v789
    %1831 = vmatprep.subr.mxu0 %v794
    %1832 = vmatpush1.msra.mxu0 %v793
    %1833 = vmatprep.subr.mxu0 %v798
    %1834 = vmatpush1.msra.mxu0 %v797
    %1835 = vmatprep.subr.mxu0 %v802
    %1836 = vmatpush1.msra.mxu0 %v801
    %1837 = vmatprep.subr.mxu0 0.0
    %1838 = vmatpush1.msra.mxu0 0.0
    %1839 = vmatprep.subr.mxu0 0.0
    %1840 = vmatpush1.msra.mxu0 0.0
    %1841 = vmatprep.subr.mxu0 0.0
    %1842 = vmatpush1.msra.mxu0 0.0
    %1843 = vmatprep.subr.mxu0 0.0
    %1844 = vmatpush1.msra.mxu0 0.0
    %1845 = vmatprep.subr.mxu0 0.0
    %1846 = vmatpush1.msra.mxu0 0.0
    %1847 = vmatprep.subr.mxu0 0.0
    %1848 = vmatpush1.msra.mxu0 0.0
    %1849 = vmatprep.subr.mxu0 0.0
    %1850 = vmatpush1.msra.mxu0 0.0
    %1851 = vmatprep.subr.mxu0 0.0
    %1852 = vmatpush1.msra.mxu0 0.0
    %1853 = vmatprep.subr.mxu0 0.0
    %1854 = vmatpush1.msra.mxu0 0.0
    %1855 = vmatprep.subr.mxu0 0.0
    %1856 = vmatpush1.msra.mxu0 0.0
    %1857 = vmatprep.subr.mxu0 0.0
    %1858 = vmatpush1.msra.mxu0 0.0
    %1859 = vmatprep.subr.mxu0 0.0
    %1860 = vmatpush1.msra.mxu0 0.0
    %1861 = vmatprep.subr.mxu0 0.0
    %1862 = vmatpush1.msra.mxu0 0.0
    %1863 = vmatprep.subr.mxu0 0.0
    %1864 = vmatpush1.msra.mxu0 0.0
    %1865 = vmatprep.subr.mxu0 0.0
    %1866 = vmatpush1.msra.mxu0 0.0
    %1867 = vmatprep.subr.mxu0 0.0
    %1868 = vmatpush1.msra.mxu0 0.0
    %1869 = vmatprep.mubr.f32.mxu0 0.0
    %1870 = vmatmul.mubr.f32.gmra.mrb[0].mxu0 %v1627
    %v1871 = vpop.f32.mrb[0].mxu0
    %v1872 = vadd.f32 0.0, %v1871
    %v1873 = vpop.f32.mrb[0].mxu0
    %v1874 = vadd.f32 0.0, %v1873
    %1875 = vdwg.mxu0
    %1876 = vmatprep.subr.mxu0 %v744
    %1877 = vmatpush1.msra.mxu0 %v743
    %1878 = vmatprep.subr.mxu0 %v748
    %1879 = vmatpush1.msra.mxu0 %v747
    %1880 = vmatprep.subr.mxu0 %v752
    %1881 = vmatpush1.msra.mxu0 %v751
    %1882 = vmatprep.subr.mxu0 %v756
    %1883 = vmatpush1.msra.mxu0 %v755
    %1884 = vmatprep.subr.mxu0 %v760
    %1885 = vmatpush1.msra.mxu0 %v759
    %1886 = vmatprep.subr.mxu0 %v764
    %1887 = vmatpush1.msra.mxu0 %v763
    %1888 = vmatprep.subr.mxu0 %v768
    %1889 = vmatpush1.msra.mxu0 %v767
    %1890 = vmatprep.subr.mxu0 %v772
    %1891 = vmatpush1.msra.mxu0 %v771
    %1892 = vmatprep.subr.mxu0 %v776
    %1893 = vmatpush1.msra.mxu0 %v775
    %1894 = vmatprep.subr.mxu0 %v780
    %1895 = vmatpush1.msra.mxu0 %v779
    %1896 = vmatprep.subr.mxu0 %v784
    %1897 = vmatpush1.msra.mxu0 %v783
    %1898 = vmatprep.subr.mxu0 %v788
    %1899 = vmatpush1.msra.mxu0 %v787
    %1900 = vmatprep.subr.mxu0 %v792
    %1901 = vmatpush1.msra.mxu0 %v791
    %1902 = vmatprep.subr.mxu0 %v796
    %1903 = vmatpush1.msra.mxu0 %v795
    %1904 = vmatprep.subr.mxu0 %v800
    %1905 = vmatpush1.msra.mxu0 %v799
    %1906 = vmatprep.subr.mxu0 %v804
    %1907 = vmatpush1.msra.mxu0 %v803
    %1908 = vmatprep.subr.mxu0 0.0
    %1909 = vmatpush1.msra.mxu0 0.0
    %1910 = vmatprep.subr.mxu0 0.0
    %1911 = vmatpush1.msra.mxu0 0.0
    %1912 = vmatprep.subr.mxu0 0.0
    %1913 = vmatpush1.msra.mxu0 0.0
    %1914 = vmatprep.subr.mxu0 0.0
    %1915 = vmatpush1.msra.mxu0 0.0
    %1916 = vmatprep.subr.mxu0 0.0
    %1917 = vmatpush1.msra.mxu0 0.0
    %1918 = vmatprep.subr.mxu0 0.0
    %1919 = vmatpush1.msra.mxu0 0.0
    %1920 = vmatprep.subr.mxu0 0.0
    %1921 = vmatpush1.msra.mxu0 0.0
    %1922 = vmatprep.subr.mxu0 0.0
    %1923 = vmatpush1.msra.mxu0 0.0
    %1924 = vmatprep.subr.mxu0 0.0
    %1925 = vmatpush1.msra.mxu0 0.0
    %1926 = vmatprep.subr.mxu0 0.0
    %1927 = vmatpush1.msra.mxu0 0.0
    %1928 = vmatprep.subr.mxu0 0.0
    %1929 = vmatpush1.msra.mxu0 0.0
    %1930 = vmatprep.subr.mxu0 0.0
    %1931 = vmatpush1.msra.mxu0 0.0
    %1932 = vmatprep.subr.mxu0 0.0
    %1933 = vmatpush1.msra.mxu0 0.0
    %1934 = vmatprep.subr.mxu0 0.0
    %1935 = vmatpush1.msra.mxu0 0.0
    %1936 = vmatprep.subr.mxu0 0.0
    %1937 = vmatpush1.msra.mxu0 0.0
    %1938 = vmatprep.subr.mxu0 0.0
    %1939 = vmatpush1.msra.mxu0 0.0
    %1940 = vmatprep.mubr.f32.mxu0 0.0
    %1941 = vmatmul.mubr.f32.gmra.mrb[0].mxu0 %v1627
    %v1942 = vpop.f32.mrb[0].mxu0
    %v1943 = vadd.f32 0.0, %v1942
    %v1944 = vpop.f32.mrb[0].mxu0
    %v1945 = vadd.f32 0.0, %v1944
    %1946 = vdwg.mxu0
    %1947 = vmatprep.subr.mxu0 %v678
    %1948 = vmatpush1.msra.mxu0 %v677
    %1949 = vmatprep.subr.mxu0 %v682
    %1950 = vmatpush1.msra.mxu0 %v681
    %1951 = vmatprep.subr.mxu0 %v686
    %1952 = vmatpush1.msra.mxu0 %v685
    %1953 = vmatprep.subr.mxu0 %v690
    %1954 = vmatpush1.msra.mxu0 %v689
    %1955 = vmatprep.subr.mxu0 %v694
    %1956 = vmatpush1.msra.mxu0 %v693
    %1957 = vmatprep.subr.mxu0 %v698
    %1958 = vmatpush1.msra.mxu0 %v697
    %1959 = vmatprep.subr.mxu0 %v702
    %1960 = vmatpush1.msra.mxu0 %v701
    %1961 = vmatprep.subr.mxu0 %v706
    %1962 = vmatpush1.msra.mxu0 %v705
    %1963 = vmatprep.subr.mxu0 %v710
    %1964 = vmatpush1.msra.mxu0 %v709
    %1965 = vmatprep.subr.mxu0 %v714
    %1966 = vmatpush1.msra.mxu0 %v713
    %1967 = vmatprep.subr.mxu0 %v718
    %1968 = vmatpush1.msra.mxu0 %v717
    %1969 = vmatprep.subr.mxu0 %v722
    %1970 = vmatpush1.msra.mxu0 %v721
    %1971 = vmatprep.subr.mxu0 %v726
    %1972 = vmatpush1.msra.mxu0 %v725
    %1973 = vmatprep.subr.mxu0 %v730
    %1974 = vmatpush1.msra.mxu0 %v729
    %1975 = vmatprep.subr.mxu0 %v734
    %1976 = vmatpush1.msra.mxu0 %v733
    %1977 = vmatprep.subr.mxu0 %v738
    %1978 = vmatpush1.msra.mxu0 %v737
    %1979 = vmatprep.subr.mxu0 0.0
    %1980 = vmatpush1.msra.mxu0 0.0
    %1981 = vmatprep.subr.mxu0 0.0
    %1982 = vmatpush1.msra.mxu0 0.0
    %1983 = vmatprep.subr.mxu0 0.0
    %1984 = vmatpush1.msra.mxu0 0.0
    %1985 = vmatprep.subr.mxu0 0.0
    %1986 = vmatpush1.msra.mxu0 0.0
    %1987 = vmatprep.subr.mxu0 0.0
    %1988 = vmatpush1.msra.mxu0 0.0
    %1989 = vmatprep.subr.mxu0 0.0
    %1990 = vmatpush1.msra.mxu0 0.0
    %1991 = vmatprep.subr.mxu0 0.0
    %1992 = vmatpush1.msra.mxu0 0.0
    %1993 = vmatprep.subr.mxu0 0.0
    %1994 = vmatpush1.msra.mxu0 0.0
    %1995 = vmatprep.subr.mxu0 0.0
    %1996 = vmatpush1.msra.mxu0 0.0
    %1997 = vmatprep.subr.mxu0 0.0
    %1998 = vmatpush1.msra.mxu0 0.0
    %1999 = vmatprep.subr.mxu0 0.0
    %2000 = vmatpush1.msra.mxu0 0.0
    %2001 = vmatprep.subr.mxu0 0.0
    %2002 = vmatpush1.msra.mxu0 0.0
    %2003 = vmatprep.subr.mxu0 0.0
    %2004 = vmatpush1.msra.mxu0 0.0
    %2005 = vmatprep.subr.mxu0 0.0
    %2006 = vmatpush1.msra.mxu0 0.0
    %2007 = vmatprep.subr.mxu0 0.0
    %2008 = vmatpush1.msra.mxu0 0.0
    %2009 = vmatprep.subr.mxu0 0.0
    %2010 = vmatpush1.msra.mxu0 0.0
    %2011 = vmatprep.mubr.f32.mxu0 0.0
    %2012 = vmatmul.mubr.f32.gmra.mrb[0].mxu0 %v1804
    %v2013 = vpop.f32.mrb[0].mxu0
    %v2014 = vadd.f32 %v1872, %v2013
    %v2015 = vpop.f32.mrb[0].mxu0
    %v2016 = vadd.f32 %v1874, %v2015
    %2017 = vdwg.mxu0
    %2018 = vmatprep.subr.mxu0 %v680
    %2019 = vmatpush1.msra.mxu0 %v679
    %2020 = vmatprep.subr.mxu0 %v684
    %2021 = vmatpush1.msra.mxu0 %v683
    %2022 = vmatprep.subr.mxu0 %v688
    %2023 = vmatpush1.msra.mxu0 %v687
    %2024 = vmatprep.subr.mxu0 %v692
    %2025 = vmatpush1.msra.mxu0 %v691
    %2026 = vmatprep.subr.mxu0 %v696
    %2027 = vmatpush1.msra.mxu0 %v695
    %2028 = vmatprep.subr.mxu0 %v700
    %2029 = vmatpush1.msra.mxu0 %v699
    %2030 = vmatprep.subr.mxu0 %v704
    %2031 = vmatpush1.msra.mxu0 %v703
    %2032 = vmatprep.subr.mxu0 %v708
    %2033 = vmatpush1.msra.mxu0 %v707
    %2034 = vmatprep.subr.mxu0 %v712
    %2035 = vmatpush1.msra.mxu0 %v711
    %2036 = vmatprep.subr.mxu0 %v716
    %2037 = vmatpush1.msra.mxu0 %v715
    %2038 = vmatprep.subr.mxu0 %v720
    %2039 = vmatpush1.msra.mxu0 %v719
    %2040 = vmatprep.subr.mxu0 %v724
    %2041 = vmatpush1.msra.mxu0 %v723
    %2042 = vmatprep.subr.mxu0 %v728
    %2043 = vmatpush1.msra.mxu0 %v727
    %2044 = vmatprep.subr.mxu0 %v732
    %2045 = vmatpush1.msra.mxu0 %v731
    %2046 = vmatprep.subr.mxu0 %v736
    %2047 = vmatpush1.msra.mxu0 %v735
    %2048 = vmatprep.subr.mxu0 %v740
    %2049 = vmatpush1.msra.mxu0 %v739
    %2050 = vmatprep.subr.mxu0 0.0
    %2051 = vmatpush1.msra.mxu0 0.0
    %2052 = vmatprep.subr.mxu0 0.0
    %2053 = vmatpush1.msra.mxu0 0.0
    %2054 = vmatprep.subr.mxu0 0.0
    %2055 = vmatpush1.msra.mxu0 0.0
    %2056 = vmatprep.subr.mxu0 0.0
    %2057 = vmatpush1.msra.mxu0 0.0
    %2058 = vmatprep.subr.mxu0 0.0
    %2059 = vmatpush1.msra.mxu0 0.0
    %2060 = vmatprep.subr.mxu0 0.0
    %2061 = vmatpush1.msra.mxu0 0.0
    %2062 = vmatprep.subr.mxu0 0.0
    %2063 = vmatpush1.msra.mxu0 0.0
    %2064 = vmatprep.subr.mxu0 0.0
    %2065 = vmatpush1.msra.mxu0 0.0
    %2066 = vmatprep.subr.mxu0 0.0
    %2067 = vmatpush1.msra.mxu0 0.0
    %2068 = vmatprep.subr.mxu0 0.0
    %2069 = vmatpush1.msra.mxu0 0.0
    %2070 = vmatprep.subr.mxu0 0.0
    %2071 = vmatpush1.msra.mxu0 0.0
    %2072 = vmatprep.subr.mxu0 0.0
    %2073 = vmatpush1.msra.mxu0 0.0
    %2074 = vmatprep.subr.mxu0 0.0
    %2075 = vmatpush1.msra.mxu0 0.0
    %2076 = vmatprep.subr.mxu0 0.0
    %2077 = vmatpush1.msra.mxu0 0.0
    %2078 = vmatprep.subr.mxu0 0.0
    %2079 = vmatpush1.msra.mxu0 0.0
    %2080 = vmatprep.subr.mxu0 0.0
    %2081 = vmatpush1.msra.mxu0 0.0
    %2082 = vmatprep.mubr.f32.mxu0 0.0
    %2083 = vmatmul.mubr.f32.gmra.mrb[0].mxu0 %v1804
    %v2084 = vpop.f32.mrb[0].mxu0
    %v2085 = vadd.f32 %v1943, %v2084
    %v2086 = vpop.f32.mrb[0].mxu0
    %v2087 = vadd.f32 %v1945, %v2086
    %2088 = vdwg.mxu0
    %v2089 = vadd.f32 %v2014, %v1094
    %v2090 = vadd.f32 %v2016, %v1098
    %v2091 = vadd.f32 %v2085, %v1102
    %v2092 = vadd.f32 %v2087, %v1106
    %v2093 = vxor.u32 %v2089, 2147483648
    %v2094 = vmul.f32 %v2093, 1.442695
    %v2095 = vpow.pop %v2094
    %v2096 = vadd.f32 %v2095, 1.0
    %v2097 = vrcp.pop %v2096
    %v2098 = vmul.f32 1.0, %v2097
    %v2099 = vxor.u32 %v2090, 2147483648
    %v2100 = vmul.f32 %v2099, 1.442695
    %v2101 = vpow.pop %v2100
    %v2102 = vadd.f32 %v2101, 1.0
    %v2103 = vrcp.pop %v2102
    %v2104 = vmul.f32 1.0, %v2103
    %v2105 = vtanh.pop %v2091
    %v2106 = vxor.u32 %v2092, 2147483648
    %v2107 = vmul.f32 %v2106, 1.442695
    %v2108 = vpow.pop %v2107
    %v2109 = vadd.f32 %v2108, 1.0
    %v2110 = vrcp.pop %v2109
    %v2111 = vmul.f32 1.0, %v2110
    %v2112 = vmul.f32 %v2104, %v1625
    %v2113 = vmul.f32 %v2098, %v2105
    %v2114 = vadd.f32 %v2112, %v2113
    %v2115 = vtanh.pop %v2114
    %v2116 = vmul.f32 %v2111, %v2115
    %s2117 = smul.u32 3, 4
    %s2118 = smul.addr %s2117, 8
    %s2119 = scalar_lea.vmem [#allocation4], %s2118
    %v2120 = vld [vmem:[%s2119] sm:$0xff]
    %v2121 = vld [vmem:[%s2119 + $0x8] sm:$0xff]
    %v2122 = vld [vmem:[%s2119 + $0x10] sm:$0xff]
    %v2123 = vld [vmem:[%s2119 + $0x18] sm:$0xff]
    %2124 = vmatprep.subr.mxu0 %v444
    %2125 = vmatpush1.msra.mxu0 %v443
    %2126 = vmatprep.subr.mxu0 %v448
    %2127 = vmatpush1.msra.mxu0 %v447
    %2128 = vmatprep.subr.mxu0 %v452
    %2129 = vmatpush1.msra.mxu0 %v451
    %2130 = vmatprep.subr.mxu0 %v456
    %2131 = vmatpush1.msra.mxu0 %v455
    %2132 = vmatprep.subr.mxu0 %v460
    %2133 = vmatpush1.msra.mxu0 %v459
    %2134 = vmatprep.subr.mxu0 %v464
    %2135 = vmatpush1.msra.mxu0 %v463
    %2136 = vmatprep.subr.mxu0 %v468
    %2137 = vmatpush1.msra.mxu0 %v467
    %2138 = vmatprep.subr.mxu0 %v472
    %2139 = vmatpush1.msra.mxu0 %v471
    %2140 = vmatprep.subr.mxu0 %v476
    %2141 = vmatpush1.msra.mxu0 %v475
    %2142 = vmatprep.subr.mxu0 %v480
    %2143 = vmatpush1.msra.mxu0 %v479
    %2144 = vmatprep.subr.mxu0 %v484
    %2145 = vmatpush1.msra.mxu0 %v483
    %2146 = vmatprep.subr.mxu0 %v488
    %2147 = vmatpush1.msra.mxu0 %v487
    %2148 = vmatprep.subr.mxu0 %v492
    %2149 = vmatpush1.msra.mxu0 %v491
    %2150 = vmatprep.subr.mxu0 %v496
    %2151 = vmatpush1.msra.mxu0 %v495
    %2152 = vmatprep.subr.mxu0 %v500
    %2153 = vmatpush1.msra.mxu0 %v499
    %2154 = vmatprep.subr.mxu0 %v504
    %2155 = vmatpush1.msra.mxu0 %v503
    %2156 = vmatprep.subr.mxu0 0.0
    %2157 = vmatpush1.msra.mxu0 0.0
    %2158 = vmatprep.subr.mxu0 0.0
    %2159 = vmatpush1.msra.mxu0 0.0
    %2160 = vmatprep.subr.mxu0 0.0
    %2161 = vmatpush1.msra.mxu0 0.0
    %2162 = vmatprep.subr.mxu0 0.0
    %2163 = vmatpush1.msra.mxu0 0.0
    %2164 = vmatprep.subr.mxu0 0.0
    %2165 = vmatpush1.msra.mxu0 0.0
    %2166 = vmatprep.subr.mxu0 0.0
    %2167 = vmatpush1.msra.mxu0 0.0
    %2168 = vmatprep.subr.mxu0 0.0
    %2169 = vmatpush1.msra.mxu0 0.0
    %2170 = vmatprep.subr.mxu0 0.0
    %2171 = vmatpush1.msra.mxu0 0.0
    %2172 = vmatprep.subr.mxu0 0.0
    %2173 = vmatpush1.msra.mxu0 0.0
    %2174 = vmatprep.subr.mxu0 0.0
    %2175 = vmatpush1.msra.mxu0 0.0
    %2176 = vmatprep.subr.mxu0 0.0
    %2177 = vmatpush1.msra.mxu0 0.0
    %2178 = vmatprep.subr.mxu0 0.0
    %2179 = vmatpush1.msra.mxu0 0.0
    %2180 = vmatprep.subr.mxu0 0.0
    %2181 = vmatpush1.msra.mxu0 0.0
    %2182 = vmatprep.subr.mxu0 0.0
    %2183 = vmatpush1.msra.mxu0 0.0
    %2184 = vmatprep.subr.mxu0 0.0
    %2185 = vmatpush1.msra.mxu0 0.0
    %2186 = vmatprep.subr.mxu0 0.0
    %2187 = vmatpush1.msra.mxu0 0.0
    %2188 = vmatprep.mubr.f32.mxu0 0.0
    %2189 = vmatmul.mubr.f32.gmra.mrb[0].mxu0 %v1804
    %v2190 = vpop.f32.mrb[0].mxu0
    %v2191 = vadd.f32 0.0, %v2190
    %v2192 = vpop.f32.mrb[0].mxu0
    %v2193 = vadd.f32 0.0, %v2192
    %2194 = vdwg.mxu0
    %2195 = vmatprep.subr.mxu0 %v446
    %2196 = vmatpush1.msra.mxu0 %v445
    %2197 = vmatprep.subr.mxu0 %v450
    %2198 = vmatpush1.msra.mxu0 %v449
    %2199 = vmatprep.subr.mxu0 %v454
    %2200 = vmatpush1.msra.mxu0 %v453
    %2201 = vmatprep.subr.mxu0 %v458
    %2202 = vmatpush1.msra.mxu0 %v457
    %2203 = vmatprep.subr.mxu0 %v462
    %2204 = vmatpush1.msra.mxu0 %v461
    %2205 = vmatprep.subr.mxu0 %v466
    %2206 = vmatpush1.msra.mxu0 %v465
    %2207 = vmatprep.subr.mxu0 %v470
    %2208 = vmatpush1.msra.mxu0 %v469
    %2209 = vmatprep.subr.mxu0 %v474
    %2210 = vmatpush1.msra.mxu0 %v473
    %2211 = vmatprep.subr.mxu0 %v478
    %2212 = vmatpush1.msra.mxu0 %v477
    %2213 = vmatprep.subr.mxu0 %v482
    %2214 = vmatpush1.msra.mxu0 %v481
    %2215 = vmatprep.subr.mxu0 %v486
    %2216 = vmatpush1.msra.mxu0 %v485
    %2217 = vmatprep.subr.mxu0 %v490
    %2218 = vmatpush1.msra.mxu0 %v489
    %2219 = vmatprep.subr.mxu0 %v494
    %2220 = vmatpush1.msra.mxu0 %v493
    %2221 = vmatprep.subr.mxu0 %v498
    %2222 = vmatpush1.msra.mxu0 %v497
    %2223 = vmatprep.subr.mxu0 %v502
    %2224 = vmatpush1.msra.mxu0 %v501
    %2225 = vmatprep.subr.mxu0 %v506
    %2226 = vmatpush1.msra.mxu0 %v505
    %2227 = vmatprep.subr.mxu0 0.0
    %2228 = vmatpush1.msra.mxu0 0.0
    %2229 = vmatprep.subr.mxu0 0.0
    %2230 = vmatpush1.msra.mxu0 0.0
    %2231 = vmatprep.subr.mxu0 0.0
    %2232 = vmatpush1.msra.mxu0 0.0
    %2233 = vmatprep.subr.mxu0 0.0
    %2234 = vmatpush1.msra.mxu0 0.0
    %2235 = vmatprep.subr.mxu0 0.0
    %2236 = vmatpush1.msra.mxu0 0.0
    %2237 = vmatprep.subr.mxu0 0.0
    %2238 = vmatpush1.msra.mxu0 0.0
    %2239 = vmatprep.subr.mxu0 0.0
    %2240 = vmatpush1.msra.mxu0 0.0
    %2241 = vmatprep.subr.mxu0 0.0
    %2242 = vmatpush1.msra.mxu0 0.0
    %2243 = vmatprep.subr.mxu0 0.0
    %2244 = vmatpush1.msra.mxu0 0.0
    %2245 = vmatprep.subr.mxu0 0.0
    %2246 = vmatpush1.msra.mxu0 0.0
    %2247 = vmatprep.subr.mxu0 0.0
    %2248 = vmatpush1.msra.mxu0 0.0
    %2249 = vmatprep.subr.mxu0 0.0
    %2250 = vmatpush1.msra.mxu0 0.0
    %2251 = vmatprep.subr.mxu0 0.0
    %2252 = vmatpush1.msra.mxu0 0.0
    %2253 = vmatprep.subr.mxu0 0.0
    %2254 = vmatpush1.msra.mxu0 0.0
    %2255 = vmatprep.subr.mxu0 0.0
    %2256 = vmatpush1.msra.mxu0 0.0
    %2257 = vmatprep.subr.mxu0 0.0
    %2258 = vmatpush1.msra.mxu0 0.0
    %2259 = vmatprep.mubr.f32.mxu0 0.0
    %2260 = vmatmul.mubr.f32.gmra.mrb[0].mxu0 %v1804
    %v2261 = vpop.f32.mrb[0].mxu0
    %v2262 = vadd.f32 0.0, %v2261
    %v2263 = vpop.f32.mrb[0].mxu0
    %v2264 = vadd.f32 0.0, %v2263
    %2265 = vdwg.mxu0
    %v2266 = vadd.f32 %v2120, %v2191
    %v2267 = vadd.f32 %v2121, %v2193
    %v2268 = vadd.f32 %v2122, %v2262
    %v2269 = vadd.f32 %v2123, %v2264
    %v2270 = vxor.u32 %v2266, 2147483648
    %v2271 = vmul.f32 %v2270, 1.442695
    %v2272 = vpow.pop %v2271
    %v2273 = vadd.f32 %v2272, 1.0
    %v2274 = vrcp.pop %v2273
    %v2275 = vmul.f32 1.0, %v2274
    %v2276 = vxor.u32 %v2267, 2147483648
    %v2277 = vmul.f32 %v2276, 1.442695
    %v2278 = vpow.pop %v2277
    %v2279 = vadd.f32 %v2278, 1.0
    %v2280 = vrcp.pop %v2279
    %v2281 = vmul.f32 1.0, %v2280
    %v2282 = vtanh.pop %v2268
    %v2283 = vxor.u32 %v2269, 2147483648
    %v2284 = vmul.f32 %v2283, 1.442695
    %v2285 = vpow.pop %v2284
    %v2286 = vadd.f32 %v2285, 1.0
    %v2287 = vrcp.pop %v2286
    %v2288 = vmul.f32 1.0, %v2287
    %v2289 = vmul.f32 %v2281, %v1802
    %v2290 = vmul.f32 %v2275, %v2282
    %v2291 = vadd.f32 %v2289, %v2290
    %v2292 = vtanh.pop %v2291
    %v2293 = vmul.f32 %v2288, %v2292
    %2294 = vmatprep.subr.mxu0 %v742
    %2295 = vmatpush1.msra.mxu0 %v741
    %2296 = vmatprep.subr.mxu0 %v746
    %2297 = vmatpush1.msra.mxu0 %v745
    %2298 = vmatprep.subr.mxu0 %v750
    %2299 = vmatpush1.msra.mxu0 %v749
    %2300 = vmatprep.subr.mxu0 %v754
    %2301 = vmatpush1.msra.mxu0 %v753
    %2302 = vmatprep.subr.mxu0 %v758
    %2303 = vmatpush1.msra.mxu0 %v757
    %2304 = vmatprep.subr.mxu0 %v762
    %2305 = vmatpush1.msra.mxu0 %v761
    %2306 = vmatprep.subr.mxu0 %v766
    %2307 = vmatpush1.msra.mxu0 %v765
    %2308 = vmatprep.subr.mxu0 %v770
    %2309 = vmatpush1.msra.mxu0 %v769
    %2310 = vmatprep.subr.mxu0 %v774
    %2311 = vmatpush1.msra.mxu0 %v773
    %2312 = vmatprep.subr.mxu0 %v778
    %2313 = vmatpush1.msra.mxu0 %v777
    %2314 = vmatprep.subr.mxu0 %v782
    %2315 = vmatpush1.msra.mxu0 %v781
    %2316 = vmatprep.subr.mxu0 %v786
    %2317 = vmatpush1.msra.mxu0 %v785
    %2318 = vmatprep.subr.mxu0 %v790
    %2319 = vmatpush1.msra.mxu0 %v789
    %2320 = vmatprep.subr.mxu0 %v794
    %2321 = vmatpush1.msra.mxu0 %v793
    %2322 = vmatprep.subr.mxu0 %v798
    %2323 = vmatpush1.msra.mxu0 %v797
    %2324 = vmatprep.subr.mxu0 %v802
    %2325 = vmatpush1.msra.mxu0 %v801
    %2326 = vmatprep.subr.mxu0 0.0
    %2327 = vmatpush1.msra.mxu0 0.0
    %2328 = vmatprep.subr.mxu0 0.0
    %2329 = vmatpush1.msra.mxu0 0.0
    %2330 = vmatprep.subr.mxu0 0.0
    %2331 = vmatpush1.msra.mxu0 0.0
    %2332 = vmatprep.subr.mxu0 0.0
    %2333 = vmatpush1.msra.mxu0 0.0
    %2334 = vmatprep.subr.mxu0 0.0
    %2335 = vmatpush1.msra.mxu0 0.0
    %2336 = vmatprep.subr.mxu0 0.0
    %2337 = vmatpush1.msra.mxu0 0.0
    %2338 = vmatprep.subr.mxu0 0.0
    %2339 = vmatpush1.msra.mxu0 0.0
    %2340 = vmatprep.subr.mxu0 0.0
    %2341 = vmatpush1.msra.mxu0 0.0
    %2342 = vmatprep.subr.mxu0 0.0
    %2343 = vmatpush1.msra.mxu0 0.0
    %2344 = vmatprep.subr.mxu0 0.0
    %2345 = vmatpush1.msra.mxu0 0.0
    %2346 = vmatprep.subr.mxu0 0.0
    %2347 = vmatpush1.msra.mxu0 0.0
    %2348 = vmatprep.subr.mxu0 0.0
    %2349 = vmatpush1.msra.mxu0 0.0
    %2350 = vmatprep.subr.mxu0 0.0
    %2351 = vmatpush1.msra.mxu0 0.0
    %2352 = vmatprep.subr.mxu0 0.0
    %2353 = vmatpush1.msra.mxu0 0.0
    %2354 = vmatprep.subr.mxu0 0.0
    %2355 = vmatpush1.msra.mxu0 0.0
    %2356 = vmatprep.subr.mxu0 0.0
    %2357 = vmatpush1.msra.mxu0 0.0
    %2358 = vmatprep.mubr.f32.mxu0 0.0
    %2359 = vmatmul.mubr.f32.gmra.mrb[0].mxu0 %v2116
    %v2360 = vpop.f32.mrb[0].mxu0
    %v2361 = vadd.f32 0.0, %v2360
    %v2362 = vpop.f32.mrb[0].mxu0
    %v2363 = vadd.f32 0.0, %v2362
    %2364 = vdwg.mxu0
    %2365 = vmatprep.subr.mxu0 %v744
    %2366 = vmatpush1.msra.mxu0 %v743
    %2367 = vmatprep.subr.mxu0 %v748
    %2368 = vmatpush1.msra.mxu0 %v747
    %2369 = vmatprep.subr.mxu0 %v752
    %2370 = vmatpush1.msra.mxu0 %v751
    %2371 = vmatprep.subr.mxu0 %v756
    %2372 = vmatpush1.msra.mxu0 %v755
    %2373 = vmatprep.subr.mxu0 %v760
    %2374 = vmatpush1.msra.mxu0 %v759
    %2375 = vmatprep.subr.mxu0 %v764
    %2376 = vmatpush1.msra.mxu0 %v763
    %2377 = vmatprep.subr.mxu0 %v768
    %2378 = vmatpush1.msra.mxu0 %v767
    %2379 = vmatprep.subr.mxu0 %v772
    %2380 = vmatpush1.msra.mxu0 %v771
    %2381 = vmatprep.subr.mxu0 %v776
    %2382 = vmatpush1.msra.mxu0 %v775
    %2383 = vmatprep.subr.mxu0 %v780
    %2384 = vmatpush1.msra.mxu0 %v779
    %2385 = vmatprep.subr.mxu0 %v784
    %2386 = vmatpush1.msra.mxu0 %v783
    %2387 = vmatprep.subr.mxu0 %v788
    %2388 = vmatpush1.msra.mxu0 %v787
    %2389 = vmatprep.subr.mxu0 %v792
    %2390 = vmatpush1.msra.mxu0 %v791
    %2391 = vmatprep.subr.mxu0 %v796
    %2392 = vmatpush1.msra.mxu0 %v795
    %2393 = vmatprep.subr.mxu0 %v800
    %2394 = vmatpush1.msra.mxu0 %v799
    %2395 = vmatprep.subr.mxu0 %v804
    %2396 = vmatpush1.msra.mxu0 %v803
    %2397 = vmatprep.subr.mxu0 0.0
    %2398 = vmatpush1.msra.mxu0 0.0
    %2399 = vmatprep.subr.mxu0 0.0
    %2400 = vmatpush1.msra.mxu0 0.0
    %2401 = vmatprep.subr.mxu0 0.0
    %2402 = vmatpush1.msra.mxu0 0.0
    %2403 = vmatprep.subr.mxu0 0.0
    %2404 = vmatpush1.msra.mxu0 0.0
    %2405 = vmatprep.subr.mxu0 0.0
    %2406 = vmatpush1.msra.mxu0 0.0
    %2407 = vmatprep.subr.mxu0 0.0
    %2408 = vmatpush1.msra.mxu0 0.0
    %2409 = vmatprep.subr.mxu0 0.0
    %2410 = vmatpush1.msra.mxu0 0.0
    %2411 = vmatprep.subr.mxu0 0.0
    %2412 = vmatpush1.msra.mxu0 0.0
    %2413 = vmatprep.subr.mxu0 0.0
    %2414 = vmatpush1.msra.mxu0 0.0
    %2415 = vmatprep.subr.mxu0 0.0
    %2416 = vmatpush1.msra.mxu0 0.0
    %2417 = vmatprep.subr.mxu0 0.0
    %2418 = vmatpush1.msra.mxu0 0.0
    %2419 = vmatprep.subr.mxu0 0.0
    %2420 = vmatpush1.msra.mxu0 0.0
    %2421 = vmatprep.subr.mxu0 0.0
    %2422 = vmatpush1.msra.mxu0 0.0
    %2423 = vmatprep.subr.mxu0 0.0
    %2424 = vmatpush1.msra.mxu0 0.0
    %2425 = vmatprep.subr.mxu0 0.0
    %2426 = vmatpush1.msra.mxu0 0.0
    %2427 = vmatprep.subr.mxu0 0.0
    %2428 = vmatpush1.msra.mxu0 0.0
    %2429 = vmatprep.mubr.f32.mxu0 0.0
    %2430 = vmatmul.mubr.f32.gmra.mrb[0].mxu0 %v2116
    %v2431 = vpop.f32.mrb[0].mxu0
    %v2432 = vadd.f32 0.0, %v2431
    %v2433 = vpop.f32.mrb[0].mxu0
    %v2434 = vadd.f32 0.0, %v2433
    %2435 = vdwg.mxu0
    %2436 = vmatprep.subr.mxu0 %v678
    %2437 = vmatpush1.msra.mxu0 %v677
    %2438 = vmatprep.subr.mxu0 %v682
    %2439 = vmatpush1.msra.mxu0 %v681
    %2440 = vmatprep.subr.mxu0 %v686
    %2441 = vmatpush1.msra.mxu0 %v685
    %2442 = vmatprep.subr.mxu0 %v690
    %2443 = vmatpush1.msra.mxu0 %v689
    %2444 = vmatprep.subr.mxu0 %v694
    %2445 = vmatpush1.msra.mxu0 %v693
    %2446 = vmatprep.subr.mxu0 %v698
    %2447 = vmatpush1.msra.mxu0 %v697
    %2448 = vmatprep.subr.mxu0 %v702
    %2449 = vmatpush1.msra.mxu0 %v701
    %2450 = vmatprep.subr.mxu0 %v706
    %2451 = vmatpush1.msra.mxu0 %v705
    %2452 = vmatprep.subr.mxu0 %v710
    %2453 = vmatpush1.msra.mxu0 %v709
    %2454 = vmatprep.subr.mxu0 %v714
    %2455 = vmatpush1.msra.mxu0 %v713
    %2456 = vmatprep.subr.mxu0 %v718
    %2457 = vmatpush1.msra.mxu0 %v717
    %2458 = vmatprep.subr.mxu0 %v722
    %2459 = vmatpush1.msra.mxu0 %v721
    %2460 = vmatprep.subr.mxu0 %v726
    %2461 = vmatpush1.msra.mxu0 %v725
    %2462 = vmatprep.subr.mxu0 %v730
    %2463 = vmatpush1.msra.mxu0 %v729
    %2464 = vmatprep.subr.mxu0 %v734
    %2465 = vmatpush1.msra.mxu0 %v733
    %2466 = vmatprep.subr.mxu0 %v738
    %2467 = vmatpush1.msra.mxu0 %v737
    %2468 = vmatprep.subr.mxu0 0.0
    %2469 = vmatpush1.msra.mxu0 0.0
    %2470 = vmatprep.subr.mxu0 0.0
    %2471 = vmatpush1.msra.mxu0 0.0
    %2472 = vmatprep.subr.mxu0 0.0
    %2473 = vmatpush1.msra.mxu0 0.0
    %2474 = vmatprep.subr.mxu0 0.0
    %2475 = vmatpush1.msra.mxu0 0.0
    %2476 = vmatprep.subr.mxu0 0.0
    %2477 = vmatpush1.msra.mxu0 0.0
    %2478 = vmatprep.subr.mxu0 0.0
    %2479 = vmatpush1.msra.mxu0 0.0
    %2480 = vmatprep.subr.mxu0 0.0
    %2481 = vmatpush1.msra.mxu0 0.0
    %2482 = vmatprep.subr.mxu0 0.0
    %2483 = vmatpush1.msra.mxu0 0.0
    %2484 = vmatprep.subr.mxu0 0.0
    %2485 = vmatpush1.msra.mxu0 0.0
    %2486 = vmatprep.subr.mxu0 0.0
    %2487 = vmatpush1.msra.mxu0 0.0
    %2488 = vmatprep.subr.mxu0 0.0
    %2489 = vmatpush1.msra.mxu0 0.0
    %2490 = vmatprep.subr.mxu0 0.0
    %2491 = vmatpush1.msra.mxu0 0.0
    %2492 = vmatprep.subr.mxu0 0.0
    %2493 = vmatpush1.msra.mxu0 0.0
    %2494 = vmatprep.subr.mxu0 0.0
    %2495 = vmatpush1.msra.mxu0 0.0
    %2496 = vmatprep.subr.mxu0 0.0
    %2497 = vmatpush1.msra.mxu0 0.0
    %2498 = vmatprep.subr.mxu0 0.0
    %2499 = vmatpush1.msra.mxu0 0.0
    %2500 = vmatprep.mubr.f32.mxu0 0.0
    %2501 = vmatmul.mubr.f32.gmra.mrb[0].mxu0 %v2293
    %v2502 = vpop.f32.mrb[0].mxu0
    %v2503 = vadd.f32 %v2361, %v2502
    %v2504 = vpop.f32.mrb[0].mxu0
    %v2505 = vadd.f32 %v2363, %v2504
    %2506 = vdwg.mxu0
    %2507 = vmatprep.subr.mxu0 %v680
    %2508 = vmatpush1.msra.mxu0 %v679
    %2509 = vmatprep.subr.mxu0 %v684
    %2510 = vmatpush1.msra.mxu0 %v683
    %2511 = vmatprep.subr.mxu0 %v688
    %2512 = vmatpush1.msra.mxu0 %v687
    %2513 = vmatprep.subr.mxu0 %v692
    %2514 = vmatpush1.msra.mxu0 %v691
    %2515 = vmatprep.subr.mxu0 %v696
    %2516 = vmatpush1.msra.mxu0 %v695
    %2517 = vmatprep.subr.mxu0 %v700
    %2518 = vmatpush1.msra.mxu0 %v699
    %2519 = vmatprep.subr.mxu0 %v704
    %2520 = vmatpush1.msra.mxu0 %v703
    %2521 = vmatprep.subr.mxu0 %v708
    %2522 = vmatpush1.msra.mxu0 %v707
    %2523 = vmatprep.subr.mxu0 %v712
    %2524 = vmatpush1.msra.mxu0 %v711
    %2525 = vmatprep.subr.mxu0 %v716
    %2526 = vmatpush1.msra.mxu0 %v715
    %2527 = vmatprep.subr.mxu0 %v720
    %2528 = vmatpush1.msra.mxu0 %v719
    %2529 = vmatprep.subr.mxu0 %v724
    %2530 = vmatpush1.msra.mxu0 %v723
    %2531 = vmatprep.subr.mxu0 %v728
    %2532 = vmatpush1.msra.mxu0 %v727
    %2533 = vmatprep.subr.mxu0 %v732
    %2534 = vmatpush1.msra.mxu0 %v731
    %2535 = vmatprep.subr.mxu0 %v736
    %2536 = vmatpush1.msra.mxu0 %v735
    %2537 = vmatprep.subr.mxu0 %v740
    %2538 = vmatpush1.msra.mxu0 %v739
    %2539 = vmatprep.subr.mxu0 0.0
    %2540 = vmatpush1.msra.mxu0 0.0
    %2541 = vmatprep.subr.mxu0 0.0
    %2542 = vmatpush1.msra.mxu0 0.0
    %2543 = vmatprep.subr.mxu0 0.0
    %2544 = vmatpush1.msra.mxu0 0.0
    %2545 = vmatprep.subr.mxu0 0.0
    %2546 = vmatpush1.msra.mxu0 0.0
    %2547 = vmatprep.subr.mxu0 0.0
    %2548 = vmatpush1.msra.mxu0 0.0
    %2549 = vmatprep.subr.mxu0 0.0
    %2550 = vmatpush1.msra.mxu0 0.0
    %2551 = vmatprep.subr.mxu0 0.0
    %2552 = vmatpush1.msra.mxu0 0.0
    %2553 = vmatprep.subr.mxu0 0.0
    %2554 = vmatpush1.msra.mxu0 0.0
    %2555 = vmatprep.subr.mxu0 0.0
    %2556 = vmatpush1.msra.mxu0 0.0
    %2557 = vmatprep.subr.mxu0 0.0
    %2558 = vmatpush1.msra.mxu0 0.0
    %2559 = vmatprep.subr.mxu0 0.0
    %2560 = vmatpush1.msra.mxu0 0.0
    %2561 = vmatprep.subr.mxu0 0.0
    %2562 = vmatpush1.msra.mxu0 0.0
    %2563 = vmatprep.subr.mxu0 0.0
    %2564 = vmatpush1.msra.mxu0 0.0
    %2565 = vmatprep.subr.mxu0 0.0
    %2566 = vmatpush1.msra.mxu0 0.0
    %2567 = vmatprep.subr.mxu0 0.0
    %2568 = vmatpush1.msra.mxu0 0.0
    %2569 = vmatprep.subr.mxu0 0.0
    %2570 = vmatpush1.msra.mxu0 0.0
    %2571 = vmatprep.mubr.f32.mxu0 0.0
    %2572 = vmatmul.mubr.f32.gmra.mrb[0].mxu0 %v2293
    %v2573 = vpop.f32.mrb[0].mxu0
    %v2574 = vadd.f32 %v2432, %v2573
    %v2575 = vpop.f32.mrb[0].mxu0
    %v2576 = vadd.f32 %v2434, %v2575
    %2577 = vdwg.mxu0
    %v2578 = vadd.f32 %v2503, %v1094
    %v2579 = vadd.f32 %v2505, %v1098
    %v2580 = vadd.f32 %v2574, %v1102
    %v2581 = vadd.f32 %v2576, %v1106
    %v2582 = vxor.u32 %v2578, 2147483648
    %v2583 = vmul.f32 %v2582, 1.442695
    %v2584 = vpow.pop %v2583
    %v2585 = vadd.f32 %v2584, 1.0
    %v2586 = vrcp.pop %v2585
    %v2587 = vmul.f32 1.0, %v2586
    %v2588 = vxor.u32 %v2579, 2147483648
    %v2589 = vmul.f32 %v2588, 1.442695
    %v2590 = vpow.pop %v2589
    %v2591 = vadd.f32 %v2590, 1.0
    %v2592 = vrcp.pop %v2591
    %v2593 = vmul.f32 1.0, %v2592
    %v2594 = vtanh.pop %v2580
    %v2595 = vxor.u32 %v2581, 2147483648
    %v2596 = vmul.f32 %v2595, 1.442695
    %v2597 = vpow.pop %v2596
    %v2598 = vadd.f32 %v2597, 1.0
    %v2599 = vrcp.pop %v2598
    %v2600 = vmul.f32 1.0, %v2599
    %v2601 = vmul.f32 %v2593, %v2114
    %v2602 = vmul.f32 %v2587, %v2594
    %v2603 = vadd.f32 %v2601, %v2602
    %v2604 = vtanh.pop %v2603
    %v2605 = vmul.f32 %v2600, %v2604
    %s2606 = smul.u32 4, 4
    %s2607 = smul.addr %s2606, 8
    %s2608 = scalar_lea.vmem [#allocation4], %s2607
    %v2609 = vld [vmem:[%s2608] sm:$0xff]
    %v2610 = vld [vmem:[%s2608 + $0x8] sm:$0xff]
    %v2611 = vld [vmem:[%s2608 + $0x10] sm:$0xff]
    %v2612 = vld [vmem:[%s2608 + $0x18] sm:$0xff]
    %2613 = vmatprep.subr.mxu0 %v444
    %2614 = vmatpush1.msra.mxu0 %v443
    %2615 = vmatprep.subr.mxu0 %v448
    %2616 = vmatpush1.msra.mxu0 %v447
    %2617 = vmatprep.subr.mxu0 %v452
    %2618 = vmatpush1.msra.mxu0 %v451
    %2619 = vmatprep.subr.mxu0 %v456
    %2620 = vmatpush1.msra.mxu0 %v455
    %2621 = vmatprep.subr.mxu0 %v460
    %2622 = vmatpush1.msra.mxu0 %v459
    %2623 = vmatprep.subr.mxu0 %v464
    %2624 = vmatpush1.msra.mxu0 %v463
    %2625 = vmatprep.subr.mxu0 %v468
    %2626 = vmatpush1.msra.mxu0 %v467
    %2627 = vmatprep.subr.mxu0 %v472
    %2628 = vmatpush1.msra.mxu0 %v471
    %2629 = vmatprep.subr.mxu0 %v476
    %2630 = vmatpush1.msra.mxu0 %v475
    %2631 = vmatprep.subr.mxu0 %v480
    %2632 = vmatpush1.msra.mxu0 %v479
    %2633 = vmatprep.subr.mxu0 %v484
    %2634 = vmatpush1.msra.mxu0 %v483
    %2635 = vmatprep.subr.mxu0 %v488
    %2636 = vmatpush1.msra.mxu0 %v487
    %2637 = vmatprep.subr.mxu0 %v492
    %2638 = vmatpush1.msra.mxu0 %v491
    %2639 = vmatprep.subr.mxu0 %v496
    %2640 = vmatpush1.msra.mxu0 %v495
    %2641 = vmatprep.subr.mxu0 %v500
    %2642 = vmatpush1.msra.mxu0 %v499
    %2643 = vmatprep.subr.mxu0 %v504
    %2644 = vmatpush1.msra.mxu0 %v503
    %2645 = vmatprep.subr.mxu0 0.0
    %2646 = vmatpush1.msra.mxu0 0.0
    %2647 = vmatprep.subr.mxu0 0.0
    %2648 = vmatpush1.msra.mxu0 0.0
    %2649 = vmatprep.subr.mxu0 0.0
    %2650 = vmatpush1.msra.mxu0 0.0
    %2651 = vmatprep.subr.mxu0 0.0
    %2652 = vmatpush1.msra.mxu0 0.0
    %2653 = vmatprep.subr.mxu0 0.0
    %2654 = vmatpush1.msra.mxu0 0.0
    %2655 = vmatprep.subr.mxu0 0.0
    %2656 = vmatpush1.msra.mxu0 0.0
    %2657 = vmatprep.subr.mxu0 0.0
    %2658 = vmatpush1.msra.mxu0 0.0
    %2659 = vmatprep.subr.mxu0 0.0
    %2660 = vmatpush1.msra.mxu0 0.0
    %2661 = vmatprep.subr.mxu0 0.0
    %2662 = vmatpush1.msra.mxu0 0.0
    %2663 = vmatprep.subr.mxu0 0.0
    %2664 = vmatpush1.msra.mxu0 0.0
    %2665 = vmatprep.subr.mxu0 0.0
    %2666 = vmatpush1.msra.mxu0 0.0
    %2667 = vmatprep.subr.mxu0 0.0
    %2668 = vmatpush1.msra.mxu0 0.0
    %2669 = vmatprep.subr.mxu0 0.0
    %2670 = vmatpush1.msra.mxu0 0.0
    %2671 = vmatprep.subr.mxu0 0.0
    %2672 = vmatpush1.msra.mxu0 0.0
    %2673 = vmatprep.subr.mxu0 0.0
    %2674 = vmatpush1.msra.mxu0 0.0
    %2675 = vmatprep.subr.mxu0 0.0
    %2676 = vmatpush1.msra.mxu0 0.0
    %2677 = vmatprep.mubr.f32.mxu0 0.0
    %2678 = vmatmul.mubr.f32.gmra.mrb[0].mxu0 %v2293
    %v2679 = vpop.f32.mrb[0].mxu0
    %v2680 = vadd.f32 0.0, %v2679
    %v2681 = vpop.f32.mrb[0].mxu0
    %v2682 = vadd.f32 0.0, %v2681
    %2683 = vdwg.mxu0
    %2684 = vmatprep.subr.mxu0 %v446
    %2685 = vmatpush1.msra.mxu0 %v445
    %2686 = vmatprep.subr.mxu0 %v450
    %2687 = vmatpush1.msra.mxu0 %v449
    %2688 = vmatprep.subr.mxu0 %v454
    %2689 = vmatpush1.msra.mxu0 %v453
    %2690 = vmatprep.subr.mxu0 %v458
    %2691 = vmatpush1.msra.mxu0 %v457
    %2692 = vmatprep.subr.mxu0 %v462
    %2693 = vmatpush1.msra.mxu0 %v461
    %2694 = vmatprep.subr.mxu0 %v466
    %2695 = vmatpush1.msra.mxu0 %v465
    %2696 = vmatprep.subr.mxu0 %v470
    %2697 = vmatpush1.msra.mxu0 %v469
    %2698 = vmatprep.subr.mxu0 %v474
    %2699 = vmatpush1.msra.mxu0 %v473
    %2700 = vmatprep.subr.mxu0 %v478
    %2701 = vmatpush1.msra.mxu0 %v477
    %2702 = vmatprep.subr.mxu0 %v482
    %2703 = vmatpush1.msra.mxu0 %v481
    %2704 = vmatprep.subr.mxu0 %v486
    %2705 = vmatpush1.msra.mxu0 %v485
    %2706 = vmatprep.subr.mxu0 %v490
    %2707 = vmatpush1.msra.mxu0 %v489
    %2708 = vmatprep.subr.mxu0 %v494
    %2709 = vmatpush1.msra.mxu0 %v493
    %2710 = vmatprep.subr.mxu0 %v498
    %2711 = vmatpush1.msra.mxu0 %v497
    %2712 = vmatprep.subr.mxu0 %v502
    %2713 = vmatpush1.msra.mxu0 %v501
    %2714 = vmatprep.subr.mxu0 %v506
    %2715 = vmatpush1.msra.mxu0 %v505
    %2716 = vmatprep.subr.mxu0 0.0
    %2717 = vmatpush1.msra.mxu0 0.0
    %2718 = vmatprep.subr.mxu0 0.0
    %2719 = vmatpush1.msra.mxu0 0.0
    %2720 = vmatprep.subr.mxu0 0.0
    %2721 = vmatpush1.msra.mxu0 0.0
    %2722 = vmatprep.subr.mxu0 0.0
    %2723 = vmatpush1.msra.mxu0 0.0
    %2724 = vmatprep.subr.mxu0 0.0
    %2725 = vmatpush1.msra.mxu0 0.0
    %2726 = vmatprep.subr.mxu0 0.0
    %2727 = vmatpush1.msra.mxu0 0.0
    %2728 = vmatprep.subr.mxu0 0.0
    %2729 = vmatpush1.msra.mxu0 0.0
    %2730 = vmatprep.subr.mxu0 0.0
    %2731 = vmatpush1.msra.mxu0 0.0
    %2732 = vmatprep.subr.mxu0 0.0
    %2733 = vmatpush1.msra.mxu0 0.0
    %2734 = vmatprep.subr.mxu0 0.0
    %2735 = vmatpush1.msra.mxu0 0.0
    %2736 = vmatprep.subr.mxu0 0.0
    %2737 = vmatpush1.msra.mxu0 0.0
    %2738 = vmatprep.subr.mxu0 0.0
    %2739 = vmatpush1.msra.mxu0 0.0
    %2740 = vmatprep.subr.mxu0 0.0
    %2741 = vmatpush1.msra.mxu0 0.0
    %2742 = vmatprep.subr.mxu0 0.0
    %2743 = vmatpush1.msra.mxu0 0.0
    %2744 = vmatprep.subr.mxu0 0.0
    %2745 = vmatpush1.msra.mxu0 0.0
    %2746 = vmatprep.subr.mxu0 0.0
    %2747 = vmatpush1.msra.mxu0 0.0
    %2748 = vmatprep.mubr.f32.mxu0 0.0
    %2749 = vmatmul.mubr.f32.gmra.mrb[0].mxu0 %v2293
    %v2750 = vpop.f32.mrb[0].mxu0
    %v2751 = vadd.f32 0.0, %v2750
    %v2752 = vpop.f32.mrb[0].mxu0
    %v2753 = vadd.f32 0.0, %v2752
    %2754 = vdwg.mxu0
    %v2755 = vadd.f32 %v2609, %v2680
    %v2756 = vadd.f32 %v2610, %v2682
    %v2757 = vadd.f32 %v2611, %v2751
    %v2758 = vadd.f32 %v2612, %v2753
    %v2759 = vxor.u32 %v2755, 2147483648
    %v2760 = vmul.f32 %v2759, 1.442695
    %v2761 = vpow.pop %v2760
    %v2762 = vadd.f32 %v2761, 1.0
    %v2763 = vrcp.pop %v2762
    %v2764 = vmul.f32 1.0, %v2763
    %v2765 = vxor.u32 %v2756, 2147483648
    %v2766 = vmul.f32 %v2765, 1.442695
    %v2767 = vpow.pop %v2766
    %v2768 = vadd.f32 %v2767, 1.0
    %v2769 = vrcp.pop %v2768
    %v2770 = vmul.f32 1.0, %v2769
    %v2771 = vtanh.pop %v2757
    %v2772 = vxor.u32 %v2758, 2147483648
    %v2773 = vmul.f32 %v2772, 1.442695
    %v2774 = vpow.pop %v2773
    %v2775 = vadd.f32 %v2774, 1.0
    %v2776 = vrcp.pop %v2775
    %v2777 = vmul.f32 1.0, %v2776
    %v2778 = vmul.f32 %v2770, %v2291
    %v2779 = vmul.f32 %v2764, %v2771
    %v2780 = vadd.f32 %v2778, %v2779
    %v2781 = vtanh.pop %v2780
    %v2782 = vmul.f32 %v2777, %v2781
    %2783 = vmatprep.subr.mxu0 %v742
    %2784 = vmatpush1.msra.mxu0 %v741
    %2785 = vmatprep.subr.mxu0 %v746
    %2786 = vmatpush1.msra.mxu0 %v745
    %2787 = vmatprep.subr.mxu0 %v750
    %2788 = vmatpush1.msra.mxu0 %v749
    %2789 = vmatprep.subr.mxu0 %v754
    %2790 = vmatpush1.msra.mxu0 %v753
    %2791 = vmatprep.subr.mxu0 %v758
    %2792 = vmatpush1.msra.mxu0 %v757
    %2793 = vmatprep.subr.mxu0 %v762
    %2794 = vmatpush1.msra.mxu0 %v761
    %2795 = vmatprep.subr.mxu0 %v766
    %2796 = vmatpush1.msra.mxu0 %v765
    %2797 = vmatprep.subr.mxu0 %v770
    %2798 = vmatpush1.msra.mxu0 %v769
    %2799 = vmatprep.subr.mxu0 %v774
    %2800 = vmatpush1.msra.mxu0 %v773
    %2801 = vmatprep.subr.mxu0 %v778
    %2802 = vmatpush1.msra.mxu0 %v777
    %2803 = vmatprep.subr.mxu0 %v782
    %2804 = vmatpush1.msra.mxu0 %v781
    %2805 = vmatprep.subr.mxu0 %v786
    %2806 = vmatpush1.msra.mxu0 %v785
    %2807 = vmatprep.subr.mxu0 %v790
    %2808 = vmatpush1.msra.mxu0 %v789
    %2809 = vmatprep.subr.mxu0 %v794
    %2810 = vmatpush1.msra.mxu0 %v793
    %2811 = vmatprep.subr.mxu0 %v798
    %2812 = vmatpush1.msra.mxu0 %v797
    %2813 = vmatprep.subr.mxu0 %v802
    %2814 = vmatpush1.msra.mxu0 %v801
    %2815 = vmatprep.subr.mxu0 0.0
    %2816 = vmatpush1.msra.mxu0 0.0
    %2817 = vmatprep.subr.mxu0 0.0
    %2818 = vmatpush1.msra.mxu0 0.0
    %2819 = vmatprep.subr.mxu0 0.0
    %2820 = vmatpush1.msra.mxu0 0.0
    %2821 = vmatprep.subr.mxu0 0.0
    %2822 = vmatpush1.msra.mxu0 0.0
    %2823 = vmatprep.subr.mxu0 0.0
    %2824 = vmatpush1.msra.mxu0 0.0
    %2825 = vmatprep.subr.mxu0 0.0
    %2826 = vmatpush1.msra.mxu0 0.0
    %2827 = vmatprep.subr.mxu0 0.0
    %2828 = vmatpush1.msra.mxu0 0.0
    %2829 = vmatprep.subr.mxu0 0.0
    %2830 = vmatpush1.msra.mxu0 0.0
    %2831 = vmatprep.subr.mxu0 0.0
    %2832 = vmatpush1.msra.mxu0 0.0
    %2833 = vmatprep.subr.mxu0 0.0
    %2834 = vmatpush1.msra.mxu0 0.0
    %2835 = vmatprep.subr.mxu0 0.0
    %2836 = vmatpush1.msra.mxu0 0.0
    %2837 = vmatprep.subr.mxu0 0.0
    %2838 = vmatpush1.msra.mxu0 0.0
    %2839 = vmatprep.subr.mxu0 0.0
    %2840 = vmatpush1.msra.mxu0 0.0
    %2841 = vmatprep.subr.mxu0 0.0
    %2842 = vmatpush1.msra.mxu0 0.0
    %2843 = vmatprep.subr.mxu0 0.0
    %2844 = vmatpush1.msra.mxu0 0.0
    %2845 = vmatprep.subr.mxu0 0.0
    %2846 = vmatpush1.msra.mxu0 0.0
    %2847 = vmatprep.mubr.f32.mxu0 0.0
    %2848 = vmatmul.mubr.f32.gmra.mrb[0].mxu0 %v2605
    %v2849 = vpop.f32.mrb[0].mxu0
    %v2850 = vadd.f32 0.0, %v2849
    %v2851 = vpop.f32.mrb[0].mxu0
    %v2852 = vadd.f32 0.0, %v2851
    %2853 = vdwg.mxu0
    %2854 = vmatprep.subr.mxu0 %v744
    %2855 = vmatpush1.msra.mxu0 %v743
    %2856 = vmatprep.subr.mxu0 %v748
    %2857 = vmatpush1.msra.mxu0 %v747
    %2858 = vmatprep.subr.mxu0 %v752
    %2859 = vmatpush1.msra.mxu0 %v751
    %2860 = vmatprep.subr.mxu0 %v756
    %2861 = vmatpush1.msra.mxu0 %v755
    %2862 = vmatprep.subr.mxu0 %v760
    %2863 = vmatpush1.msra.mxu0 %v759
    %2864 = vmatprep.subr.mxu0 %v764
    %2865 = vmatpush1.msra.mxu0 %v763
    %2866 = vmatprep.subr.mxu0 %v768
    %2867 = vmatpush1.msra.mxu0 %v767
    %2868 = vmatprep.subr.mxu0 %v772
    %2869 = vmatpush1.msra.mxu0 %v771
    %2870 = vmatprep.subr.mxu0 %v776
    %2871 = vmatpush1.msra.mxu0 %v775
    %2872 = vmatprep.subr.mxu0 %v780
    %2873 = vmatpush1.msra.mxu0 %v779
    %2874 = vmatprep.subr.mxu0 %v784
    %2875 = vmatpush1.msra.mxu0 %v783
    %2876 = vmatprep.subr.mxu0 %v788
    %2877 = vmatpush1.msra.mxu0 %v787
    %2878 = vmatprep.subr.mxu0 %v792
    %2879 = vmatpush1.msra.mxu0 %v791
    %2880 = vmatprep.subr.mxu0 %v796
    %2881 = vmatpush1.msra.mxu0 %v795
    %2882 = vmatprep.subr.mxu0 %v800
    %2883 = vmatpush1.msra.mxu0 %v799
    %2884 = vmatprep.subr.mxu0 %v804
    %2885 = vmatpush1.msra.mxu0 %v803
    %2886 = vmatprep.subr.mxu0 0.0
    %2887 = vmatpush1.msra.mxu0 0.0
    %2888 = vmatprep.subr.mxu0 0.0
    %2889 = vmatpush1.msra.mxu0 0.0
    %2890 = vmatprep.subr.mxu0 0.0
    %2891 = vmatpush1.msra.mxu0 0.0
    %2892 = vmatprep.subr.mxu0 0.0
    %2893 = vmatpush1.msra.mxu0 0.0
    %2894 = vmatprep.subr.mxu0 0.0
    %2895 = vmatpush1.msra.mxu0 0.0
    %2896 = vmatprep.subr.mxu0 0.0
    %2897 = vmatpush1.msra.mxu0 0.0
    %2898 = vmatprep.subr.mxu0 0.0
    %2899 = vmatpush1.msra.mxu0 0.0
    %2900 = vmatprep.subr.mxu0 0.0
    %2901 = vmatpush1.msra.mxu0 0.0
    %2902 = vmatprep.subr.mxu0 0.0
    %2903 = vmatpush1.msra.mxu0 0.0
    %2904 = vmatprep.subr.mxu0 0.0
    %2905 = vmatpush1.msra.mxu0 0.0
    %2906 = vmatprep.subr.mxu0 0.0
    %2907 = vmatpush1.msra.mxu0 0.0
    %2908 = vmatprep.subr.mxu0 0.0
    %2909 = vmatpush1.msra.mxu0 0.0
    %2910 = vmatprep.subr.mxu0 0.0
    %2911 = vmatpush1.msra.mxu0 0.0
    %2912 = vmatprep.subr.mxu0 0.0
    %2913 = vmatpush1.msra.mxu0 0.0
    %2914 = vmatprep.subr.mxu0 0.0
    %2915 = vmatpush1.msra.mxu0 0.0
    %2916 = vmatprep.subr.mxu0 0.0
    %2917 = vmatpush1.msra.mxu0 0.0
    %2918 = vmatprep.mubr.f32.mxu0 0.0
    %2919 = vmatmul.mubr.f32.gmra.mrb[0].mxu0 %v2605
    %v2920 = vpop.f32.mrb[0].mxu0
    %v2921 = vadd.f32 0.0, %v2920
    %v2922 = vpop.f32.mrb[0].mxu0
    %v2923 = vadd.f32 0.0, %v2922
    %2924 = vdwg.mxu0
    %2925 = vmatprep.subr.mxu0 %v678
    %2926 = vmatpush1.msra.mxu0 %v677
    %2927 = vmatprep.subr.mxu0 %v682
    %2928 = vmatpush1.msra.mxu0 %v681
    %2929 = vmatprep.subr.mxu0 %v686
    %2930 = vmatpush1.msra.mxu0 %v685
    %2931 = vmatprep.subr.mxu0 %v690
    %2932 = vmatpush1.msra.mxu0 %v689
    %2933 = vmatprep.subr.mxu0 %v694
    %2934 = vmatpush1.msra.mxu0 %v693
    %2935 = vmatprep.subr.mxu0 %v698
    %2936 = vmatpush1.msra.mxu0 %v697
    %2937 = vmatprep.subr.mxu0 %v702
    %2938 = vmatpush1.msra.mxu0 %v701
    %2939 = vmatprep.subr.mxu0 %v706
    %2940 = vmatpush1.msra.mxu0 %v705
    %2941 = vmatprep.subr.mxu0 %v710
    %2942 = vmatpush1.msra.mxu0 %v709
    %2943 = vmatprep.subr.mxu0 %v714
    %2944 = vmatpush1.msra.mxu0 %v713
    %2945 = vmatprep.subr.mxu0 %v718
    %2946 = vmatpush1.msra.mxu0 %v717
    %2947 = vmatprep.subr.mxu0 %v722
    %2948 = vmatpush1.msra.mxu0 %v721
    %2949 = vmatprep.subr.mxu0 %v726
    %2950 = vmatpush1.msra.mxu0 %v725
    %2951 = vmatprep.subr.mxu0 %v730
    %2952 = vmatpush1.msra.mxu0 %v729
    %2953 = vmatprep.subr.mxu0 %v734
    %2954 = vmatpush1.msra.mxu0 %v733
    %2955 = vmatprep.subr.mxu0 %v738
    %2956 = vmatpush1.msra.mxu0 %v737
    %2957 = vmatprep.subr.mxu0 0.0
    %2958 = vmatpush1.msra.mxu0 0.0
    %2959 = vmatprep.subr.mxu0 0.0
    %2960 = vmatpush1.msra.mxu0 0.0
    %2961 = vmatprep.subr.mxu0 0.0
    %2962 = vmatpush1.msra.mxu0 0.0
    %2963 = vmatprep.subr.mxu0 0.0
    %2964 = vmatpush1.msra.mxu0 0.0
    %2965 = vmatprep.subr.mxu0 0.0
    %2966 = vmatpush1.msra.mxu0 0.0
    %2967 = vmatprep.subr.mxu0 0.0
    %2968 = vmatpush1.msra.mxu0 0.0
    %2969 = vmatprep.subr.mxu0 0.0
    %2970 = vmatpush1.msra.mxu0 0.0
    %2971 = vmatprep.subr.mxu0 0.0
    %2972 = vmatpush1.msra.mxu0 0.0
    %2973 = vmatprep.subr.mxu0 0.0
    %2974 = vmatpush1.msra.mxu0 0.0
    %2975 = vmatprep.subr.mxu0 0.0
    %2976 = vmatpush1.msra.mxu0 0.0
    %2977 = vmatprep.subr.mxu0 0.0
    %2978 = vmatpush1.msra.mxu0 0.0
    %2979 = vmatprep.subr.mxu0 0.0
    %2980 = vmatpush1.msra.mxu0 0.0
    %2981 = vmatprep.subr.mxu0 0.0
    %2982 = vmatpush1.msra.mxu0 0.0
    %2983 = vmatprep.subr.mxu0 0.0
    %2984 = vmatpush1.msra.mxu0 0.0
    %2985 = vmatprep.subr.mxu0 0.0
    %2986 = vmatpush1.msra.mxu0 0.0
    %2987 = vmatprep.subr.mxu0 0.0
    %2988 = vmatpush1.msra.mxu0 0.0
    %2989 = vmatprep.mubr.f32.mxu0 0.0
    %2990 = vmatmul.mubr.f32.gmra.mrb[0].mxu0 %v2782
    %v2991 = vpop.f32.mrb[0].mxu0
    %v2992 = vadd.f32 %v2850, %v2991
    %v2993 = vpop.f32.mrb[0].mxu0
    %v2994 = vadd.f32 %v2852, %v2993
    %2995 = vdwg.mxu0
    %2996 = vmatprep.subr.mxu0 %v680
    %2997 = vmatpush1.msra.mxu0 %v679
    %2998 = vmatprep.subr.mxu0 %v684
    %2999 = vmatpush1.msra.mxu0 %v683
    %3000 = vmatprep.subr.mxu0 %v688
    %3001 = vmatpush1.msra.mxu0 %v687
    %3002 = vmatprep.subr.mxu0 %v692
    %3003 = vmatpush1.msra.mxu0 %v691
    %3004 = vmatprep.subr.mxu0 %v696
    %3005 = vmatpush1.msra.mxu0 %v695
    %3006 = vmatprep.subr.mxu0 %v700
    %3007 = vmatpush1.msra.mxu0 %v699
    %3008 = vmatprep.subr.mxu0 %v704
    %3009 = vmatpush1.msra.mxu0 %v703
    %3010 = vmatprep.subr.mxu0 %v708
    %3011 = vmatpush1.msra.mxu0 %v707
    %3012 = vmatprep.subr.mxu0 %v712
    %3013 = vmatpush1.msra.mxu0 %v711
    %3014 = vmatprep.subr.mxu0 %v716
    %3015 = vmatpush1.msra.mxu0 %v715
    %3016 = vmatprep.subr.mxu0 %v720
    %3017 = vmatpush1.msra.mxu0 %v719
    %3018 = vmatprep.subr.mxu0 %v724
    %3019 = vmatpush1.msra.mxu0 %v723
    %3020 = vmatprep.subr.mxu0 %v728
    %3021 = vmatpush1.msra.mxu0 %v727
    %3022 = vmatprep.subr.mxu0 %v732
    %3023 = vmatpush1.msra.mxu0 %v731
    %3024 = vmatprep.subr.mxu0 %v736
    %3025 = vmatpush1.msra.mxu0 %v735
    %3026 = vmatprep.subr.mxu0 %v740
    %3027 = vmatpush1.msra.mxu0 %v739
    %3028 = vmatprep.subr.mxu0 0.0
    %3029 = vmatpush1.msra.mxu0 0.0
    %3030 = vmatprep.subr.mxu0 0.0
    %3031 = vmatpush1.msra.mxu0 0.0
    %3032 = vmatprep.subr.mxu0 0.0
    %3033 = vmatpush1.msra.mxu0 0.0
    %3034 = vmatprep.subr.mxu0 0.0
    %3035 = vmatpush1.msra.mxu0 0.0
    %3036 = vmatprep.subr.mxu0 0.0
    %3037 = vmatpush1.msra.mxu0 0.0
    %3038 = vmatprep.subr.mxu0 0.0
    %3039 = vmatpush1.msra.mxu0 0.0
    %3040 = vmatprep.subr.mxu0 0.0
    %3041 = vmatpush1.msra.mxu0 0.0
    %3042 = vmatprep.subr.mxu0 0.0
    %3043 = vmatpush1.msra.mxu0 0.0
    %3044 = vmatprep.subr.mxu0 0.0
    %3045 = vmatpush1.msra.mxu0 0.0
    %3046 = vmatprep.subr.mxu0 0.0
    %3047 = vmatpush1.msra.mxu0 0.0
    %3048 = vmatprep.subr.mxu0 0.0
    %3049 = vmatpush1.msra.mxu0 0.0
    %3050 = vmatprep.subr.mxu0 0.0
    %3051 = vmatpush1.msra.mxu0 0.0
    %3052 = vmatprep.subr.mxu0 0.0
    %3053 = vmatpush1.msra.mxu0 0.0
    %3054 = vmatprep.subr.mxu0 0.0
    %3055 = vmatpush1.msra.mxu0 0.0
    %3056 = vmatprep.subr.mxu0 0.0
    %3057 = vmatpush1.msra.mxu0 0.0
    %3058 = vmatprep.subr.mxu0 0.0
    %3059 = vmatpush1.msra.mxu0 0.0
    %3060 = vmatprep.mubr.f32.mxu0 0.0
    %3061 = vmatmul.mubr.f32.gmra.mrb[0].mxu0 %v2782
    %v3062 = vpop.f32.mrb[0].mxu0
    %v3063 = vadd.f32 %v2921, %v3062
    %v3064 = vpop.f32.mrb[0].mxu0
    %v3065 = vadd.f32 %v2923, %v3064
    %3066 = vdwg.mxu0
    %v3067 = vadd.f32 %v2992, %v1094
    %v3068 = vadd.f32 %v2994, %v1098
    %v3069 = vadd.f32 %v3063, %v1102
    %v3070 = vadd.f32 %v3065, %v1106
    %v3071 = vxor.u32 %v3067, 2147483648
    %v3072 = vmul.f32 %v3071, 1.442695
    %v3073 = vpow.pop %v3072
    %v3074 = vadd.f32 %v3073, 1.0
    %v3075 = vrcp.pop %v3074
    %v3076 = vmul.f32 1.0, %v3075
    %v3077 = vxor.u32 %v3068, 2147483648
    %v3078 = vmul.f32 %v3077, 1.442695
    %v3079 = vpow.pop %v3078
    %v3080 = vadd.f32 %v3079, 1.0
    %v3081 = vrcp.pop %v3080
    %v3082 = vmul.f32 1.0, %v3081
    %v3083 = vtanh.pop %v3069
    %v3084 = vxor.u32 %v3070, 2147483648
    %v3085 = vmul.f32 %v3084, 1.442695
    %v3086 = vpow.pop %v3085
    %v3087 = vadd.f32 %v3086, 1.0
    %v3088 = vrcp.pop %v3087
    %v3089 = vmul.f32 1.0, %v3088
    %v3090 = vmul.f32 %v3082, %v2603
    %v3091 = vmul.f32 %v3076, %v3083
    %v3092 = vadd.f32 %v3090, %v3091
    %v3093 = vtanh.pop %v3092
    %v3094 = vmul.f32 %v3089, %v3093
    %s3095 = smul.u32 5, 4
    %s3096 = smul.addr %s3095, 8
    %s3097 = scalar_lea.vmem [#allocation4], %s3096
    %v3098 = vld [vmem:[%s3097] sm:$0xff]
    %v3099 = vld [vmem:[%s3097 + $0x8] sm:$0xff]
    %v3100 = vld [vmem:[%s3097 + $0x10] sm:$0xff]
    %v3101 = vld [vmem:[%s3097 + $0x18] sm:$0xff]
    %3102 = vmatprep.subr.mxu0 %v444
    %3103 = vmatpush1.msra.mxu0 %v443
    %3104 = vmatprep.subr.mxu0 %v448
    %3105 = vmatpush1.msra.mxu0 %v447
    %3106 = vmatprep.subr.mxu0 %v452
    %3107 = vmatpush1.msra.mxu0 %v451
    %3108 = vmatprep.subr.mxu0 %v456
    %3109 = vmatpush1.msra.mxu0 %v455
    %3110 = vmatprep.subr.mxu0 %v460
    %3111 = vmatpush1.msra.mxu0 %v459
    %3112 = vmatprep.subr.mxu0 %v464
    %3113 = vmatpush1.msra.mxu0 %v463
    %3114 = vmatprep.subr.mxu0 %v468
    %3115 = vmatpush1.msra.mxu0 %v467
    %3116 = vmatprep.subr.mxu0 %v472
    %3117 = vmatpush1.msra.mxu0 %v471
    %3118 = vmatprep.subr.mxu0 %v476
    %3119 = vmatpush1.msra.mxu0 %v475
    %3120 = vmatprep.subr.mxu0 %v480
    %3121 = vmatpush1.msra.mxu0 %v479
    %3122 = vmatprep.subr.mxu0 %v484
    %3123 = vmatpush1.msra.mxu0 %v483
    %3124 = vmatprep.subr.mxu0 %v488
    %3125 = vmatpush1.msra.mxu0 %v487
    %3126 = vmatprep.subr.mxu0 %v492
    %3127 = vmatpush1.msra.mxu0 %v491
    %3128 = vmatprep.subr.mxu0 %v496
    %3129 = vmatpush1.msra.mxu0 %v495
    %3130 = vmatprep.subr.mxu0 %v500
    %3131 = vmatpush1.msra.mxu0 %v499
    %3132 = vmatprep.subr.mxu0 %v504
    %3133 = vmatpush1.msra.mxu0 %v503
    %3134 = vmatprep.subr.mxu0 0.0
    %3135 = vmatpush1.msra.mxu0 0.0
    %3136 = vmatprep.subr.mxu0 0.0
    %3137 = vmatpush1.msra.mxu0 0.0
    %3138 = vmatprep.subr.mxu0 0.0
    %3139 = vmatpush1.msra.mxu0 0.0
    %3140 = vmatprep.subr.mxu0 0.0
    %3141 = vmatpush1.msra.mxu0 0.0
    %3142 = vmatprep.subr.mxu0 0.0
    %3143 = vmatpush1.msra.mxu0 0.0
    %3144 = vmatprep.subr.mxu0 0.0
    %3145 = vmatpush1.msra.mxu0 0.0
    %3146 = vmatprep.subr.mxu0 0.0
    %3147 = vmatpush1.msra.mxu0 0.0
    %3148 = vmatprep.subr.mxu0 0.0
    %3149 = vmatpush1.msra.mxu0 0.0
    %3150 = vmatprep.subr.mxu0 0.0
    %3151 = vmatpush1.msra.mxu0 0.0
    %3152 = vmatprep.subr.mxu0 0.0
    %3153 = vmatpush1.msra.mxu0 0.0
    %3154 = vmatprep.subr.mxu0 0.0
    %3155 = vmatpush1.msra.mxu0 0.0
    %3156 = vmatprep.subr.mxu0 0.0
    %3157 = vmatpush1.msra.mxu0 0.0
    %3158 = vmatprep.subr.mxu0 0.0
    %3159 = vmatpush1.msra.mxu0 0.0
    %3160 = vmatprep.subr.mxu0 0.0
    %3161 = vmatpush1.msra.mxu0 0.0
    %3162 = vmatprep.subr.mxu0 0.0
    %3163 = vmatpush1.msra.mxu0 0.0
    %3164 = vmatprep.subr.mxu0 0.0
    %3165 = vmatpush1.msra.mxu0 0.0
    %3166 = vmatprep.mubr.f32.mxu0 0.0
    %3167 = vmatmul.mubr.f32.gmra.mrb[0].mxu0 %v2782
    %v3168 = vpop.f32.mrb[0].mxu0
    %v3169 = vadd.f32 0.0, %v3168
    %v3170 = vpop.f32.mrb[0].mxu0
    %v3171 = vadd.f32 0.0, %v3170
    %3172 = vdwg.mxu0
    %3173 = vmatprep.subr.mxu0 %v446
    %3174 = vmatpush1.msra.mxu0 %v445
    %3175 = vmatprep.subr.mxu0 %v450
    %3176 = vmatpush1.msra.mxu0 %v449
    %3177 = vmatprep.subr.mxu0 %v454
    %3178 = vmatpush1.msra.mxu0 %v453
    %3179 = vmatprep.subr.mxu0 %v458
    %3180 = vmatpush1.msra.mxu0 %v457
    %3181 = vmatprep.subr.mxu0 %v462
    %3182 = vmatpush1.msra.mxu0 %v461
    %3183 = vmatprep.subr.mxu0 %v466
    %3184 = vmatpush1.msra.mxu0 %v465
    %3185 = vmatprep.subr.mxu0 %v470
    %3186 = vmatpush1.msra.mxu0 %v469
    %3187 = vmatprep.subr.mxu0 %v474
    %3188 = vmatpush1.msra.mxu0 %v473
    %3189 = vmatprep.subr.mxu0 %v478
    %3190 = vmatpush1.msra.mxu0 %v477
    %3191 = vmatprep.subr.mxu0 %v482
    %3192 = vmatpush1.msra.mxu0 %v481
    %3193 = vmatprep.subr.mxu0 %v486
    %3194 = vmatpush1.msra.mxu0 %v485
    %3195 = vmatprep.subr.mxu0 %v490
    %3196 = vmatpush1.msra.mxu0 %v489
    %3197 = vmatprep.subr.mxu0 %v494
    %3198 = vmatpush1.msra.mxu0 %v493
    %3199 = vmatprep.subr.mxu0 %v498
    %3200 = vmatpush1.msra.mxu0 %v497
    %3201 = vmatprep.subr.mxu0 %v502
    %3202 = vmatpush1.msra.mxu0 %v501
    %3203 = vmatprep.subr.mxu0 %v506
    %3204 = vmatpush1.msra.mxu0 %v505
    %3205 = vmatprep.subr.mxu0 0.0
    %3206 = vmatpush1.msra.mxu0 0.0
    %3207 = vmatprep.subr.mxu0 0.0
    %3208 = vmatpush1.msra.mxu0 0.0
    %3209 = vmatprep.subr.mxu0 0.0
    %3210 = vmatpush1.msra.mxu0 0.0
    %3211 = vmatprep.subr.mxu0 0.0
    %3212 = vmatpush1.msra.mxu0 0.0
    %3213 = vmatprep.subr.mxu0 0.0
    %3214 = vmatpush1.msra.mxu0 0.0
    %3215 = vmatprep.subr.mxu0 0.0
    %3216 = vmatpush1.msra.mxu0 0.0
    %3217 = vmatprep.subr.mxu0 0.0
    %3218 = vmatpush1.msra.mxu0 0.0
    %3219 = vmatprep.subr.mxu0 0.0
    %3220 = vmatpush1.msra.mxu0 0.0
    %3221 = vmatprep.subr.mxu0 0.0
    %3222 = vmatpush1.msra.mxu0 0.0
    %3223 = vmatprep.subr.mxu0 0.0
    %3224 = vmatpush1.msra.mxu0 0.0
    %3225 = vmatprep.subr.mxu0 0.0
    %3226 = vmatpush1.msra.mxu0 0.0
    %3227 = vmatprep.subr.mxu0 0.0
    %3228 = vmatpush1.msra.mxu0 0.0
    %3229 = vmatprep.subr.mxu0 0.0
    %3230 = vmatpush1.msra.mxu0 0.0
    %3231 = vmatprep.subr.mxu0 0.0
    %3232 = vmatpush1.msra.mxu0 0.0
    %3233 = vmatprep.subr.mxu0 0.0
    %3234 = vmatpush1.msra.mxu0 0.0
    %3235 = vmatprep.subr.mxu0 0.0
    %3236 = vmatpush1.msra.mxu0 0.0
    %3237 = vmatprep.mubr.f32.mxu0 0.0
    %3238 = vmatmul.mubr.f32.gmra.mrb[0].mxu0 %v2782
    %v3239 = vpop.f32.mrb[0].mxu0
    %v3240 = vadd.f32 0.0, %v3239
    %v3241 = vpop.f32.mrb[0].mxu0
    %v3242 = vadd.f32 0.0, %v3241
    %3243 = vdwg.mxu0
    %v3244 = vadd.f32 %v3098, %v3169
    %v3245 = vadd.f32 %v3099, %v3171
    %v3246 = vadd.f32 %v3100, %v3240
    %v3247 = vadd.f32 %v3101, %v3242
    %v3248 = vxor.u32 %v3244, 2147483648
    %v3249 = vmul.f32 %v3248, 1.442695
    %v3250 = vpow.pop %v3249
    %v3251 = vadd.f32 %v3250, 1.0
    %v3252 = vrcp.pop %v3251
    %v3253 = vmul.f32 1.0, %v3252
    %v3254 = vxor.u32 %v3245, 2147483648
    %v3255 = vmul.f32 %v3254, 1.442695
    %v3256 = vpow.pop %v3255
    %v3257 = vadd.f32 %v3256, 1.0
    %v3258 = vrcp.pop %v3257
    %v3259 = vmul.f32 1.0, %v3258
    %v3260 = vtanh.pop %v3246
    %v3261 = vxor.u32 %v3247, 2147483648
    %v3262 = vmul.f32 %v3261, 1.442695
    %v3263 = vpow.pop %v3262
    %v3264 = vadd.f32 %v3263, 1.0
    %v3265 = vrcp.pop %v3264
    %v3266 = vmul.f32 1.0, %v3265
    %v3267 = vmul.f32 %v3259, %v2780
    %v3268 = vmul.f32 %v3253, %v3260
    %v3269 = vadd.f32 %v3267, %v3268
    %v3270 = vtanh.pop %v3269
    %v3271 = vmul.f32 %v3266, %v3270
    %3272 = vmatprep.subr.mxu0 %v742
    %3273 = vmatpush1.msra.mxu0 %v741
    %3274 = vmatprep.subr.mxu0 %v746
    %3275 = vmatpush1.msra.mxu0 %v745
    %3276 = vmatprep.subr.mxu0 %v750
    %3277 = vmatpush1.msra.mxu0 %v749
    %3278 = vmatprep.subr.mxu0 %v754
    %3279 = vmatpush1.msra.mxu0 %v753
    %3280 = vmatprep.subr.mxu0 %v758
    %3281 = vmatpush1.msra.mxu0 %v757
    %3282 = vmatprep.subr.mxu0 %v762
    %3283 = vmatpush1.msra.mxu0 %v761
    %3284 = vmatprep.subr.mxu0 %v766
    %3285 = vmatpush1.msra.mxu0 %v765
    %3286 = vmatprep.subr.mxu0 %v770
    %3287 = vmatpush1.msra.mxu0 %v769
    %3288 = vmatprep.subr.mxu0 %v774
    %3289 = vmatpush1.msra.mxu0 %v773
    %3290 = vmatprep.subr.mxu0 %v778
    %3291 = vmatpush1.msra.mxu0 %v777
    %3292 = vmatprep.subr.mxu0 %v782
    %3293 = vmatpush1.msra.mxu0 %v781
    %3294 = vmatprep.subr.mxu0 %v786
    %3295 = vmatpush1.msra.mxu0 %v785
    %3296 = vmatprep.subr.mxu0 %v790
    %3297 = vmatpush1.msra.mxu0 %v789
    %3298 = vmatprep.subr.mxu0 %v794
    %3299 = vmatpush1.msra.mxu0 %v793
    %3300 = vmatprep.subr.mxu0 %v798
    %3301 = vmatpush1.msra.mxu0 %v797
    %3302 = vmatprep.subr.mxu0 %v802
    %3303 = vmatpush1.msra.mxu0 %v801
    %3304 = vmatprep.subr.mxu0 0.0
    %3305 = vmatpush1.msra.mxu0 0.0
    %3306 = vmatprep.subr.mxu0 0.0
    %3307 = vmatpush1.msra.mxu0 0.0
    %3308 = vmatprep.subr.mxu0 0.0
    %3309 = vmatpush1.msra.mxu0 0.0
    %3310 = vmatprep.subr.mxu0 0.0
    %3311 = vmatpush1.msra.mxu0 0.0
    %3312 = vmatprep.subr.mxu0 0.0
    %3313 = vmatpush1.msra.mxu0 0.0
    %3314 = vmatprep.subr.mxu0 0.0
    %3315 = vmatpush1.msra.mxu0 0.0
    %3316 = vmatprep.subr.mxu0 0.0
    %3317 = vmatpush1.msra.mxu0 0.0
    %3318 = vmatprep.subr.mxu0 0.0
    %3319 = vmatpush1.msra.mxu0 0.0
    %3320 = vmatprep.subr.mxu0 0.0
    %3321 = vmatpush1.msra.mxu0 0.0
    %3322 = vmatprep.subr.mxu0 0.0
    %3323 = vmatpush1.msra.mxu0 0.0
    %3324 = vmatprep.subr.mxu0 0.0
    %3325 = vmatpush1.msra.mxu0 0.0
    %3326 = vmatprep.subr.mxu0 0.0
    %3327 = vmatpush1.msra.mxu0 0.0
    %3328 = vmatprep.subr.mxu0 0.0
    %3329 = vmatpush1.msra.mxu0 0.0
    %3330 = vmatprep.subr.mxu0 0.0
    %3331 = vmatpush1.msra.mxu0 0.0
    %3332 = vmatprep.subr.mxu0 0.0
    %3333 = vmatpush1.msra.mxu0 0.0
    %3334 = vmatprep.subr.mxu0 0.0
    %3335 = vmatpush1.msra.mxu0 0.0
    %3336 = vmatprep.mubr.f32.mxu0 0.0
    %3337 = vmatmul.mubr.f32.gmra.mrb[0].mxu0 %v3094
    %v3338 = vpop.f32.mrb[0].mxu0
    %v3339 = vadd.f32 0.0, %v3338
    %v3340 = vpop.f32.mrb[0].mxu0
    %v3341 = vadd.f32 0.0, %v3340
    %3342 = vdwg.mxu0
    %3343 = vmatprep.subr.mxu0 %v744
    %3344 = vmatpush1.msra.mxu0 %v743
    %3345 = vmatprep.subr.mxu0 %v748
    %3346 = vmatpush1.msra.mxu0 %v747
    %3347 = vmatprep.subr.mxu0 %v752
    %3348 = vmatpush1.msra.mxu0 %v751
    %3349 = vmatprep.subr.mxu0 %v756
    %3350 = vmatpush1.msra.mxu0 %v755
    %3351 = vmatprep.subr.mxu0 %v760
    %3352 = vmatpush1.msra.mxu0 %v759
    %3353 = vmatprep.subr.mxu0 %v764
    %3354 = vmatpush1.msra.mxu0 %v763
    %3355 = vmatprep.subr.mxu0 %v768
    %3356 = vmatpush1.msra.mxu0 %v767
    %3357 = vmatprep.subr.mxu0 %v772
    %3358 = vmatpush1.msra.mxu0 %v771
    %3359 = vmatprep.subr.mxu0 %v776
    %3360 = vmatpush1.msra.mxu0 %v775
    %3361 = vmatprep.subr.mxu0 %v780
    %3362 = vmatpush1.msra.mxu0 %v779
    %3363 = vmatprep.subr.mxu0 %v784
    %3364 = vmatpush1.msra.mxu0 %v783
    %3365 = vmatprep.subr.mxu0 %v788
    %3366 = vmatpush1.msra.mxu0 %v787
    %3367 = vmatprep.subr.mxu0 %v792
    %3368 = vmatpush1.msra.mxu0 %v791
    %3369 = vmatprep.subr.mxu0 %v796
    %3370 = vmatpush1.msra.mxu0 %v795
    %3371 = vmatprep.subr.mxu0 %v800
    %3372 = vmatpush1.msra.mxu0 %v799
    %3373 = vmatprep.subr.mxu0 %v804
    %3374 = vmatpush1.msra.mxu0 %v803
    %3375 = vmatprep.subr.mxu0 0.0
    %3376 = vmatpush1.msra.mxu0 0.0
    %3377 = vmatprep.subr.mxu0 0.0
    %3378 = vmatpush1.msra.mxu0 0.0
    %3379 = vmatprep.subr.mxu0 0.0
    %3380 = vmatpush1.msra.mxu0 0.0
    %3381 = vmatprep.subr.mxu0 0.0
    %3382 = vmatpush1.msra.mxu0 0.0
    %3383 = vmatprep.subr.mxu0 0.0
    %3384 = vmatpush1.msra.mxu0 0.0
    %3385 = vmatprep.subr.mxu0 0.0
    %3386 = vmatpush1.msra.mxu0 0.0
    %3387 = vmatprep.subr.mxu0 0.0
    %3388 = vmatpush1.msra.mxu0 0.0
    %3389 = vmatprep.subr.mxu0 0.0
    %3390 = vmatpush1.msra.mxu0 0.0
    %3391 = vmatprep.subr.mxu0 0.0
    %3392 = vmatpush1.msra.mxu0 0.0
    %3393 = vmatprep.subr.mxu0 0.0
    %3394 = vmatpush1.msra.mxu0 0.0
    %3395 = vmatprep.subr.mxu0 0.0
    %3396 = vmatpush1.msra.mxu0 0.0
    %3397 = vmatprep.subr.mxu0 0.0
    %3398 = vmatpush1.msra.mxu0 0.0
    %3399 = vmatprep.subr.mxu0 0.0
    %3400 = vmatpush1.msra.mxu0 0.0
    %3401 = vmatprep.subr.mxu0 0.0
    %3402 = vmatpush1.msra.mxu0 0.0
    %3403 = vmatprep.subr.mxu0 0.0
    %3404 = vmatpush1.msra.mxu0 0.0
    %3405 = vmatprep.subr.mxu0 0.0
    %3406 = vmatpush1.msra.mxu0 0.0
    %3407 = vmatprep.mubr.f32.mxu0 0.0
    %3408 = vmatmul.mubr.f32.gmra.mrb[0].mxu0 %v3094
    %v3409 = vpop.f32.mrb[0].mxu0
    %v3410 = vadd.f32 0.0, %v3409
    %v3411 = vpop.f32.mrb[0].mxu0
    %v3412 = vadd.f32 0.0, %v3411
    %3413 = vdwg.mxu0
    %3414 = vmatprep.subr.mxu0 %v678
    %3415 = vmatpush1.msra.mxu0 %v677
    %3416 = vmatprep.subr.mxu0 %v682
    %3417 = vmatpush1.msra.mxu0 %v681
    %3418 = vmatprep.subr.mxu0 %v686
    %3419 = vmatpush1.msra.mxu0 %v685
    %3420 = vmatprep.subr.mxu0 %v690
    %3421 = vmatpush1.msra.mxu0 %v689
    %3422 = vmatprep.subr.mxu0 %v694
    %3423 = vmatpush1.msra.mxu0 %v693
    %3424 = vmatprep.subr.mxu0 %v698
    %3425 = vmatpush1.msra.mxu0 %v697
    %3426 = vmatprep.subr.mxu0 %v702
    %3427 = vmatpush1.msra.mxu0 %v701
    %3428 = vmatprep.subr.mxu0 %v706
    %3429 = vmatpush1.msra.mxu0 %v705
    %3430 = vmatprep.subr.mxu0 %v710
    %3431 = vmatpush1.msra.mxu0 %v709
    %3432 = vmatprep.subr.mxu0 %v714
    %3433 = vmatpush1.msra.mxu0 %v713
    %3434 = vmatprep.subr.mxu0 %v718
    %3435 = vmatpush1.msra.mxu0 %v717
    %3436 = vmatprep.subr.mxu0 %v722
    %3437 = vmatpush1.msra.mxu0 %v721
    %3438 = vmatprep.subr.mxu0 %v726
    %3439 = vmatpush1.msra.mxu0 %v725
    %3440 = vmatprep.subr.mxu0 %v730
    %3441 = vmatpush1.msra.mxu0 %v729
    %3442 = vmatprep.subr.mxu0 %v734
    %3443 = vmatpush1.msra.mxu0 %v733
    %3444 = vmatprep.subr.mxu0 %v738
    %3445 = vmatpush1.msra.mxu0 %v737
    %3446 = vmatprep.subr.mxu0 0.0
    %3447 = vmatpush1.msra.mxu0 0.0
    %3448 = vmatprep.subr.mxu0 0.0
    %3449 = vmatpush1.msra.mxu0 0.0
    %3450 = vmatprep.subr.mxu0 0.0
    %3451 = vmatpush1.msra.mxu0 0.0
    %3452 = vmatprep.subr.mxu0 0.0
    %3453 = vmatpush1.msra.mxu0 0.0
    %3454 = vmatprep.subr.mxu0 0.0
    %3455 = vmatpush1.msra.mxu0 0.0
    %3456 = vmatprep.subr.mxu0 0.0
    %3457 = vmatpush1.msra.mxu0 0.0
    %3458 = vmatprep.subr.mxu0 0.0
    %3459 = vmatpush1.msra.mxu0 0.0
    %3460 = vmatprep.subr.mxu0 0.0
    %3461 = vmatpush1.msra.mxu0 0.0
    %3462 = vmatprep.subr.mxu0 0.0
    %3463 = vmatpush1.msra.mxu0 0.0
    %3464 = vmatprep.subr.mxu0 0.0
    %3465 = vmatpush1.msra.mxu0 0.0
    %3466 = vmatprep.subr.mxu0 0.0
    %3467 = vmatpush1.msra.mxu0 0.0
    %3468 = vmatprep.subr.mxu0 0.0
    %3469 = vmatpush1.msra.mxu0 0.0
    %3470 = vmatprep.subr.mxu0 0.0
    %3471 = vmatpush1.msra.mxu0 0.0
    %3472 = vmatprep.subr.mxu0 0.0
    %3473 = vmatpush1.msra.mxu0 0.0
    %3474 = vmatprep.subr.mxu0 0.0
    %3475 = vmatpush1.msra.mxu0 0.0
    %3476 = vmatprep.subr.mxu0 0.0
    %3477 = vmatpush1.msra.mxu0 0.0
    %3478 = vmatprep.mubr.f32.mxu0 0.0
    %3479 = vmatmul.mubr.f32.gmra.mrb[0].mxu0 %v3271
    %v3480 = vpop.f32.mrb[0].mxu0
    %v3481 = vadd.f32 %v3339, %v3480
    %v3482 = vpop.f32.mrb[0].mxu0
    %v3483 = vadd.f32 %v3341, %v3482
    %3484 = vdwg.mxu0
    %3485 = vmatprep.subr.mxu0 %v680
    %3486 = vmatpush1.msra.mxu0 %v679
    %3487 = vmatprep.subr.mxu0 %v684
    %3488 = vmatpush1.msra.mxu0 %v683
    %3489 = vmatprep.subr.mxu0 %v688
    %3490 = vmatpush1.msra.mxu0 %v687
    %3491 = vmatprep.subr.mxu0 %v692
    %3492 = vmatpush1.msra.mxu0 %v691
    %3493 = vmatprep.subr.mxu0 %v696
    %3494 = vmatpush1.msra.mxu0 %v695
    %3495 = vmatprep.subr.mxu0 %v700
    %3496 = vmatpush1.msra.mxu0 %v699
    %3497 = vmatprep.subr.mxu0 %v704
    %3498 = vmatpush1.msra.mxu0 %v703
    %3499 = vmatprep.subr.mxu0 %v708
    %3500 = vmatpush1.msra.mxu0 %v707
    %3501 = vmatprep.subr.mxu0 %v712
    %3502 = vmatpush1.msra.mxu0 %v711
    %3503 = vmatprep.subr.mxu0 %v716
    %3504 = vmatpush1.msra.mxu0 %v715
    %3505 = vmatprep.subr.mxu0 %v720
    %3506 = vmatpush1.msra.mxu0 %v719
    %3507 = vmatprep.subr.mxu0 %v724
    %3508 = vmatpush1.msra.mxu0 %v723
    %3509 = vmatprep.subr.mxu0 %v728
    %3510 = vmatpush1.msra.mxu0 %v727
    %3511 = vmatprep.subr.mxu0 %v732
    %3512 = vmatpush1.msra.mxu0 %v731
    %3513 = vmatprep.subr.mxu0 %v736
    %3514 = vmatpush1.msra.mxu0 %v735
    %3515 = vmatprep.subr.mxu0 %v740
    %3516 = vmatpush1.msra.mxu0 %v739
    %3517 = vmatprep.subr.mxu0 0.0
    %3518 = vmatpush1.msra.mxu0 0.0
    %3519 = vmatprep.subr.mxu0 0.0
    %3520 = vmatpush1.msra.mxu0 0.0
    %3521 = vmatprep.subr.mxu0 0.0
    %3522 = vmatpush1.msra.mxu0 0.0
    %3523 = vmatprep.subr.mxu0 0.0
    %3524 = vmatpush1.msra.mxu0 0.0
    %3525 = vmatprep.subr.mxu0 0.0
    %3526 = vmatpush1.msra.mxu0 0.0
    %3527 = vmatprep.subr.mxu0 0.0
    %3528 = vmatpush1.msra.mxu0 0.0
    %3529 = vmatprep.subr.mxu0 0.0
    %3530 = vmatpush1.msra.mxu0 0.0
    %3531 = vmatprep.subr.mxu0 0.0
    %3532 = vmatpush1.msra.mxu0 0.0
    %3533 = vmatprep.subr.mxu0 0.0
    %3534 = vmatpush1.msra.mxu0 0.0
    %3535 = vmatprep.subr.mxu0 0.0
    %3536 = vmatpush1.msra.mxu0 0.0
    %3537 = vmatprep.subr.mxu0 0.0
    %3538 = vmatpush1.msra.mxu0 0.0
    %3539 = vmatprep.subr.mxu0 0.0
    %3540 = vmatpush1.msra.mxu0 0.0
    %3541 = vmatprep.subr.mxu0 0.0
    %3542 = vmatpush1.msra.mxu0 0.0
    %3543 = vmatprep.subr.mxu0 0.0
    %3544 = vmatpush1.msra.mxu0 0.0
    %3545 = vmatprep.subr.mxu0 0.0
    %3546 = vmatpush1.msra.mxu0 0.0
    %3547 = vmatprep.subr.mxu0 0.0
    %3548 = vmatpush1.msra.mxu0 0.0
    %3549 = vmatprep.mubr.f32.mxu0 0.0
    %3550 = vmatmul.mubr.f32.gmra.mrb[0].mxu0 %v3271
    %v3551 = vpop.f32.mrb[0].mxu0
    %v3552 = vadd.f32 %v3410, %v3551
    %v3553 = vpop.f32.mrb[0].mxu0
    %v3554 = vadd.f32 %v3412, %v3553
    %3555 = vdwg.mxu0
    %v3556 = vadd.f32 %v3481, %v1094
    %v3557 = vadd.f32 %v3483, %v1098
    %v3558 = vadd.f32 %v3552, %v1102
    %v3559 = vadd.f32 %v3554, %v1106
    %v3560 = vxor.u32 %v3556, 2147483648
    %v3561 = vmul.f32 %v3560, 1.442695
    %v3562 = vpow.pop %v3561
    %v3563 = vadd.f32 %v3562, 1.0
    %v3564 = vrcp.pop %v3563
    %v3565 = vmul.f32 1.0, %v3564
    %v3566 = vxor.u32 %v3557, 2147483648
    %v3567 = vmul.f32 %v3566, 1.442695
    %v3568 = vpow.pop %v3567
    %v3569 = vadd.f32 %v3568, 1.0
    %v3570 = vrcp.pop %v3569
    %v3571 = vmul.f32 1.0, %v3570
    %v3572 = vtanh.pop %v3558
    %v3573 = vxor.u32 %v3559, 2147483648
    %v3574 = vmul.f32 %v3573, 1.442695
    %v3575 = vpow.pop %v3574
    %v3576 = vadd.f32 %v3575, 1.0
    %v3577 = vrcp.pop %v3576
    %v3578 = vmul.f32 1.0, %v3577
    %v3579 = vmul.f32 %v3571, %v3092
    %v3580 = vmul.f32 %v3565, %v3572
    %v3581 = vadd.f32 %v3579, %v3580
    %v3582 = vtanh.pop %v3581
    %v3583 = vmul.f32 %v3578, %v3582
    %s3584 = smul.u32 6, 4
    %s3585 = smul.addr %s3584, 8
    %s3586 = scalar_lea.vmem [#allocation4], %s3585
    %v3587 = vld [vmem:[%s3586] sm:$0xff]
    %v3588 = vld [vmem:[%s3586 + $0x8] sm:$0xff]
    %v3589 = vld [vmem:[%s3586 + $0x10] sm:$0xff]
    %v3590 = vld [vmem:[%s3586 + $0x18] sm:$0xff]
    %3591 = vmatprep.subr.mxu0 %v444
    %3592 = vmatpush1.msra.mxu0 %v443
    %3593 = vmatprep.subr.mxu0 %v448
    %3594 = vmatpush1.msra.mxu0 %v447
    %3595 = vmatprep.subr.mxu0 %v452
    %3596 = vmatpush1.msra.mxu0 %v451
    %3597 = vmatprep.subr.mxu0 %v456
    %3598 = vmatpush1.msra.mxu0 %v455
    %3599 = vmatprep.subr.mxu0 %v460
    %3600 = vmatpush1.msra.mxu0 %v459
    %3601 = vmatprep.subr.mxu0 %v464
    %3602 = vmatpush1.msra.mxu0 %v463
    %3603 = vmatprep.subr.mxu0 %v468
    %3604 = vmatpush1.msra.mxu0 %v467
    %3605 = vmatprep.subr.mxu0 %v472
    %3606 = vmatpush1.msra.mxu0 %v471
    %3607 = vmatprep.subr.mxu0 %v476
    %3608 = vmatpush1.msra.mxu0 %v475
    %3609 = vmatprep.subr.mxu0 %v480
    %3610 = vmatpush1.msra.mxu0 %v479
    %3611 = vmatprep.subr.mxu0 %v484
    %3612 = vmatpush1.msra.mxu0 %v483
    %3613 = vmatprep.subr.mxu0 %v488
    %3614 = vmatpush1.msra.mxu0 %v487
    %3615 = vmatprep.subr.mxu0 %v492
    %3616 = vmatpush1.msra.mxu0 %v491
    %3617 = vmatprep.subr.mxu0 %v496
    %3618 = vmatpush1.msra.mxu0 %v495
    %3619 = vmatprep.subr.mxu0 %v500
    %3620 = vmatpush1.msra.mxu0 %v499
    %3621 = vmatprep.subr.mxu0 %v504
    %3622 = vmatpush1.msra.mxu0 %v503
    %3623 = vmatprep.subr.mxu0 0.0
    %3624 = vmatpush1.msra.mxu0 0.0
    %3625 = vmatprep.subr.mxu0 0.0
    %3626 = vmatpush1.msra.mxu0 0.0
    %3627 = vmatprep.subr.mxu0 0.0
    %3628 = vmatpush1.msra.mxu0 0.0
    %3629 = vmatprep.subr.mxu0 0.0
    %3630 = vmatpush1.msra.mxu0 0.0
    %3631 = vmatprep.subr.mxu0 0.0
    %3632 = vmatpush1.msra.mxu0 0.0
    %3633 = vmatprep.subr.mxu0 0.0
    %3634 = vmatpush1.msra.mxu0 0.0
    %3635 = vmatprep.subr.mxu0 0.0
    %3636 = vmatpush1.msra.mxu0 0.0
    %3637 = vmatprep.subr.mxu0 0.0
    %3638 = vmatpush1.msra.mxu0 0.0
    %3639 = vmatprep.subr.mxu0 0.0
    %3640 = vmatpush1.msra.mxu0 0.0
    %3641 = vmatprep.subr.mxu0 0.0
    %3642 = vmatpush1.msra.mxu0 0.0
    %3643 = vmatprep.subr.mxu0 0.0
    %3644 = vmatpush1.msra.mxu0 0.0
    %3645 = vmatprep.subr.mxu0 0.0
    %3646 = vmatpush1.msra.mxu0 0.0
    %3647 = vmatprep.subr.mxu0 0.0
    %3648 = vmatpush1.msra.mxu0 0.0
    %3649 = vmatprep.subr.mxu0 0.0
    %3650 = vmatpush1.msra.mxu0 0.0
    %3651 = vmatprep.subr.mxu0 0.0
    %3652 = vmatpush1.msra.mxu0 0.0
    %3653 = vmatprep.subr.mxu0 0.0
    %3654 = vmatpush1.msra.mxu0 0.0
    %3655 = vmatprep.mubr.f32.mxu0 0.0
    %3656 = vmatmul.mubr.f32.gmra.mrb[0].mxu0 %v3271
    %v3657 = vpop.f32.mrb[0].mxu0
    %v3658 = vadd.f32 0.0, %v3657
    %v3659 = vpop.f32.mrb[0].mxu0
    %v3660 = vadd.f32 0.0, %v3659
    %3661 = vdwg.mxu0
    %3662 = vmatprep.subr.mxu0 %v446
    %3663 = vmatpush1.msra.mxu0 %v445
    %3664 = vmatprep.subr.mxu0 %v450
    %3665 = vmatpush1.msra.mxu0 %v449
    %3666 = vmatprep.subr.mxu0 %v454
    %3667 = vmatpush1.msra.mxu0 %v453
    %3668 = vmatprep.subr.mxu0 %v458
    %3669 = vmatpush1.msra.mxu0 %v457
    %3670 = vmatprep.subr.mxu0 %v462
    %3671 = vmatpush1.msra.mxu0 %v461
    %3672 = vmatprep.subr.mxu0 %v466
    %3673 = vmatpush1.msra.mxu0 %v465
    %3674 = vmatprep.subr.mxu0 %v470
    %3675 = vmatpush1.msra.mxu0 %v469
    %3676 = vmatprep.subr.mxu0 %v474
    %3677 = vmatpush1.msra.mxu0 %v473
    %3678 = vmatprep.subr.mxu0 %v478
    %3679 = vmatpush1.msra.mxu0 %v477
    %3680 = vmatprep.subr.mxu0 %v482
    %3681 = vmatpush1.msra.mxu0 %v481
    %3682 = vmatprep.subr.mxu0 %v486
    %3683 = vmatpush1.msra.mxu0 %v485
    %3684 = vmatprep.subr.mxu0 %v490
    %3685 = vmatpush1.msra.mxu0 %v489
    %3686 = vmatprep.subr.mxu0 %v494
    %3687 = vmatpush1.msra.mxu0 %v493
    %3688 = vmatprep.subr.mxu0 %v498
    %3689 = vmatpush1.msra.mxu0 %v497
    %3690 = vmatprep.subr.mxu0 %v502
    %3691 = vmatpush1.msra.mxu0 %v501
    %3692 = vmatprep.subr.mxu0 %v506
    %3693 = vmatpush1.msra.mxu0 %v505
    %3694 = vmatprep.subr.mxu0 0.0
    %3695 = vmatpush1.msra.mxu0 0.0
    %3696 = vmatprep.subr.mxu0 0.0
    %3697 = vmatpush1.msra.mxu0 0.0
    %3698 = vmatprep.subr.mxu0 0.0
    %3699 = vmatpush1.msra.mxu0 0.0
    %3700 = vmatprep.subr.mxu0 0.0
    %3701 = vmatpush1.msra.mxu0 0.0
    %3702 = vmatprep.subr.mxu0 0.0
    %3703 = vmatpush1.msra.mxu0 0.0
    %3704 = vmatprep.subr.mxu0 0.0
    %3705 = vmatpush1.msra.mxu0 0.0
    %3706 = vmatprep.subr.mxu0 0.0
    %3707 = vmatpush1.msra.mxu0 0.0
    %3708 = vmatprep.subr.mxu0 0.0
    %3709 = vmatpush1.msra.mxu0 0.0
    %3710 = vmatprep.subr.mxu0 0.0
    %3711 = vmatpush1.msra.mxu0 0.0
    %3712 = vmatprep.subr.mxu0 0.0
    %3713 = vmatpush1.msra.mxu0 0.0
    %3714 = vmatprep.subr.mxu0 0.0
    %3715 = vmatpush1.msra.mxu0 0.0
    %3716 = vmatprep.subr.mxu0 0.0
    %3717 = vmatpush1.msra.mxu0 0.0
    %3718 = vmatprep.subr.mxu0 0.0
    %3719 = vmatpush1.msra.mxu0 0.0
    %3720 = vmatprep.subr.mxu0 0.0
    %3721 = vmatpush1.msra.mxu0 0.0
    %3722 = vmatprep.subr.mxu0 0.0
    %3723 = vmatpush1.msra.mxu0 0.0
    %3724 = vmatprep.subr.mxu0 0.0
    %3725 = vmatpush1.msra.mxu0 0.0
    %3726 = vmatprep.mubr.f32.mxu0 0.0
    %3727 = vmatmul.mubr.f32.gmra.mrb[0].mxu0 %v3271
    %v3728 = vpop.f32.mrb[0].mxu0
    %v3729 = vadd.f32 0.0, %v3728
    %v3730 = vpop.f32.mrb[0].mxu0
    %v3731 = vadd.f32 0.0, %v3730
    %3732 = vdwg.mxu0
    %v3733 = vadd.f32 %v3587, %v3658
    %v3734 = vadd.f32 %v3588, %v3660
    %v3735 = vadd.f32 %v3589, %v3729
    %v3736 = vadd.f32 %v3590, %v3731
    %v3737 = vxor.u32 %v3733, 2147483648
    %v3738 = vmul.f32 %v3737, 1.442695
    %v3739 = vpow.pop %v3738
    %v3740 = vadd.f32 %v3739, 1.0
    %v3741 = vrcp.pop %v3740
    %v3742 = vmul.f32 1.0, %v3741
    %v3743 = vxor.u32 %v3734, 2147483648
    %v3744 = vmul.f32 %v3743, 1.442695
    %v3745 = vpow.pop %v3744
    %v3746 = vadd.f32 %v3745, 1.0
    %v3747 = vrcp.pop %v3746
    %v3748 = vmul.f32 1.0, %v3747
    %v3749 = vtanh.pop %v3735
    %v3750 = vxor.u32 %v3736, 2147483648
    %v3751 = vmul.f32 %v3750, 1.442695
    %v3752 = vpow.pop %v3751
    %v3753 = vadd.f32 %v3752, 1.0
    %v3754 = vrcp.pop %v3753
    %v3755 = vmul.f32 1.0, %v3754
    %v3756 = vmul.f32 %v3748, %v3269
    %v3757 = vmul.f32 %v3742, %v3749
    %v3758 = vadd.f32 %v3756, %v3757
    %v3759 = vtanh.pop %v3758
    %v3760 = vmul.f32 %v3755, %v3759
    %3761 = vmatprep.subr.mxu0 %v742
    %3762 = vmatpush1.msra.mxu0 %v741
    %3763 = vmatprep.subr.mxu0 %v746
    %3764 = vmatpush1.msra.mxu0 %v745
    %3765 = vmatprep.subr.mxu0 %v750
    %3766 = vmatpush1.msra.mxu0 %v749
    %3767 = vmatprep.subr.mxu0 %v754
    %3768 = vmatpush1.msra.mxu0 %v753
    %3769 = vmatprep.subr.mxu0 %v758
    %3770 = vmatpush1.msra.mxu0 %v757
    %3771 = vmatprep.subr.mxu0 %v762
    %3772 = vmatpush1.msra.mxu0 %v761
    %3773 = vmatprep.subr.mxu0 %v766
    %3774 = vmatpush1.msra.mxu0 %v765
    %3775 = vmatprep.subr.mxu0 %v770
    %3776 = vmatpush1.msra.mxu0 %v769
    %3777 = vmatprep.subr.mxu0 %v774
    %3778 = vmatpush1.msra.mxu0 %v773
    %3779 = vmatprep.subr.mxu0 %v778
    %3780 = vmatpush1.msra.mxu0 %v777
    %3781 = vmatprep.subr.mxu0 %v782
    %3782 = vmatpush1.msra.mxu0 %v781
    %3783 = vmatprep.subr.mxu0 %v786
    %3784 = vmatpush1.msra.mxu0 %v785
    %3785 = vmatprep.subr.mxu0 %v790
    %3786 = vmatpush1.msra.mxu0 %v789
    %3787 = vmatprep.subr.mxu0 %v794
    %3788 = vmatpush1.msra.mxu0 %v793
    %3789 = vmatprep.subr.mxu0 %v798
    %3790 = vmatpush1.msra.mxu0 %v797
    %3791 = vmatprep.subr.mxu0 %v802
    %3792 = vmatpush1.msra.mxu0 %v801
    %3793 = vmatprep.subr.mxu0 0.0
    %3794 = vmatpush1.msra.mxu0 0.0
    %3795 = vmatprep.subr.mxu0 0.0
    %3796 = vmatpush1.msra.mxu0 0.0
    %3797 = vmatprep.subr.mxu0 0.0
    %3798 = vmatpush1.msra.mxu0 0.0
    %3799 = vmatprep.subr.mxu0 0.0
    %3800 = vmatpush1.msra.mxu0 0.0
    %3801 = vmatprep.subr.mxu0 0.0
    %3802 = vmatpush1.msra.mxu0 0.0
    %3803 = vmatprep.subr.mxu0 0.0
    %3804 = vmatpush1.msra.mxu0 0.0
    %3805 = vmatprep.subr.mxu0 0.0
    %3806 = vmatpush1.msra.mxu0 0.0
    %3807 = vmatprep.subr.mxu0 0.0
    %3808 = vmatpush1.msra.mxu0 0.0
    %3809 = vmatprep.subr.mxu0 0.0
    %3810 = vmatpush1.msra.mxu0 0.0
    %3811 = vmatprep.subr.mxu0 0.0
    %3812 = vmatpush1.msra.mxu0 0.0
    %3813 = vmatprep.subr.mxu0 0.0
    %3814 = vmatpush1.msra.mxu0 0.0
    %3815 = vmatprep.subr.mxu0 0.0
    %3816 = vmatpush1.msra.mxu0 0.0
    %3817 = vmatprep.subr.mxu0 0.0
    %3818 = vmatpush1.msra.mxu0 0.0
    %3819 = vmatprep.subr.mxu0 0.0
    %3820 = vmatpush1.msra.mxu0 0.0
    %3821 = vmatprep.subr.mxu0 0.0
    %3822 = vmatpush1.msra.mxu0 0.0
    %3823 = vmatprep.subr.mxu0 0.0
    %3824 = vmatpush1.msra.mxu0 0.0
    %3825 = vmatprep.mubr.f32.mxu0 0.0
    %3826 = vmatmul.mubr.f32.gmra.mrb[0].mxu0 %v3583
    %v3827 = vpop.f32.mrb[0].mxu0
    %v3828 = vadd.f32 0.0, %v3827
    %v3829 = vpop.f32.mrb[0].mxu0
    %v3830 = vadd.f32 0.0, %v3829
    %3831 = vdwg.mxu0
    %3832 = vmatprep.subr.mxu0 %v744
    %3833 = vmatpush1.msra.mxu0 %v743
    %3834 = vmatprep.subr.mxu0 %v748
    %3835 = vmatpush1.msra.mxu0 %v747
    %3836 = vmatprep.subr.mxu0 %v752
    %3837 = vmatpush1.msra.mxu0 %v751
    %3838 = vmatprep.subr.mxu0 %v756
    %3839 = vmatpush1.msra.mxu0 %v755
    %3840 = vmatprep.subr.mxu0 %v760
    %3841 = vmatpush1.msra.mxu0 %v759
    %3842 = vmatprep.subr.mxu0 %v764
    %3843 = vmatpush1.msra.mxu0 %v763
    %3844 = vmatprep.subr.mxu0 %v768
    %3845 = vmatpush1.msra.mxu0 %v767
    %3846 = vmatprep.subr.mxu0 %v772
    %3847 = vmatpush1.msra.mxu0 %v771
    %3848 = vmatprep.subr.mxu0 %v776
    %3849 = vmatpush1.msra.mxu0 %v775
    %3850 = vmatprep.subr.mxu0 %v780
    %3851 = vmatpush1.msra.mxu0 %v779
    %3852 = vmatprep.subr.mxu0 %v784
    %3853 = vmatpush1.msra.mxu0 %v783
    %3854 = vmatprep.subr.mxu0 %v788
    %3855 = vmatpush1.msra.mxu0 %v787
    %3856 = vmatprep.subr.mxu0 %v792
    %3857 = vmatpush1.msra.mxu0 %v791
    %3858 = vmatprep.subr.mxu0 %v796
    %3859 = vmatpush1.msra.mxu0 %v795
    %3860 = vmatprep.subr.mxu0 %v800
    %3861 = vmatpush1.msra.mxu0 %v799
    %3862 = vmatprep.subr.mxu0 %v804
    %3863 = vmatpush1.msra.mxu0 %v803
    %3864 = vmatprep.subr.mxu0 0.0
    %3865 = vmatpush1.msra.mxu0 0.0
    %3866 = vmatprep.subr.mxu0 0.0
    %3867 = vmatpush1.msra.mxu0 0.0
    %3868 = vmatprep.subr.mxu0 0.0
    %3869 = vmatpush1.msra.mxu0 0.0
    %3870 = vmatprep.subr.mxu0 0.0
    %3871 = vmatpush1.msra.mxu0 0.0
    %3872 = vmatprep.subr.mxu0 0.0
    %3873 = vmatpush1.msra.mxu0 0.0
    %3874 = vmatprep.subr.mxu0 0.0
    %3875 = vmatpush1.msra.mxu0 0.0
    %3876 = vmatprep.subr.mxu0 0.0
    %3877 = vmatpush1.msra.mxu0 0.0
    %3878 = vmatprep.subr.mxu0 0.0
    %3879 = vmatpush1.msra.mxu0 0.0
    %3880 = vmatprep.subr.mxu0 0.0
    %3881 = vmatpush1.msra.mxu0 0.0
    %3882 = vmatprep.subr.mxu0 0.0
    %3883 = vmatpush1.msra.mxu0 0.0
    %3884 = vmatprep.subr.mxu0 0.0
    %3885 = vmatpush1.msra.mxu0 0.0
    %3886 = vmatprep.subr.mxu0 0.0
    %3887 = vmatpush1.msra.mxu0 0.0
    %3888 = vmatprep.subr.mxu0 0.0
    %3889 = vmatpush1.msra.mxu0 0.0
    %3890 = vmatprep.subr.mxu0 0.0
    %3891 = vmatpush1.msra.mxu0 0.0
    %3892 = vmatprep.subr.mxu0 0.0
    %3893 = vmatpush1.msra.mxu0 0.0
    %3894 = vmatprep.subr.mxu0 0.0
    %3895 = vmatpush1.msra.mxu0 0.0
    %3896 = vmatprep.mubr.f32.mxu0 0.0
    %3897 = vmatmul.mubr.f32.gmra.mrb[0].mxu0 %v3583
    %v3898 = vpop.f32.mrb[0].mxu0
    %v3899 = vadd.f32 0.0, %v3898
    %v3900 = vpop.f32.mrb[0].mxu0
    %v3901 = vadd.f32 0.0, %v3900
    %3902 = vdwg.mxu0
    %3903 = vmatprep.subr.mxu0 %v678
    %3904 = vmatpush1.msra.mxu0 %v677
    %3905 = vmatprep.subr.mxu0 %v682
    %3906 = vmatpush1.msra.mxu0 %v681
    %3907 = vmatprep.subr.mxu0 %v686
    %3908 = vmatpush1.msra.mxu0 %v685
    %3909 = vmatprep.subr.mxu0 %v690
    %3910 = vmatpush1.msra.mxu0 %v689
    %3911 = vmatprep.subr.mxu0 %v694
    %3912 = vmatpush1.msra.mxu0 %v693
    %3913 = vmatprep.subr.mxu0 %v698
    %3914 = vmatpush1.msra.mxu0 %v697
    %3915 = vmatprep.subr.mxu0 %v702
    %3916 = vmatpush1.msra.mxu0 %v701
    %3917 = vmatprep.subr.mxu0 %v706
    %3918 = vmatpush1.msra.mxu0 %v705
    %3919 = vmatprep.subr.mxu0 %v710
    %3920 = vmatpush1.msra.mxu0 %v709
    %3921 = vmatprep.subr.mxu0 %v714
    %3922 = vmatpush1.msra.mxu0 %v713
    %3923 = vmatprep.subr.mxu0 %v718
    %3924 = vmatpush1.msra.mxu0 %v717
    %3925 = vmatprep.subr.mxu0 %v722
    %3926 = vmatpush1.msra.mxu0 %v721
    %3927 = vmatprep.subr.mxu0 %v726
    %3928 = vmatpush1.msra.mxu0 %v725
    %3929 = vmatprep.subr.mxu0 %v730
    %3930 = vmatpush1.msra.mxu0 %v729
    %3931 = vmatprep.subr.mxu0 %v734
    %3932 = vmatpush1.msra.mxu0 %v733
    %3933 = vmatprep.subr.mxu0 %v738
    %3934 = vmatpush1.msra.mxu0 %v737
    %3935 = vmatprep.subr.mxu0 0.0
    %3936 = vmatpush1.msra.mxu0 0.0
    %3937 = vmatprep.subr.mxu0 0.0
    %3938 = vmatpush1.msra.mxu0 0.0
    %3939 = vmatprep.subr.mxu0 0.0
    %3940 = vmatpush1.msra.mxu0 0.0
    %3941 = vmatprep.subr.mxu0 0.0
    %3942 = vmatpush1.msra.mxu0 0.0
    %3943 = vmatprep.subr.mxu0 0.0
    %3944 = vmatpush1.msra.mxu0 0.0
    %3945 = vmatprep.subr.mxu0 0.0
    %3946 = vmatpush1.msra.mxu0 0.0
    %3947 = vmatprep.subr.mxu0 0.0
    %3948 = vmatpush1.msra.mxu0 0.0
    %3949 = vmatprep.subr.mxu0 0.0
    %3950 = vmatpush1.msra.mxu0 0.0
    %3951 = vmatprep.subr.mxu0 0.0
    %3952 = vmatpush1.msra.mxu0 0.0
    %3953 = vmatprep.subr.mxu0 0.0
    %3954 = vmatpush1.msra.mxu0 0.0
    %3955 = vmatprep.subr.mxu0 0.0
    %3956 = vmatpush1.msra.mxu0 0.0
    %3957 = vmatprep.subr.mxu0 0.0
    %3958 = vmatpush1.msra.mxu0 0.0
    %3959 = vmatprep.subr.mxu0 0.0
    %3960 = vmatpush1.msra.mxu0 0.0
    %3961 = vmatprep.subr.mxu0 0.0
    %3962 = vmatpush1.msra.mxu0 0.0
    %3963 = vmatprep.subr.mxu0 0.0
    %3964 = vmatpush1.msra.mxu0 0.0
    %3965 = vmatprep.subr.mxu0 0.0
    %3966 = vmatpush1.msra.mxu0 0.0
    %3967 = vmatprep.mubr.f32.mxu0 0.0
    %3968 = vmatmul.mubr.f32.gmra.mrb[0].mxu0 %v3760
    %v3969 = vpop.f32.mrb[0].mxu0
    %v3970 = vadd.f32 %v3828, %v3969
    %v3971 = vpop.f32.mrb[0].mxu0
    %v3972 = vadd.f32 %v3830, %v3971
    %3973 = vdwg.mxu0
    %3974 = vmatprep.subr.mxu0 %v680
    %3975 = vmatpush1.msra.mxu0 %v679
    %3976 = vmatprep.subr.mxu0 %v684
    %3977 = vmatpush1.msra.mxu0 %v683
    %3978 = vmatprep.subr.mxu0 %v688
    %3979 = vmatpush1.msra.mxu0 %v687
    %3980 = vmatprep.subr.mxu0 %v692
    %3981 = vmatpush1.msra.mxu0 %v691
    %3982 = vmatprep.subr.mxu0 %v696
    %3983 = vmatpush1.msra.mxu0 %v695
    %3984 = vmatprep.subr.mxu0 %v700
    %3985 = vmatpush1.msra.mxu0 %v699
    %3986 = vmatprep.subr.mxu0 %v704
    %3987 = vmatpush1.msra.mxu0 %v703
    %3988 = vmatprep.subr.mxu0 %v708
    %3989 = vmatpush1.msra.mxu0 %v707
    %3990 = vmatprep.subr.mxu0 %v712
    %3991 = vmatpush1.msra.mxu0 %v711
    %3992 = vmatprep.subr.mxu0 %v716
    %3993 = vmatpush1.msra.mxu0 %v715
    %3994 = vmatprep.subr.mxu0 %v720
    %3995 = vmatpush1.msra.mxu0 %v719
    %3996 = vmatprep.subr.mxu0 %v724
    %3997 = vmatpush1.msra.mxu0 %v723
    %3998 = vmatprep.subr.mxu0 %v728
    %3999 = vmatpush1.msra.mxu0 %v727
    %4000 = vmatprep.subr.mxu0 %v732
    %4001 = vmatpush1.msra.mxu0 %v731
    %4002 = vmatprep.subr.mxu0 %v736
    %4003 = vmatpush1.msra.mxu0 %v735
    %4004 = vmatprep.subr.mxu0 %v740
    %4005 = vmatpush1.msra.mxu0 %v739
    %4006 = vmatprep.subr.mxu0 0.0
    %4007 = vmatpush1.msra.mxu0 0.0
    %4008 = vmatprep.subr.mxu0 0.0
    %4009 = vmatpush1.msra.mxu0 0.0
    %4010 = vmatprep.subr.mxu0 0.0
    %4011 = vmatpush1.msra.mxu0 0.0
    %4012 = vmatprep.subr.mxu0 0.0
    %4013 = vmatpush1.msra.mxu0 0.0
    %4014 = vmatprep.subr.mxu0 0.0
    %4015 = vmatpush1.msra.mxu0 0.0
    %4016 = vmatprep.subr.mxu0 0.0
    %4017 = vmatpush1.msra.mxu0 0.0
    %4018 = vmatprep.subr.mxu0 0.0
    %4019 = vmatpush1.msra.mxu0 0.0
    %4020 = vmatprep.subr.mxu0 0.0
    %4021 = vmatpush1.msra.mxu0 0.0
    %4022 = vmatprep.subr.mxu0 0.0
    %4023 = vmatpush1.msra.mxu0 0.0
    %4024 = vmatprep.subr.mxu0 0.0
    %4025 = vmatpush1.msra.mxu0 0.0
    %4026 = vmatprep.subr.mxu0 0.0
    %4027 = vmatpush1.msra.mxu0 0.0
    %4028 = vmatprep.subr.mxu0 0.0
    %4029 = vmatpush1.msra.mxu0 0.0
    %4030 = vmatprep.subr.mxu0 0.0
    %4031 = vmatpush1.msra.mxu0 0.0
    %4032 = vmatprep.subr.mxu0 0.0
    %4033 = vmatpush1.msra.mxu0 0.0
    %4034 = vmatprep.subr.mxu0 0.0
    %4035 = vmatpush1.msra.mxu0 0.0
    %4036 = vmatprep.subr.mxu0 0.0
    %4037 = vmatpush1.msra.mxu0 0.0
    %4038 = vmatprep.mubr.f32.mxu0 0.0
    %4039 = vmatmul.mubr.f32.gmra.mrb[0].mxu0 %v3760
    %v4040 = vpop.f32.mrb[0].mxu0
    %v4041 = vadd.f32 %v3899, %v4040
    %v4042 = vpop.f32.mrb[0].mxu0
    %v4043 = vadd.f32 %v3901, %v4042
    %4044 = vdwg.mxu0
    %v4045 = vadd.f32 %v3970, %v1094
    %v4046 = vadd.f32 %v3972, %v1098
    %v4047 = vadd.f32 %v4041, %v1102
    %v4048 = vadd.f32 %v4043, %v1106
    %v4049 = vxor.u32 %v4045, 2147483648
    %v4050 = vmul.f32 %v4049, 1.442695
    %v4051 = vpow.pop %v4050
    %v4052 = vadd.f32 %v4051, 1.0
    %v4053 = vrcp.pop %v4052
    %v4054 = vmul.f32 1.0, %v4053
    %v4055 = vxor.u32 %v4046, 2147483648
    %v4056 = vmul.f32 %v4055, 1.442695
    %v4057 = vpow.pop %v4056
    %v4058 = vadd.f32 %v4057, 1.0
    %v4059 = vrcp.pop %v4058
    %v4060 = vmul.f32 1.0, %v4059
    %v4061 = vtanh.pop %v4047
    %v4062 = vxor.u32 %v4048, 2147483648
    %v4063 = vmul.f32 %v4062, 1.442695
    %v4064 = vpow.pop %v4063
    %v4065 = vadd.f32 %v4064, 1.0
    %v4066 = vrcp.pop %v4065
    %v4067 = vmul.f32 1.0, %v4066
    %v4068 = vmul.f32 %v4060, %v3581
    %v4069 = vmul.f32 %v4054, %v4061
    %v4070 = vadd.f32 %v4068, %v4069
    %v4071 = vtanh.pop %v4070
    %v4072 = vmul.f32 %v4067, %v4071
    %s4073 = smul.u32 7, 4
    %s4074 = smul.addr %s4073, 8
    %s4075 = scalar_lea.vmem [#allocation4], %s4074
    %v4076 = vld [vmem:[%s4075] sm:$0xff]
    %v4077 = vld [vmem:[%s4075 + $0x8] sm:$0xff]
    %v4078 = vld [vmem:[%s4075 + $0x10] sm:$0xff]
    %v4079 = vld [vmem:[%s4075 + $0x18] sm:$0xff]
    %4080 = vmatprep.subr.mxu0 %v444
    %4081 = vmatpush1.msra.mxu0 %v443
    %4082 = vmatprep.subr.mxu0 %v448
    %4083 = vmatpush1.msra.mxu0 %v447
    %4084 = vmatprep.subr.mxu0 %v452
    %4085 = vmatpush1.msra.mxu0 %v451
    %4086 = vmatprep.subr.mxu0 %v456
    %4087 = vmatpush1.msra.mxu0 %v455
    %4088 = vmatprep.subr.mxu0 %v460
    %4089 = vmatpush1.msra.mxu0 %v459
    %4090 = vmatprep.subr.mxu0 %v464
    %4091 = vmatpush1.msra.mxu0 %v463
    %4092 = vmatprep.subr.mxu0 %v468
    %4093 = vmatpush1.msra.mxu0 %v467
    %4094 = vmatprep.subr.mxu0 %v472
    %4095 = vmatpush1.msra.mxu0 %v471
    %4096 = vmatprep.subr.mxu0 %v476
    %4097 = vmatpush1.msra.mxu0 %v475
    %4098 = vmatprep.subr.mxu0 %v480
    %4099 = vmatpush1.msra.mxu0 %v479
    %4100 = vmatprep.subr.mxu0 %v484
    %4101 = vmatpush1.msra.mxu0 %v483
    %4102 = vmatprep.subr.mxu0 %v488
    %4103 = vmatpush1.msra.mxu0 %v487
    %4104 = vmatprep.subr.mxu0 %v492
    %4105 = vmatpush1.msra.mxu0 %v491
    %4106 = vmatprep.subr.mxu0 %v496
    %4107 = vmatpush1.msra.mxu0 %v495
    %4108 = vmatprep.subr.mxu0 %v500
    %4109 = vmatpush1.msra.mxu0 %v499
    %4110 = vmatprep.subr.mxu0 %v504
    %4111 = vmatpush1.msra.mxu0 %v503
    %4112 = vmatprep.subr.mxu0 0.0
    %4113 = vmatpush1.msra.mxu0 0.0
    %4114 = vmatprep.subr.mxu0 0.0
    %4115 = vmatpush1.msra.mxu0 0.0
    %4116 = vmatprep.subr.mxu0 0.0
    %4117 = vmatpush1.msra.mxu0 0.0
    %4118 = vmatprep.subr.mxu0 0.0
    %4119 = vmatpush1.msra.mxu0 0.0
    %4120 = vmatprep.subr.mxu0 0.0
    %4121 = vmatpush1.msra.mxu0 0.0
    %4122 = vmatprep.subr.mxu0 0.0
    %4123 = vmatpush1.msra.mxu0 0.0
    %4124 = vmatprep.subr.mxu0 0.0
    %4125 = vmatpush1.msra.mxu0 0.0
    %4126 = vmatprep.subr.mxu0 0.0
    %4127 = vmatpush1.msra.mxu0 0.0
    %4128 = vmatprep.subr.mxu0 0.0
    %4129 = vmatpush1.msra.mxu0 0.0
    %4130 = vmatprep.subr.mxu0 0.0
    %4131 = vmatpush1.msra.mxu0 0.0
    %4132 = vmatprep.subr.mxu0 0.0
    %4133 = vmatpush1.msra.mxu0 0.0
    %4134 = vmatprep.subr.mxu0 0.0
    %4135 = vmatpush1.msra.mxu0 0.0
    %4136 = vmatprep.subr.mxu0 0.0
    %4137 = vmatpush1.msra.mxu0 0.0
    %4138 = vmatprep.subr.mxu0 0.0
    %4139 = vmatpush1.msra.mxu0 0.0
    %4140 = vmatprep.subr.mxu0 0.0
    %4141 = vmatpush1.msra.mxu0 0.0
    %4142 = vmatprep.subr.mxu0 0.0
    %4143 = vmatpush1.msra.mxu0 0.0
    %4144 = vmatprep.mubr.f32.mxu0 0.0
    %4145 = vmatmul.mubr.f32.gmra.mrb[0].mxu0 %v3760
    %v4146 = vpop.f32.mrb[0].mxu0
    %v4147 = vadd.f32 0.0, %v4146
    %v4148 = vpop.f32.mrb[0].mxu0
    %v4149 = vadd.f32 0.0, %v4148
    %4150 = vdwg.mxu0
    %4151 = vmatprep.subr.mxu0 %v446
    %4152 = vmatpush1.msra.mxu0 %v445
    %4153 = vmatprep.subr.mxu0 %v450
    %4154 = vmatpush1.msra.mxu0 %v449
    %4155 = vmatprep.subr.mxu0 %v454
    %4156 = vmatpush1.msra.mxu0 %v453
    %4157 = vmatprep.subr.mxu0 %v458
    %4158 = vmatpush1.msra.mxu0 %v457
    %4159 = vmatprep.subr.mxu0 %v462
    %4160 = vmatpush1.msra.mxu0 %v461
    %4161 = vmatprep.subr.mxu0 %v466
    %4162 = vmatpush1.msra.mxu0 %v465
    %4163 = vmatprep.subr.mxu0 %v470
    %4164 = vmatpush1.msra.mxu0 %v469
    %4165 = vmatprep.subr.mxu0 %v474
    %4166 = vmatpush1.msra.mxu0 %v473
    %4167 = vmatprep.subr.mxu0 %v478
    %4168 = vmatpush1.msra.mxu0 %v477
    %4169 = vmatprep.subr.mxu0 %v482
    %4170 = vmatpush1.msra.mxu0 %v481
    %4171 = vmatprep.subr.mxu0 %v486
    %4172 = vmatpush1.msra.mxu0 %v485
    %4173 = vmatprep.subr.mxu0 %v490
    %4174 = vmatpush1.msra.mxu0 %v489
    %4175 = vmatprep.subr.mxu0 %v494
    %4176 = vmatpush1.msra.mxu0 %v493
    %4177 = vmatprep.subr.mxu0 %v498
    %4178 = vmatpush1.msra.mxu0 %v497
    %4179 = vmatprep.subr.mxu0 %v502
    %4180 = vmatpush1.msra.mxu0 %v501
    %4181 = vmatprep.subr.mxu0 %v506
    %4182 = vmatpush1.msra.mxu0 %v505
    %4183 = vmatprep.subr.mxu0 0.0
    %4184 = vmatpush1.msra.mxu0 0.0
    %4185 = vmatprep.subr.mxu0 0.0
    %4186 = vmatpush1.msra.mxu0 0.0
    %4187 = vmatprep.subr.mxu0 0.0
    %4188 = vmatpush1.msra.mxu0 0.0
    %4189 = vmatprep.subr.mxu0 0.0
    %4190 = vmatpush1.msra.mxu0 0.0
    %4191 = vmatprep.subr.mxu0 0.0
    %4192 = vmatpush1.msra.mxu0 0.0
    %4193 = vmatprep.subr.mxu0 0.0
    %4194 = vmatpush1.msra.mxu0 0.0
    %4195 = vmatprep.subr.mxu0 0.0
    %4196 = vmatpush1.msra.mxu0 0.0
    %4197 = vmatprep.subr.mxu0 0.0
    %4198 = vmatpush1.msra.mxu0 0.0
    %4199 = vmatprep.subr.mxu0 0.0
    %4200 = vmatpush1.msra.mxu0 0.0
    %4201 = vmatprep.subr.mxu0 0.0
    %4202 = vmatpush1.msra.mxu0 0.0
    %4203 = vmatprep.subr.mxu0 0.0
    %4204 = vmatpush1.msra.mxu0 0.0
    %4205 = vmatprep.subr.mxu0 0.0
    %4206 = vmatpush1.msra.mxu0 0.0
    %4207 = vmatprep.subr.mxu0 0.0
    %4208 = vmatpush1.msra.mxu0 0.0
    %4209 = vmatprep.subr.mxu0 0.0
    %4210 = vmatpush1.msra.mxu0 0.0
    %4211 = vmatprep.subr.mxu0 0.0
    %4212 = vmatpush1.msra.mxu0 0.0
    %4213 = vmatprep.subr.mxu0 0.0
    %4214 = vmatpush1.msra.mxu0 0.0
    %4215 = vmatprep.mubr.f32.mxu0 0.0
    %4216 = vmatmul.mubr.f32.gmra.mrb[0].mxu0 %v3760
    %v4217 = vpop.f32.mrb[0].mxu0
    %v4218 = vadd.f32 0.0, %v4217
    %v4219 = vpop.f32.mrb[0].mxu0
    %v4220 = vadd.f32 0.0, %v4219
    %4221 = vdwg.mxu0
    %v4222 = vadd.f32 %v4076, %v4147
    %v4223 = vadd.f32 %v4077, %v4149
    %v4224 = vadd.f32 %v4078, %v4218
    %v4225 = vadd.f32 %v4079, %v4220
    %v4226 = vxor.u32 %v4222, 2147483648
    %v4227 = vmul.f32 %v4226, 1.442695
    %v4228 = vpow.pop %v4227
    %v4229 = vadd.f32 %v4228, 1.0
    %v4230 = vrcp.pop %v4229
    %v4231 = vmul.f32 1.0, %v4230
    %v4232 = vxor.u32 %v4223, 2147483648
    %v4233 = vmul.f32 %v4232, 1.442695
    %v4234 = vpow.pop %v4233
    %v4235 = vadd.f32 %v4234, 1.0
    %v4236 = vrcp.pop %v4235
    %v4237 = vmul.f32 1.0, %v4236
    %v4238 = vtanh.pop %v4224
    %v4239 = vxor.u32 %v4225, 2147483648
    %v4240 = vmul.f32 %v4239, 1.442695
    %v4241 = vpow.pop %v4240
    %v4242 = vadd.f32 %v4241, 1.0
    %v4243 = vrcp.pop %v4242
    %v4244 = vmul.f32 1.0, %v4243
    %v4245 = vmul.f32 %v4237, %v3758
    %v4246 = vmul.f32 %v4231, %v4238
    %v4247 = vadd.f32 %v4245, %v4246
    %v4248 = vtanh.pop %v4247
    %v4249 = vmul.f32 %v4244, %v4248
    %4250 = vmatprep.subr.mxu0 %v742
    %4251 = vmatpush1.msra.mxu0 %v741
    %4252 = vmatprep.subr.mxu0 %v746
    %4253 = vmatpush1.msra.mxu0 %v745
    %4254 = vmatprep.subr.mxu0 %v750
    %4255 = vmatpush1.msra.mxu0 %v749
    %4256 = vmatprep.subr.mxu0 %v754
    %4257 = vmatpush1.msra.mxu0 %v753
    %4258 = vmatprep.subr.mxu0 %v758
    %4259 = vmatpush1.msra.mxu0 %v757
    %4260 = vmatprep.subr.mxu0 %v762
    %4261 = vmatpush1.msra.mxu0 %v761
    %4262 = vmatprep.subr.mxu0 %v766
    %4263 = vmatpush1.msra.mxu0 %v765
    %4264 = vmatprep.subr.mxu0 %v770
    %4265 = vmatpush1.msra.mxu0 %v769
    %4266 = vmatprep.subr.mxu0 %v774
    %4267 = vmatpush1.msra.mxu0 %v773
    %4268 = vmatprep.subr.mxu0 %v778
    %4269 = vmatpush1.msra.mxu0 %v777
    %4270 = vmatprep.subr.mxu0 %v782
    %4271 = vmatpush1.msra.mxu0 %v781
    %4272 = vmatprep.subr.mxu0 %v786
    %4273 = vmatpush1.msra.mxu0 %v785
    %4274 = vmatprep.subr.mxu0 %v790
    %4275 = vmatpush1.msra.mxu0 %v789
    %4276 = vmatprep.subr.mxu0 %v794
    %4277 = vmatpush1.msra.mxu0 %v793
    %4278 = vmatprep.subr.mxu0 %v798
    %4279 = vmatpush1.msra.mxu0 %v797
    %4280 = vmatprep.subr.mxu0 %v802
    %4281 = vmatpush1.msra.mxu0 %v801
    %4282 = vmatprep.subr.mxu0 0.0
    %4283 = vmatpush1.msra.mxu0 0.0
    %4284 = vmatprep.subr.mxu0 0.0
    %4285 = vmatpush1.msra.mxu0 0.0
    %4286 = vmatprep.subr.mxu0 0.0
    %4287 = vmatpush1.msra.mxu0 0.0
    %4288 = vmatprep.subr.mxu0 0.0
    %4289 = vmatpush1.msra.mxu0 0.0
    %4290 = vmatprep.subr.mxu0 0.0
    %4291 = vmatpush1.msra.mxu0 0.0
    %4292 = vmatprep.subr.mxu0 0.0
    %4293 = vmatpush1.msra.mxu0 0.0
    %4294 = vmatprep.subr.mxu0 0.0
    %4295 = vmatpush1.msra.mxu0 0.0
    %4296 = vmatprep.subr.mxu0 0.0
    %4297 = vmatpush1.msra.mxu0 0.0
    %4298 = vmatprep.subr.mxu0 0.0
    %4299 = vmatpush1.msra.mxu0 0.0
    %4300 = vmatprep.subr.mxu0 0.0
    %4301 = vmatpush1.msra.mxu0 0.0
    %4302 = vmatprep.subr.mxu0 0.0
    %4303 = vmatpush1.msra.mxu0 0.0
    %4304 = vmatprep.subr.mxu0 0.0
    %4305 = vmatpush1.msra.mxu0 0.0
    %4306 = vmatprep.subr.mxu0 0.0
    %4307 = vmatpush1.msra.mxu0 0.0
    %4308 = vmatprep.subr.mxu0 0.0
    %4309 = vmatpush1.msra.mxu0 0.0
    %4310 = vmatprep.subr.mxu0 0.0
    %4311 = vmatpush1.msra.mxu0 0.0
    %4312 = vmatprep.subr.mxu0 0.0
    %4313 = vmatpush1.msra.mxu0 0.0
    %4314 = vmatprep.mubr.f32.mxu0 0.0
    %4315 = vmatmul.mubr.f32.gmra.mrb[0].mxu0 %v4072
    %v4316 = vpop.f32.mrb[0].mxu0
    %v4317 = vadd.f32 0.0, %v4316
    %v4318 = vpop.f32.mrb[0].mxu0
    %v4319 = vadd.f32 0.0, %v4318
    %4320 = vdwg.mxu0
    %4321 = vmatprep.subr.mxu0 %v744
    %4322 = vmatpush1.msra.mxu0 %v743
    %4323 = vmatprep.subr.mxu0 %v748
    %4324 = vmatpush1.msra.mxu0 %v747
    %4325 = vmatprep.subr.mxu0 %v752
    %4326 = vmatpush1.msra.mxu0 %v751
    %4327 = vmatprep.subr.mxu0 %v756
    %4328 = vmatpush1.msra.mxu0 %v755
    %4329 = vmatprep.subr.mxu0 %v760
    %4330 = vmatpush1.msra.mxu0 %v759
    %4331 = vmatprep.subr.mxu0 %v764
    %4332 = vmatpush1.msra.mxu0 %v763
    %4333 = vmatprep.subr.mxu0 %v768
    %4334 = vmatpush1.msra.mxu0 %v767
    %4335 = vmatprep.subr.mxu0 %v772
    %4336 = vmatpush1.msra.mxu0 %v771
    %4337 = vmatprep.subr.mxu0 %v776
    %4338 = vmatpush1.msra.mxu0 %v775
    %4339 = vmatprep.subr.mxu0 %v780
    %4340 = vmatpush1.msra.mxu0 %v779
    %4341 = vmatprep.subr.mxu0 %v784
    %4342 = vmatpush1.msra.mxu0 %v783
    %4343 = vmatprep.subr.mxu0 %v788
    %4344 = vmatpush1.msra.mxu0 %v787
    %4345 = vmatprep.subr.mxu0 %v792
    %4346 = vmatpush1.msra.mxu0 %v791
    %4347 = vmatprep.subr.mxu0 %v796
    %4348 = vmatpush1.msra.mxu0 %v795
    %4349 = vmatprep.subr.mxu0 %v800
    %4350 = vmatpush1.msra.mxu0 %v799
    %4351 = vmatprep.subr.mxu0 %v804
    %4352 = vmatpush1.msra.mxu0 %v803
    %4353 = vmatprep.subr.mxu0 0.0
    %4354 = vmatpush1.msra.mxu0 0.0
    %4355 = vmatprep.subr.mxu0 0.0
    %4356 = vmatpush1.msra.mxu0 0.0
    %4357 = vmatprep.subr.mxu0 0.0
    %4358 = vmatpush1.msra.mxu0 0.0
    %4359 = vmatprep.subr.mxu0 0.0
    %4360 = vmatpush1.msra.mxu0 0.0
    %4361 = vmatprep.subr.mxu0 0.0
    %4362 = vmatpush1.msra.mxu0 0.0
    %4363 = vmatprep.subr.mxu0 0.0
    %4364 = vmatpush1.msra.mxu0 0.0
    %4365 = vmatprep.subr.mxu0 0.0
    %4366 = vmatpush1.msra.mxu0 0.0
    %4367 = vmatprep.subr.mxu0 0.0
    %4368 = vmatpush1.msra.mxu0 0.0
    %4369 = vmatprep.subr.mxu0 0.0
    %4370 = vmatpush1.msra.mxu0 0.0
    %4371 = vmatprep.subr.mxu0 0.0
    %4372 = vmatpush1.msra.mxu0 0.0
    %4373 = vmatprep.subr.mxu0 0.0
    %4374 = vmatpush1.msra.mxu0 0.0
    %4375 = vmatprep.subr.mxu0 0.0
    %4376 = vmatpush1.msra.mxu0 0.0
    %4377 = vmatprep.subr.mxu0 0.0
    %4378 = vmatpush1.msra.mxu0 0.0
    %4379 = vmatprep.subr.mxu0 0.0
    %4380 = vmatpush1.msra.mxu0 0.0
    %4381 = vmatprep.subr.mxu0 0.0
    %4382 = vmatpush1.msra.mxu0 0.0
    %4383 = vmatprep.subr.mxu0 0.0
    %4384 = vmatpush1.msra.mxu0 0.0
    %4385 = vmatprep.mubr.f32.mxu0 0.0
    %4386 = vmatmul.mubr.f32.gmra.mrb[0].mxu0 %v4072
    %v4387 = vpop.f32.mrb[0].mxu0
    %v4388 = vadd.f32 0.0, %v4387
    %v4389 = vpop.f32.mrb[0].mxu0
    %v4390 = vadd.f32 0.0, %v4389
    %4391 = vdwg.mxu0
    %4392 = vmatprep.subr.mxu0 %v678
    %4393 = vmatpush1.msra.mxu0 %v677
    %4394 = vmatprep.subr.mxu0 %v682
    %4395 = vmatpush1.msra.mxu0 %v681
    %4396 = vmatprep.subr.mxu0 %v686
    %4397 = vmatpush1.msra.mxu0 %v685
    %4398 = vmatprep.subr.mxu0 %v690
    %4399 = vmatpush1.msra.mxu0 %v689
    %4400 = vmatprep.subr.mxu0 %v694
    %4401 = vmatpush1.msra.mxu0 %v693
    %4402 = vmatprep.subr.mxu0 %v698
    %4403 = vmatpush1.msra.mxu0 %v697
    %4404 = vmatprep.subr.mxu0 %v702
    %4405 = vmatpush1.msra.mxu0 %v701
    %4406 = vmatprep.subr.mxu0 %v706
    %4407 = vmatpush1.msra.mxu0 %v705
    %4408 = vmatprep.subr.mxu0 %v710
    %4409 = vmatpush1.msra.mxu0 %v709
    %4410 = vmatprep.subr.mxu0 %v714
    %4411 = vmatpush1.msra.mxu0 %v713
    %4412 = vmatprep.subr.mxu0 %v718
    %4413 = vmatpush1.msra.mxu0 %v717
    %4414 = vmatprep.subr.mxu0 %v722
    %4415 = vmatpush1.msra.mxu0 %v721
    %4416 = vmatprep.subr.mxu0 %v726
    %4417 = vmatpush1.msra.mxu0 %v725
    %4418 = vmatprep.subr.mxu0 %v730
    %4419 = vmatpush1.msra.mxu0 %v729
    %4420 = vmatprep.subr.mxu0 %v734
    %4421 = vmatpush1.msra.mxu0 %v733
    %4422 = vmatprep.subr.mxu0 %v738
    %4423 = vmatpush1.msra.mxu0 %v737
    %4424 = vmatprep.subr.mxu0 0.0
    %4425 = vmatpush1.msra.mxu0 0.0
    %4426 = vmatprep.subr.mxu0 0.0
    %4427 = vmatpush1.msra.mxu0 0.0
    %4428 = vmatprep.subr.mxu0 0.0
    %4429 = vmatpush1.msra.mxu0 0.0
    %4430 = vmatprep.subr.mxu0 0.0
    %4431 = vmatpush1.msra.mxu0 0.0
    %4432 = vmatprep.subr.mxu0 0.0
    %4433 = vmatpush1.msra.mxu0 0.0
    %4434 = vmatprep.subr.mxu0 0.0
    %4435 = vmatpush1.msra.mxu0 0.0
    %4436 = vmatprep.subr.mxu0 0.0
    %4437 = vmatpush1.msra.mxu0 0.0
    %4438 = vmatprep.subr.mxu0 0.0
    %4439 = vmatpush1.msra.mxu0 0.0
    %4440 = vmatprep.subr.mxu0 0.0
    %4441 = vmatpush1.msra.mxu0 0.0
    %4442 = vmatprep.subr.mxu0 0.0
    %4443 = vmatpush1.msra.mxu0 0.0
    %4444 = vmatprep.subr.mxu0 0.0
    %4445 = vmatpush1.msra.mxu0 0.0
    %4446 = vmatprep.subr.mxu0 0.0
    %4447 = vmatpush1.msra.mxu0 0.0
    %4448 = vmatprep.subr.mxu0 0.0
    %4449 = vmatpush1.msra.mxu0 0.0
    %4450 = vmatprep.subr.mxu0 0.0
    %4451 = vmatpush1.msra.mxu0 0.0
    %4452 = vmatprep.subr.mxu0 0.0
    %4453 = vmatpush1.msra.mxu0 0.0
    %4454 = vmatprep.subr.mxu0 0.0
    %4455 = vmatpush1.msra.mxu0 0.0
    %4456 = vmatprep.mubr.f32.mxu0 0.0
    %4457 = vmatmul.mubr.f32.gmra.mrb[0].mxu0 %v4249
    %v4458 = vpop.f32.mrb[0].mxu0
    %v4459 = vadd.f32 %v4317, %v4458
    %v4460 = vpop.f32.mrb[0].mxu0
    %v4461 = vadd.f32 %v4319, %v4460
    %4462 = vdwg.mxu0
    %4463 = vmatprep.subr.mxu0 %v680
    %4464 = vmatpush1.msra.mxu0 %v679
    %4465 = vmatprep.subr.mxu0 %v684
    %4466 = vmatpush1.msra.mxu0 %v683
    %4467 = vmatprep.subr.mxu0 %v688
    %4468 = vmatpush1.msra.mxu0 %v687
    %4469 = vmatprep.subr.mxu0 %v692
    %4470 = vmatpush1.msra.mxu0 %v691
    %4471 = vmatprep.subr.mxu0 %v696
    %4472 = vmatpush1.msra.mxu0 %v695
    %4473 = vmatprep.subr.mxu0 %v700
    %4474 = vmatpush1.msra.mxu0 %v699
    %4475 = vmatprep.subr.mxu0 %v704
    %4476 = vmatpush1.msra.mxu0 %v703
    %4477 = vmatprep.subr.mxu0 %v708
    %4478 = vmatpush1.msra.mxu0 %v707
    %4479 = vmatprep.subr.mxu0 %v712
    %4480 = vmatpush1.msra.mxu0 %v711
    %4481 = vmatprep.subr.mxu0 %v716
    %4482 = vmatpush1.msra.mxu0 %v715
    %4483 = vmatprep.subr.mxu0 %v720
    %4484 = vmatpush1.msra.mxu0 %v719
    %4485 = vmatprep.subr.mxu0 %v724
    %4486 = vmatpush1.msra.mxu0 %v723
    %4487 = vmatprep.subr.mxu0 %v728
    %4488 = vmatpush1.msra.mxu0 %v727
    %4489 = vmatprep.subr.mxu0 %v732
    %4490 = vmatpush1.msra.mxu0 %v731
    %4491 = vmatprep.subr.mxu0 %v736
    %4492 = vmatpush1.msra.mxu0 %v735
    %4493 = vmatprep.subr.mxu0 %v740
    %4494 = vmatpush1.msra.mxu0 %v739
    %4495 = vmatprep.subr.mxu0 0.0
    %4496 = vmatpush1.msra.mxu0 0.0
    %4497 = vmatprep.subr.mxu0 0.0
    %4498 = vmatpush1.msra.mxu0 0.0
    %4499 = vmatprep.subr.mxu0 0.0
    %4500 = vmatpush1.msra.mxu0 0.0
    %4501 = vmatprep.subr.mxu0 0.0
    %4502 = vmatpush1.msra.mxu0 0.0
    %4503 = vmatprep.subr.mxu0 0.0
    %4504 = vmatpush1.msra.mxu0 0.0
    %4505 = vmatprep.subr.mxu0 0.0
    %4506 = vmatpush1.msra.mxu0 0.0
    %4507 = vmatprep.subr.mxu0 0.0
    %4508 = vmatpush1.msra.mxu0 0.0
    %4509 = vmatprep.subr.mxu0 0.0
    %4510 = vmatpush1.msra.mxu0 0.0
    %4511 = vmatprep.subr.mxu0 0.0
    %4512 = vmatpush1.msra.mxu0 0.0
    %4513 = vmatprep.subr.mxu0 0.0
    %4514 = vmatpush1.msra.mxu0 0.0
    %4515 = vmatprep.subr.mxu0 0.0
    %4516 = vmatpush1.msra.mxu0 0.0
    %4517 = vmatprep.subr.mxu0 0.0
    %4518 = vmatpush1.msra.mxu0 0.0
    %4519 = vmatprep.subr.mxu0 0.0
    %4520 = vmatpush1.msra.mxu0 0.0
    %4521 = vmatprep.subr.mxu0 0.0
    %4522 = vmatpush1.msra.mxu0 0.0
    %4523 = vmatprep.subr.mxu0 0.0
    %4524 = vmatpush1.msra.mxu0 0.0
    %4525 = vmatprep.subr.mxu0 0.0
    %4526 = vmatpush1.msra.mxu0 0.0
    %4527 = vmatprep.mubr.f32.mxu0 0.0
    %4528 = vmatmul.mubr.f32.gmra.mrb[0].mxu0 %v4249
    %v4529 = vpop.f32.mrb[0].mxu0
    %v4530 = vadd.f32 %v4388, %v4529
    %v4531 = vpop.f32.mrb[0].mxu0
    %v4532 = vadd.f32 %v4390, %v4531
    %4533 = vdwg.mxu0
    %v4534 = vadd.f32 %v4459, %v1094
    %v4535 = vadd.f32 %v4461, %v1098
    %v4536 = vadd.f32 %v4530, %v1102
    %v4537 = vadd.f32 %v4532, %v1106
    %v4538 = vxor.u32 %v4534, 2147483648
    %v4539 = vmul.f32 %v4538, 1.442695
    %v4540 = vpow.pop %v4539
    %v4541 = vadd.f32 %v4540, 1.0
    %v4542 = vrcp.pop %v4541
    %v4543 = vmul.f32 1.0, %v4542
    %v4544 = vxor.u32 %v4535, 2147483648
    %v4545 = vmul.f32 %v4544, 1.442695
    %v4546 = vpow.pop %v4545
    %v4547 = vadd.f32 %v4546, 1.0
    %v4548 = vrcp.pop %v4547
    %v4549 = vmul.f32 1.0, %v4548
    %v4550 = vtanh.pop %v4536
    %v4551 = vxor.u32 %v4537, 2147483648
    %v4552 = vmul.f32 %v4551, 1.442695
    %v4553 = vpow.pop %v4552
    %v4554 = vadd.f32 %v4553, 1.0
    %v4555 = vrcp.pop %v4554
    %v4556 = vmul.f32 1.0, %v4555
    %v4557 = vmul.f32 %v4549, %v4070
    %v4558 = vmul.f32 %v4543, %v4550
    %v4559 = vadd.f32 %v4557, %v4558
    %v4560 = vtanh.pop %v4559
    %v4561 = vmul.f32 %v4556, %v4560
    %4562 = vst [vmem:[#allocation2] sm:$0xff] %v4249
    %4563 = vst [vmem:[#allocation3] sm:$0xff] %v4247
    %4564 = vst [vmem:[%s432] sm:$0xff] %v4561
    %4565 = vst [vmem:[%s434] sm:$0xff] %v4559
    // Predicated region
    $region62: #{sentiment_forward.1} parent=1 // pred_check
      %p4566 = pneg %p84
    $region63: #{sentiment_forward.1} parent=1 // pred_check_branch
      %4568 = sbr.rel (%p4566) target = $region65
    $region64: #{sentiment_forward.1} parent=1 // pred_region
      %4569 = vst [vmem:[%s12] sm:$0xff] %v4249
      %s4570 = scalar_lea.vmem %s12, 8
      %4571 = vst [vmem:[%s4570] sm:$0xff] %v4561
      %4572 = vst [vmem:[%s13] sm:$0xff] %v4247
      %s4573 = scalar_lea.vmem %s13, 8
      %4574 = vst [vmem:[%s4573] sm:$0xff] %v4559
      %v4575 = vld [vmem:[%s9] sm:$0xff]
      %v4576 = vld [vmem:[%s9 + $0x8] sm:$0xff]
      %v4577 = vld [vmem:[%s9 + $0x10] sm:$0xff]
      %v4578 = vld [vmem:[%s9 + $0x18] sm:$0xff]
      %v4579 = vld [vmem:[%s9 + $0x20] sm:$0xff]
      %v4580 = vld [vmem:[%s9 + $0x28] sm:$0xff]
      %v4581 = vld [vmem:[%s9 + $0x30] sm:$0xff]
      %v4582 = vld [vmem:[%s9 + $0x38] sm:$0xff]
      %v4583 = vld [vmem:[%s9 + $0x40] sm:$0xff]
      %v4584 = vld [vmem:[%s9 + $0x48] sm:$0xff]
      %v4585 = vld [vmem:[%s9 + $0x50] sm:$0xff]
      %v4586 = vld [vmem:[%s9 + $0x58] sm:$0xff]
      %v4587 = vld [vmem:[%s9 + $0x60] sm:$0xff]
      %v4588 = vld [vmem:[%s9 + $0x68] sm:$0xff]
      %v4589 = vld [vmem:[%s9 + $0x70] sm:$0xff]
      %v4590 = vld [vmem:[%s9 + $0x78] sm:$0xff]
      %v4591 = vld [vmem:[#allocation5] sm:$0x1]
      %v4593 = vlaneseq
      %v4594 = vshrl.u32 %v4593, 7
      %v4595 = vsub.s32 0, %v4594
      %v4596 = vrot.slane %v4591, %v4595
      %4598 = vmatprep.subr.mxu0 0.0
      %4599 = vmatpush1.msra.mxu0 %v4575
      %4600 = vmatprep.subr.mxu0 0.0
      %4601 = vmatpush1.msra.mxu0 %v4576
      %4602 = vmatprep.subr.mxu0 0.0
      %4603 = vmatpush1.msra.mxu0 %v4577
      %4604 = vmatprep.subr.mxu0 0.0
      %4605 = vmatpush1.msra.mxu0 %v4578
      %4606 = vmatprep.subr.mxu0 0.0
      %4607 = vmatpush1.msra.mxu0 %v4579
      %4608 = vmatprep.subr.mxu0 0.0
      %4609 = vmatpush1.msra.mxu0 %v4580
      %4610 = vmatprep.subr.mxu0 0.0
      %4611 = vmatpush1.msra.mxu0 %v4581
      %4612 = vmatprep.subr.mxu0 0.0
      %4613 = vmatpush1.msra.mxu0 %v4582
      %4614 = vmatprep.subr.mxu0 0.0
      %4615 = vmatpush1.msra.mxu0 %v4583
      %4616 = vmatprep.subr.mxu0 0.0
      %4617 = vmatpush1.msra.mxu0 %v4584
      %4618 = vmatprep.subr.mxu0 0.0
      %4619 = vmatpush1.msra.mxu0 %v4585
      %4620 = vmatprep.subr.mxu0 0.0
      %4621 = vmatpush1.msra.mxu0 %v4586
      %4622 = vmatprep.subr.mxu0 0.0
      %4623 = vmatpush1.msra.mxu0 %v4587
      %4624 = vmatprep.subr.mxu0 0.0
      %4625 = vmatpush1.msra.mxu0 %v4588
      %4626 = vmatprep.subr.mxu0 0.0
      %4627 = vmatpush1.msra.mxu0 %v4589
      %4628 = vmatprep.subr.mxu0 0.0
      %4629 = vmatpush1.msra.mxu0 %v4590
      %4630 = vmatprep.subr.mxu0 0.0
      %4631 = vmatpush1.msra.mxu0 0.0
      %4632 = vmatprep.subr.mxu0 0.0
      %4633 = vmatpush1.msra.mxu0 0.0
      %4634 = vmatprep.subr.mxu0 0.0
      %4635 = vmatpush1.msra.mxu0 0.0
      %4636 = vmatprep.subr.mxu0 0.0
      %4637 = vmatpush1.msra.mxu0 0.0
      %4638 = vmatprep.subr.mxu0 0.0
      %4639 = vmatpush1.msra.mxu0 0.0
      %4640 = vmatprep.subr.mxu0 0.0
      %4641 = vmatpush1.msra.mxu0 0.0
      %4642 = vmatprep.subr.mxu0 0.0
      %4643 = vmatpush1.msra.mxu0 0.0
      %4644 = vmatprep.subr.mxu0 0.0
      %4645 = vmatpush1.msra.mxu0 0.0
      %4646 = vmatprep.subr.mxu0 0.0
      %4647 = vmatpush1.msra.mxu0 0.0
      %4648 = vmatprep.subr.mxu0 0.0
      %4649 = vmatpush1.msra.mxu0 0.0
      %4650 = vmatprep.subr.mxu0 0.0
      %4651 = vmatpush1.msra.mxu0 0.0
      %4652 = vmatprep.subr.mxu0 0.0
      %4653 = vmatpush1.msra.mxu0 0.0
      %4654 = vmatprep.subr.mxu0 0.0
      %4655 = vmatpush1.msra.mxu0 0.0
      %4656 = vmatprep.subr.mxu0 0.0
      %4657 = vmatpush1.msra.mxu0 0.0
      %4658 = vmatprep.subr.mxu0 0.0
      %4659 = vmatpush1.msra.mxu0 0.0
      %4660 = vmatprep.subr.mxu0 0.0
      %4661 = vmatpush1.msra.mxu0 0.0
      %4662 = vmatprep.mubr.f32.mxu0 0.0
      %4663 = vmatmul.mubr.f32.gmra.mrb[0].mxu0 %v4561
      %v4664 = vpop.f32.mrb[0].mxu0
      %v4665 = vadd.f32 %v4596, %v4664
      %v4666 = vpop.f32.mrb[0].mxu0
      %4667 = vdwg.mxu0
      %v4668 = vxor.u32 %v4665, 2147483648
      %v4669 = vmul.f32 %v4668, 1.442695
      %v4670 = vpow.pop %v4669
      %v4671 = vadd.f32 %v4670, 1.0
      %v4672 = vrcp.pop %v4671
      %v4673 = vmul.f32 1.0, %v4672
      %vm4674 = vcmask 7168
      %4675 = vst.msk [vmem:[%s11] sm:$0xff] %vm4674, %v4673
    $region65: #{sentiment_forward.1} parent=1 // pred_fallthru
      _
    // Predicated region
    $region66: #{sentiment_forward.1} parent=1 // pred_check
      _
    $region67: #{sentiment_forward.1} parent=1 // pred_check_branch
      %4677 = sbr.rel (0) target = $region69
    $region68: #{sentiment_forward.1} parent=1 // pred_region
      _
    $region69: #{sentiment_forward.1} parent=1 // pred_fallthru
      _
    // Predicated region
    $region70: #{sentiment_forward.1} parent=1 // pred_check
      _
    $region71: #{sentiment_forward.1} parent=1 // pred_check_branch
      %4679 = sbr.rel (0) target = $region73
    $region72: #{sentiment_forward.1} parent=1 // pred_region
      _
    $region73: #{sentiment_forward.1} parent=1 // pred_fallthru
      _
    // Predicated region
    $region74: #{sentiment_forward.1} parent=1 // pred_check
      _
    $region75: #{sentiment_forward.1} parent=1 // pred_check_branch
      %4681 = sbr.rel (0) target = $region77
    $region76: #{sentiment_forward.1} parent=1 // pred_region
      _
    $region77: #{sentiment_forward.1} parent=1 // pred_fallthru
      _
    // Predicated region
    $region78: #{sentiment_forward.1} parent=1 // pred_check
      _
    $region79: #{sentiment_forward.1} parent=1 // pred_check_branch
      %4683 = sbr.rel (0) target = $region81
    $region80: #{sentiment_forward.1} parent=1 // pred_region
      _
    $region81: #{sentiment_forward.1} parent=1 // pred_fallthru
      _
    // Predicated region
    $region82: #{sentiment_forward.1} parent=1 // pred_check
      _
    $region83: #{sentiment_forward.1} parent=1 // pred_check_branch
      %4685 = sbr.rel (0) target = $region85
    $region84: #{sentiment_forward.1} parent=1 // pred_region
      _
    $region85: #{sentiment_forward.1} parent=1 // pred_fallthru
      _
    // Predicated region
    $region86: #{sentiment_forward.1} parent=1 // pred_check
      _
    $region87: #{sentiment_forward.1} parent=1 // pred_check_branch
      %4687 = sbr.rel (0) target = $region89
    $region88: #{sentiment_forward.1} parent=1 // pred_region
      _
    $region89: #{sentiment_forward.1} parent=1 // pred_fallthru
      _
    %4688 = vsyncpa [#allocation7], 1
    %4689 = vsyncpa [#allocation9], 1

</llo_original>
